<compile_context>
chip_gen: v7x
topology: tpu7x:2x2x1
jax: 0.10.0
libtpu: 0.0.40
codegen_flags: <defaults>
</compile_context>

<pallas_src>
import functools

import jax
import jax.numpy as jnp
from jax.experimental import pallas as pl
from jax.experimental.pallas import tpu as pltpu

CPAD = 128   # output channels padded to a full lane width (unmasked stores)


# ------------------------------ fused kernel ------------------------------- #

def _disblock_kernel(x_ref, w1_ref, b1_ref, w2sc_ref, b2sc_ref, out_ref,
                     xpad_s, p1_s, hpad_s, p2_s, *maybe_sum,
                     H, W, Cin, Ch, downsample):
    """Fused DisBlock forward for one batch element.

    x_ref:    (1, H, W, Cin)                             input image (NHWC)
    w1_ref:   (9*Cin, Ch),        b1_ref: (1, Ch)        c1 as im2col matmul
    w2sc_ref: (9*Ch + Cin, CPAD), b2sc_ref: (1, CPAD)    [c2 ; 1x1 shortcut]
                                                         stacked, lanes padded
    out_ref:  (1, Ho*Wo, CPAD)  (or (1, H*W, CPAD) when not downsampling)
    """
    x = x_ref[0]                                          # (H, W, Cin)
    x2d = x.reshape(H * W, Cin)

    # ---- residual: relu -> c1 as ONE im2col matmul (K = 9*Cin) -------------
    xpad_s[...] = jnp.zeros_like(xpad_s)                  # zero 1-pixel halo
    xpad_s[1:H + 1, 1:W + 1, :] = jnp.maximum(x, 0.0)     # ReLU applied once
    for t in range(9):
        ky, kx = divmod(t, 3)
        p1_s[:, t * Cin:(t + 1) * Cin] = (
            xpad_s[ky:ky + H, kx:kx + W, :].reshape(H * W, Cin))
    h1 = jnp.dot(p1_s[...], w1_ref[...],
                 preferred_element_type=jnp.float32) + b1_ref[...]   # (H*W, Ch)

    # ---- relu -> c2 AND the 1x1 shortcut as ONE matmul (K = 9*Ch + Cin) ----
    hpad_s[...] = jnp.zeros_like(hpad_s)
    hpad_s[1:H + 1, 1:W + 1, :] = jnp.maximum(h1, 0.0).reshape(H, W, Ch)
    for t in range(9):
        ky, kx = divmod(t, 3)
        p2_s[:, t * Ch:(t + 1) * Ch] = (
            hpad_s[ky:ky + H, kx:kx + W, :].reshape(H * W, Ch))
    p2_s[:, 9 * Ch:9 * Ch + Cin] = x2d        # shortcut input = last K columns
    # s = c2(relu(h1)) + c_sc(x) + (b2 + bsc), lane-dense (H*W, CPAD)
    s = jnp.dot(p2_s[...], w2sc_ref[...],
                preferred_element_type=jnp.float32) + b2sc_ref[...]

    if downsample:
        # avg-pool is linear: pool(h2) + pool(sc) == pool(h2 + sc).
        sum_s = maybe_sum[0]
        Ho, Wo = H // 2, W // 2
        sum_s[...] = s.reshape(H, W, CPAD)
        pooled = (sum_s[pl.ds(0, Ho, 2), pl.ds(0, Wo, 2), :] +
                  sum_s[pl.ds(0, Ho, 2), pl.ds(1, Wo, 2), :] +
                  sum_s[pl.ds(1, Ho, 2), pl.ds(0, Wo, 2), :] +
                  sum_s[pl.ds(1, Ho, 2), pl.ds(1, Wo, 2), :]) * 0.25
        out_ref[0] = pooled.reshape(Ho * Wo, CPAD)         # lane-dense store
    else:
        out_ref[0] = s                                     # lane-dense store


# ------------------------------ wrapper ------------------------------------ #

def dis_block_forward(x_nchw, params, downsample):
    """DisBlock.forward.  x_nchw: (N, Cin, H, W) f32 -> (N, Cout, H', W')."""
    N, Cin, H, W = x_nchw.shape
    Ch = params["w1"].shape[0]
    Cout = params["w2"].shape[0]
    assert Cout <= CPAD and H % 2 == 0 and W % 2 == 0
    learnable_sc = (Cin != Cout) or downsample

    # NHWC activations.  TODO(synk): keep the surrounding model NHWC at real
    # sizes so these two boundary transposes disappear.
    x = jnp.transpose(x_nchw, (0, 2, 3, 1)).astype(jnp.float32)

    # PyTorch (Cout, Cin, kh, kw) -> im2col weight layout (kh*kw*Cin, Cout).
    def conv_w(w):
        ci = w.shape[1]
        return jnp.transpose(w, (2, 3, 1, 0)).reshape(9 * ci, w.shape[0])

    pad_c = lambda a: jnp.pad(a, ((0, 0), (0, CPAD - a.shape[1])))

    w1 = conv_w(params["w1"]).astype(jnp.float32)            # (9*Cin, Ch)
    b1 = params["b1"].reshape(1, Ch).astype(jnp.float32)

    w2 = conv_w(params["w2"])                                 # (9*Ch, Cout)
    b2 = params["b2"].reshape(1, Cout)
    if learnable_sc:
        wsc = jnp.transpose(params["wsc"][:, :, 0, 0], (1, 0))   # (Cin, Cout)
        bsc = params["bsc"].reshape(1, Cout)
    else:   # identity 1x1 "conv" keeps one kernel code path (Cin == Cout here)
        wsc = jnp.eye(Cin, Cout, dtype=jnp.float32)
        bsc = jnp.zeros((1, Cout), jnp.float32)
    # Stack c2 and shortcut weights so the kernel does a single matmul,
    # and pre-sum the two biases (one bias add in the kernel).
    w2sc = pad_c(jnp.concatenate([w2, wsc], axis=0)).astype(jnp.float32)
    b2sc = pad_c(b2 + bsc).astype(jnp.float32)                # (1, CPAD)

    Ho, Wo = (H // 2, W // 2) if downsample else (H, W)
    rows_out = Ho * Wo
    K2 = 9 * Ch + Cin

    kern = functools.partial(_disblock_kernel, H=H, W=W, Cin=Cin, Ch=Ch,
                             downsample=downsample)
    flops = 2 * N * H * W * (9 * Cin * Ch + K2 * CPAD)
    bytes_accessed = 4 * (x.size + w1.size + b1.size + w2sc.size + b2sc.size
                          + N * rows_out * CPAD)

    scratch_shapes = [
        pltpu.VMEM((H + 2, W + 2, Cin), jnp.float32),   # padded relu(x)
        pltpu.VMEM((H * W, 9 * Cin), jnp.float32),      # im2col for c1
        pltpu.VMEM((H + 2, W + 2, Ch), jnp.float32),    # padded relu(h1)
        pltpu.VMEM((H * W, K2), jnp.float32),           # im2col c2 + shortcut
    ]
    if downsample:
        scratch_shapes.append(pltpu.VMEM((H, W, CPAD), jnp.float32))  # pre-pool

    out = pl.pallas_call(
        kern,
        out_shape=jax.ShapeDtypeStruct((N, rows_out, CPAD), jnp.float32),
        grid_spec=pltpu.PrefetchScalarGridSpec(
            num_scalar_prefetch=0,
            grid=(N,),                               # one image per grid step
            in_specs=[
                pl.BlockSpec((1, H, W, Cin), lambda n: (n, 0, 0, 0)),
                pl.BlockSpec((9 * Cin, Ch), lambda n: (0, 0)),
                pl.BlockSpec((1, Ch), lambda n: (0, 0)),
                pl.BlockSpec((K2, CPAD), lambda n: (0, 0)),
                pl.BlockSpec((1, CPAD), lambda n: (0, 0)),
            ],
            out_specs=pl.BlockSpec((1, rows_out, CPAD), lambda n: (n, 0, 0)),
            scratch_shapes=scratch_shapes,
        ),
        compiler_params=pltpu.CompilerParams(
            # batch axis shards across v7x's 2 TensorCores; no-op on v5e/v6e.
            dimension_semantics=("parallel",)),
        cost_estimate=pl.CostEstimate(flops=flops, transcendentals=0,
                                      bytes_accessed=bytes_accessed),
    )(x, w1, b1, w2sc, b2sc)

    out = out[:, :, :Cout].reshape(N, Ho, Wo, Cout)      # drop lane padding
    return jnp.transpose(out, (0, 3, 1, 2))              # back to NCHW


# ------------------------------ pure-JAX reference -------------------------- #

def ref_forward(x, params, downsample):
    dn = ("NCHW", "OIHW", "NCHW")
    prec = jax.lax.Precision.HIGHEST

    def conv(t, w, b, pad):
        y = jax.lax.conv_general_dilated(t, w, (1, 1), [(pad, pad)] * 2,
                                         dimension_numbers=dn, precision=prec)
        return y + b[None, :, None, None]

    def pool(t):
        n, c, h, w = t.shape
        return t.reshape(n, c, h // 2, 2, w // 2, 2).mean(axis=(3, 5))

    relu = lambda t: jnp.maximum(t, 0.0)
    h = conv(relu(x), params["w1"], params["b1"], 1)
    h = conv(relu(h), params["w2"], params["b2"], 1)
    if downsample:
        h = pool(h)
    in_c, out_c = x.shape[1], params["w2"].shape[0]
    if (in_c != out_c) or downsample:
        sc = conv(x, params["wsc"], params["bsc"], 0)
        if downsample:
            sc = pool(sc)
    else:
        sc = x
    return h + sc


# ----------------------------------- main ----------------------------------- #

if __name__ == "__main__":
    N, Cin, H, W = 2, 4, 16, 16
    hidden = Cin          # hidden_channels defaults to in_channels
    Cout = 8
    downsample = True

    key = jax.random.PRNGKey(0)
    kx, k1, k2, k3, k4, k5, k6 = jax.random.split(key, 7)
    x = jax.random.normal(kx, (N, Cin, H, W), jnp.float32)
    params = {
        "w1": 0.1 * jax.random.normal(k1, (hidden, Cin, 3, 3), jnp.float32),
        "b1": 0.1 * jax.random.normal(k2, (hidden,), jnp.float32),
        "w2": 0.1 * jax.random.normal(k3, (Cout, hidden, 3, 3), jnp.float32),
        "b2": 0.1 * jax.random.normal(k4, (Cout,), jnp.float32),
        "wsc": 0.1 * jax.random.normal(k5, (Cout, Cin, 1, 1), jnp.float32),
        "bsc": 0.1 * jax.random.normal(k6, (Cout,), jnp.float32),
    }

    out = jax.block_until_ready(dis_block_forward(x, params, downsample))
    ref = jax.block_until_ready(ref_forward(x, params, downsample))

    assert out.shape == ref.shape, (out.shape, ref.shape)
    max_err = float(jnp.max(jnp.abs(out - ref)))
    assert jnp.allclose(out, ref, atol=1e-4, rtol=1e-4), max_err

    print("KERNEL_OK")
</pallas_src>

<mosaic_0001>
module attributes {stable_mosaic.version = 11 : i64} {
  func.func @_disblock_kernel(%arg0: i32, %arg1: memref<1x16x16x4xf32, #tpu.memory_space<vmem>>, %arg2: memref<36x4xf32, #tpu.memory_space<vmem>>, %arg3: memref<1x4xf32, #tpu.memory_space<vmem>>, %arg4: memref<40x128xf32, #tpu.memory_space<vmem>>, %arg5: memref<1x128xf32, #tpu.memory_space<vmem>>, %arg6: memref<1x64x128xf32, #tpu.memory_space<vmem>>, %arg7: memref<18x18x4xf32, #tpu.memory_space<vmem>>, %arg8: memref<256x36xf32, #tpu.memory_space<vmem>>, %arg9: memref<18x18x4xf32, #tpu.memory_space<vmem>>, %arg10: memref<256x40xf32, #tpu.memory_space<vmem>>, %arg11: memref<16x16x128xf32, #tpu.memory_space<vmem>>) attributes {dimension_semantics = [#tpu.dimension_semantics<parallel>], iteration_bounds = array<i64: 2>, scalar_prefetch = 0 : i64, scratch_operands = 5 : i64, tpu.core_type = #tpu.core_type<tc>, window_params = [{transform_indices = @transform_0, window_bounds = array<i64: 1, 16, 16, 4>}, {pipeline_mode = #tpu.pipeline_mode<synchronous>, transform_indices = @transform_1, window_bounds = array<i64: 36, 4>}, {pipeline_mode = #tpu.pipeline_mode<synchronous>, transform_indices = @transform_2, window_bounds = array<i64: 1, 4>}, {pipeline_mode = #tpu.pipeline_mode<synchronous>, transform_indices = @transform_3, window_bounds = array<i64: 40, 128>}, {pipeline_mode = #tpu.pipeline_mode<synchronous>, transform_indices = @transform_4, window_bounds = array<i64: 1, 128>}, {transform_indices = @transform_5, window_bounds = array<i64: 1, 64, 128>}]} {
    %c0 = arith.constant 0 : index
    %c0_0 = arith.constant 0 : index
    %c0_1 = arith.constant 0 : index
    %c0_2 = arith.constant 0 : index
    %0 = vector.load %arg1[%c0, %c0_0, %c0_1, %c0_2] : memref<1x16x16x4xf32, #tpu.memory_space<vmem>>, vector<1x16x16x4xf32>
    %1 = vector.shape_cast %0 : vector<1x16x16x4xf32> to vector<16x16x4xf32>
    %2 = vector.shape_cast %1 : vector<16x16x4xf32> to vector<256x4xf32>
    %cst = arith.constant 0.000000e+00 : f32
    %3 = vector.broadcast %cst : f32 to vector<18x18x4xf32>
    %c0_3 = arith.constant 0 : index
    %c0_4 = arith.constant 0 : index
    %c0_5 = arith.constant 0 : index
    %4 = vector.load %arg7[%c0_3, %c0_4, %c0_5] : memref<18x18x4xf32, #tpu.memory_space<vmem>>, vector<18x18x4xf32>
    tpu.vector_store %arg7[%c0_3, %c0_4, %c0_5], %3 {strides = array<i32>} : memref<18x18x4xf32, #tpu.memory_space<vmem>>, vector<18x18x4xf32>,
    %cst_6 = arith.constant 0.000000e+00 : f32
    %5 = vector.broadcast %cst_6 : f32 to vector<16x16x4xf32>
    %6 = arith.maximumf %1, %5 : vector<16x16x4xf32>
    %c1 = arith.constant 1 : index
    %c1_7 = arith.constant 1 : index
    %c0_8 = arith.constant 0 : index
    %7 = vector.load %arg7[%c1, %c1_7, %c0_8] : memref<18x18x4xf32, #tpu.memory_space<vmem>>, vector<16x16x4xf32>
    tpu.vector_store %arg7[%c1, %c1_7, %c0_8], %6 {strides = array<i32>} : memref<18x18x4xf32, #tpu.memory_space<vmem>>, vector<16x16x4xf32>,
    %c0_9 = arith.constant 0 : index
    %c0_10 = arith.constant 0 : index
    %c0_11 = arith.constant 0 : index
    %8 = vector.load %arg7[%c0_9, %c0_10, %c0_11] : memref<18x18x4xf32, #tpu.memory_space<vmem>>, vector<16x16x4xf32>
    %9 = vector.shape_cast %8 : vector<16x16x4xf32> to vector<256x4xf32>
    %c0_12 = arith.constant 0 : index
    %c0_13 = arith.constant 0 : index
    %10 = vector.load %arg8[%c0_12, %c0_13] : memref<256x36xf32, #tpu.memory_space<vmem>>, vector<256x4xf32>
    tpu.vector_store %arg8[%c0_12, %c0_13], %9 {strides = array<i32>} : memref<256x36xf32, #tpu.memory_space<vmem>>, vector<256x4xf32>,
    %c0_14 = arith.constant 0 : index
    %c1_15 = arith.constant 1 : index
    %c0_16 = arith.constant 0 : index
    %11 = vector.load %arg7[%c0_14, %c1_15, %c0_16] : memref<18x18x4xf32, #tpu.memory_space<vmem>>, vector<16x16x4xf32>
    %12 = vector.shape_cast %11 : vector<16x16x4xf32> to vector<256x4xf32>
    %c0_17 = arith.constant 0 : index
    %c4 = arith.constant 4 : index
    %13 = vector.load %arg8[%c0_17, %c4] : memref<256x36xf32, #tpu.memory_space<vmem>>, vector<256x4xf32>
    tpu.vector_store %arg8[%c0_17, %c4], %12 {strides = array<i32>} : memref<256x36xf32, #tpu.memory_space<vmem>>, vector<256x4xf32>,
    %c0_18 = arith.constant 0 : index
    %c2 = arith.constant 2 : index
    %c0_19 = arith.constant 0 : index
    %14 = vector.load %arg7[%c0_18, %c2, %c0_19] : memref<18x18x4xf32, #tpu.memory_space<vmem>>, vector<16x16x4xf32>
    %15 = vector.shape_cast %14 : vector<16x16x4xf32> to vector<256x4xf32>
    %c0_20 = arith.constant 0 : index
    %c8 = arith.constant 8 : index
    %16 = vector.load %arg8[%c0_20, %c8] : memref<256x36xf32, #tpu.memory_space<vmem>>, vector<256x4xf32>
    tpu.vector_store %arg8[%c0_20, %c8], %15 {strides = array<i32>} : memref<256x36xf32, #tpu.memory_space<vmem>>, vector<256x4xf32>,
    %c1_21 = arith.constant 1 : index
    %c0_22 = arith.constant 0 : index
    %c0_23 = arith.constant 0 : index
    %17 = vector.load %arg7[%c1_21, %c0_22, %c0_23] : memref<18x18x4xf32, #tpu.memory_space<vmem>>, vector<16x16x4xf32>
    %18 = vector.shape_cast %17 : vector<16x16x4xf32> to vector<256x4xf32>
    %c0_24 = arith.constant 0 : index
    %c12 = arith.constant 12 : index
    %19 = vector.load %arg8[%c0_24, %c12] : memref<256x36xf32, #tpu.memory_space<vmem>>, vector<256x4xf32>
    tpu.vector_store %arg8[%c0_24, %c12], %18 {strides = array<i32>} : memref<256x36xf32, #tpu.memory_space<vmem>>, vector<256x4xf32>,
    %c1_25 = arith.constant 1 : index
    %c1_26 = arith.constant 1 : index
    %c0_27 = arith.constant 0 : index
    %20 = vector.load %arg7[%c1_25, %c1_26, %c0_27] : memref<18x18x4xf32, #tpu.memory_space<vmem>>, vector<16x16x4xf32>
    %21 = vector.shape_cast %20 : vector<16x16x4xf32> to vector<256x4xf32>
    %c0_28 = arith.constant 0 : index
    %c16 = arith.constant 16 : index
    %22 = vector.load %arg8[%c0_28, %c16] : memref<256x36xf32, #tpu.memory_space<vmem>>, vector<256x4xf32>
    tpu.vector_store %arg8[%c0_28, %c16], %21 {strides = array<i32>} : memref<256x36xf32, #tpu.memory_space<vmem>>, vector<256x4xf32>,
    %c1_29 = arith.constant 1 : index
    %c2_30 = arith.constant 2 : index
    %c0_31 = arith.constant 0 : index
    %23 = vector.load %arg7[%c1_29, %c2_30, %c0_31] : memref<18x18x4xf32, #tpu.memory_space<vmem>>, vector<16x16x4xf32>
    %24 = vector.shape_cast %23 : vector<16x16x4xf32> to vector<256x4xf32>
    %c0_32 = arith.constant 0 : index
    %c20 = arith.constant 20 : index
    %25 = vector.load %arg8[%c0_32, %c20] : memref<256x36xf32, #tpu.memory_space<vmem>>, vector<256x4xf32>
    tpu.vector_store %arg8[%c0_32, %c20], %24 {strides = array<i32>} : memref<256x36xf32, #tpu.memory_space<vmem>>, vector<256x4xf32>,
    %c2_33 = arith.constant 2 : index
    %c0_34 = arith.constant 0 : index
    %c0_35 = arith.constant 0 : index
    %26 = vector.load %arg7[%c2_33, %c0_34, %c0_35] : memref<18x18x4xf32, #tpu.memory_space<vmem>>, vector<16x16x4xf32>
    %27 = vector.shape_cast %26 : vector<16x16x4xf32> to vector<256x4xf32>
    %c0_36 = arith.constant 0 : index
    %c24 = arith.constant 24 : index
    %28 = vector.load %arg8[%c0_36, %c24] : memref<256x36xf32, #tpu.memory_space<vmem>>, vector<256x4xf32>
    tpu.vector_store %arg8[%c0_36, %c24], %27 {strides = array<i32>} : memref<256x36xf32, #tpu.memory_space<vmem>>, vector<256x4xf32>,
    %c2_37 = arith.constant 2 : index
    %c1_38 = arith.constant 1 : index
    %c0_39 = arith.constant 0 : index
    %29 = vector.load %arg7[%c2_37, %c1_38, %c0_39] : memref<18x18x4xf32, #tpu.memory_space<vmem>>, vector<16x16x4xf32>
    %30 = vector.shape_cast %29 : vector<16x16x4xf32> to vector<256x4xf32>
    %c0_40 = arith.constant 0 : index
    %c28 = arith.constant 28 : index
    %31 = vector.load %arg8[%c0_40, %c28] : memref<256x36xf32, #tpu.memory_space<vmem>>, vector<256x4xf32>
    tpu.vector_store %arg8[%c0_40, %c28], %30 {strides = array<i32>} : memref<256x36xf32, #tpu.memory_space<vmem>>, vector<256x4xf32>,
    %c2_41 = arith.constant 2 : index
    %c2_42 = arith.constant 2 : index
    %c0_43 = arith.constant 0 : index
    %32 = vector.load %arg7[%c2_41, %c2_42, %c0_43] : memref<18x18x4xf32, #tpu.memory_space<vmem>>, vector<16x16x4xf32>
    %33 = vector.shape_cast %32 : vector<16x16x4xf32> to vector<256x4xf32>
    %c0_44 = arith.constant 0 : index
    %c32 = arith.constant 32 : index
    %34 = vector.load %arg8[%c0_44, %c32] : memref<256x36xf32, #tpu.memory_space<vmem>>, vector<256x4xf32>
    tpu.vector_store %arg8[%c0_44, %c32], %33 {strides = array<i32>} : memref<256x36xf32, #tpu.memory_space<vmem>>, vector<256x4xf32>,
    %c0_45 = arith.constant 0 : index
    %c0_46 = arith.constant 0 : index
    %35 = vector.load %arg8[%c0_45, %c0_46] : memref<256x36xf32, #tpu.memory_space<vmem>>, vector<256x36xf32>
    %c0_47 = arith.constant 0 : index
    %c0_48 = arith.constant 0 : index
    %36 = vector.load %arg2[%c0_47, %c0_48] : memref<36x4xf32, #tpu.memory_space<vmem>>, vector<36x4xf32>
    %cst_49 = arith.constant dense<0.000000e+00> : vector<256x4xf32>
    %37 = tpu.matmul %35, %36, %cst_49 {dimension_numbers = #tpu.dot_dimension_numbers<[1], [0], [0], [1], [0, 0, 1, 1], [], []>} : vector<256x36xf32>, vector<36x4xf32>, vector<256x4xf32> -> vector<256x4xf32>
    %c0_50 = arith.constant 0 : index
    %c0_51 = arith.constant 0 : index
    %38 = vector.load %arg3[%c0_50, %c0_51] : memref<1x4xf32, #tpu.memory_space<vmem>>, vector<1x4xf32>
    %39 = vector.broadcast %38 : vector<1x4xf32> to vector<256x4xf32>
    %40 = arith.addf %37, %39 : vector<256x4xf32>
    %cst_52 = arith.constant 0.000000e+00 : f32
    %41 = vector.broadcast %cst_52 : f32 to vector<18x18x4xf32>
    %c0_53 = arith.constant 0 : index
    %c0_54 = arith.constant 0 : index
    %c0_55 = arith.constant 0 : index
    %42 = vector.load %arg9[%c0_53, %c0_54, %c0_55] : memref<18x18x4xf32, #tpu.memory_space<vmem>>, vector<18x18x4xf32>
    tpu.vector_store %arg9[%c0_53, %c0_54, %c0_55], %41 {strides = array<i32>} : memref<18x18x4xf32, #tpu.memory_space<vmem>>, vector<18x18x4xf32>,
    %cst_56 = arith.constant 0.000000e+00 : f32
    %43 = vector.broadcast %cst_56 : f32 to vector<256x4xf32>
    %44 = arith.maximumf %40, %43 : vector<256x4xf32>
    %45 = vector.shape_cast %44 : vector<256x4xf32> to vector<16x16x4xf32>
    %c1_57 = arith.constant 1 : index
    %c1_58 = arith.constant 1 : index
    %c0_59 = arith.constant 0 : index
    %46 = vector.load %arg9[%c1_57, %c1_58, %c0_59] : memref<18x18x4xf32, #tpu.memory_space<vmem>>, vector<16x16x4xf32>
    tpu.vector_store %arg9[%c1_57, %c1_58, %c0_59], %45 {strides = array<i32>} : memref<18x18x4xf32, #tpu.memory_space<vmem>>, vector<16x16x4xf32>,
    %c0_60 = arith.constant 0 : index
    %c0_61 = arith.constant 0 : index
    %c0_62 = arith.constant 0 : index
    %47 = vector.load %arg9[%c0_60, %c0_61, %c0_62] : memref<18x18x4xf32, #tpu.memory_space<vmem>>, vector<16x16x4xf32>
    %48 = vector.shape_cast %47 : vector<16x16x4xf32> to vector<256x4xf32>
    %c0_63 = arith.constant 0 : index
    %c0_64 = arith.constant 0 : index
    %49 = vector.load %arg10[%c0_63, %c0_64] : memref<256x40xf32, #tpu.memory_space<vmem>>, vector<256x4xf32>
    tpu.vector_store %arg10[%c0_63, %c0_64], %48 {strides = array<i32>} : memref<256x40xf32, #tpu.memory_space<vmem>>, vector<256x4xf32>,
    %c0_65 = arith.constant 0 : index
    %c1_66 = arith.constant 1 : index
    %c0_67 = arith.constant 0 : index
    %50 = vector.load %arg9[%c0_65, %c1_66, %c0_67] : memref<18x18x4xf32, #tpu.memory_space<vmem>>, vector<16x16x4xf32>
    %51 = vector.shape_cast %50 : vector<16x16x4xf32> to vector<256x4xf32>
    %c0_68 = arith.constant 0 : index
    %c4_69 = arith.constant 4 : index
    %52 = vector.load %arg10[%c0_68, %c4_69] : memref<256x40xf32, #tpu.memory_space<vmem>>, vector<256x4xf32>
    tpu.vector_store %arg10[%c0_68, %c4_69], %51 {strides = array<i32>} : memref<256x40xf32, #tpu.memory_space<vmem>>, vector<256x4xf32>,
    %c0_70 = arith.constant 0 : index
    %c2_71 = arith.constant 2 : index
    %c0_72 = arith.constant 0 : index
    %53 = vector.load %arg9[%c0_70, %c2_71, %c0_72] : memref<18x18x4xf32, #tpu.memory_space<vmem>>, vector<16x16x4xf32>
    %54 = vector.shape_cast %53 : vector<16x16x4xf32> to vector<256x4xf32>
    %c0_73 = arith.constant 0 : index
    %c8_74 = arith.constant 8 : index
    %55 = vector.load %arg10[%c0_73, %c8_74] : memref<256x40xf32, #tpu.memory_space<vmem>>, vector<256x4xf32>
    tpu.vector_store %arg10[%c0_73, %c8_74], %54 {strides = array<i32>} : memref<256x40xf32, #tpu.memory_space<vmem>>, vector<256x4xf32>,
    %c1_75 = arith.constant 1 : index
    %c0_76 = arith.constant 0 : index
    %c0_77 = arith.constant 0 : index
    %56 = vector.load %arg9[%c1_75, %c0_76, %c0_77] : memref<18x18x4xf32, #tpu.memory_space<vmem>>, vector<16x16x4xf32>
    %57 = vector.shape_cast %56 : vector<16x16x4xf32> to vector<256x4xf32>
    %c0_78 = arith.constant 0 : index
    %c12_79 = arith.constant 12 : index
    %58 = vector.load %arg10[%c0_78, %c12_79] : memref<256x40xf32, #tpu.memory_space<vmem>>, vector<256x4xf32>
    tpu.vector_store %arg10[%c0_78, %c12_79], %57 {strides = array<i32>} : memref<256x40xf32, #tpu.memory_space<vmem>>, vector<256x4xf32>,
    %c1_80 = arith.constant 1 : index
    %c1_81 = arith.constant 1 : index
    %c0_82 = arith.constant 0 : index
    %59 = vector.load %arg9[%c1_80, %c1_81, %c0_82] : memref<18x18x4xf32, #tpu.memory_space<vmem>>, vector<16x16x4xf32>
    %60 = vector.shape_cast %59 : vector<16x16x4xf32> to vector<256x4xf32>
    %c0_83 = arith.constant 0 : index
    %c16_84 = arith.constant 16 : index
    %61 = vector.load %arg10[%c0_83, %c16_84] : memref<256x40xf32, #tpu.memory_space<vmem>>, vector<256x4xf32>
    tpu.vector_store %arg10[%c0_83, %c16_84], %60 {strides = array<i32>} : memref<256x40xf32, #tpu.memory_space<vmem>>, vector<256x4xf32>,
    %c1_85 = arith.constant 1 : index
    %c2_86 = arith.constant 2 : index
    %c0_87 = arith.constant 0 : index
    %62 = vector.load %arg9[%c1_85, %c2_86, %c0_87] : memref<18x18x4xf32, #tpu.memory_space<vmem>>, vector<16x16x4xf32>
    %63 = vector.shape_cast %62 : vector<16x16x4xf32> to vector<256x4xf32>
    %c0_88 = arith.constant 0 : index
    %c20_89 = arith.constant 20 : index
    %64 = vector.load %arg10[%c0_88, %c20_89] : memref<256x40xf32, #tpu.memory_space<vmem>>, vector<256x4xf32>
    tpu.vector_store %arg10[%c0_88, %c20_89], %63 {strides = array<i32>} : memref<256x40xf32, #tpu.memory_space<vmem>>, vector<256x4xf32>,
    %c2_90 = arith.constant 2 : index
    %c0_91 = arith.constant 0 : index
    %c0_92 = arith.constant 0 : index
    %65 = vector.load %arg9[%c2_90, %c0_91, %c0_92] : memref<18x18x4xf32, #tpu.memory_space<vmem>>, vector<16x16x4xf32>
    %66 = vector.shape_cast %65 : vector<16x16x4xf32> to vector<256x4xf32>
    %c0_93 = arith.constant 0 : index
    %c24_94 = arith.constant 24 : index
    %67 = vector.load %arg10[%c0_93, %c24_94] : memref<256x40xf32, #tpu.memory_space<vmem>>, vector<256x4xf32>
    tpu.vector_store %arg10[%c0_93, %c24_94], %66 {strides = array<i32>} : memref<256x40xf32, #tpu.memory_space<vmem>>, vector<256x4xf32>,
    %c2_95 = arith.constant 2 : index
    %c1_96 = arith.constant 1 : index
    %c0_97 = arith.constant 0 : index
    %68 = vector.load %arg9[%c2_95, %c1_96, %c0_97] : memref<18x18x4xf32, #tpu.memory_space<vmem>>, vector<16x16x4xf32>
    %69 = vector.shape_cast %68 : vector<16x16x4xf32> to vector<256x4xf32>
    %c0_98 = arith.constant 0 : index
    %c28_99 = arith.constant 28 : index
    %70 = vector.load %arg10[%c0_98, %c28_99] : memref<256x40xf32, #tpu.memory_space<vmem>>, vector<256x4xf32>
    tpu.vector_store %arg10[%c0_98, %c28_99], %69 {strides = array<i32>} : memref<256x40xf32, #tpu.memory_space<vmem>>, vector<256x4xf32>,
    %c2_100 = arith.constant 2 : index
    %c2_101 = arith.constant 2 : index
    %c0_102 = arith.constant 0 : index
    %71 = vector.load %arg9[%c2_100, %c2_101, %c0_102] : memref<18x18x4xf32, #tpu.memory_space<vmem>>, vector<16x16x4xf32>
    %72 = vector.shape_cast %71 : vector<16x16x4xf32> to vector<256x4xf32>
    %c0_103 = arith.constant 0 : index
    %c32_104 = arith.constant 32 : index
    %73 = vector.load %arg10[%c0_103, %c32_104] : memref<256x40xf32, #tpu.memory_space<vmem>>, vector<256x4xf32>
    tpu.vector_store %arg10[%c0_103, %c32_104], %72 {strides = array<i32>} : memref<256x40xf32, #tpu.memory_space<vmem>>, vector<256x4xf32>,
    %c0_105 = arith.constant 0 : index
    %c36 = arith.constant 36 : index
    %74 = vector.load %arg10[%c0_105, %c36] : memref<256x40xf32, #tpu.memory_space<vmem>>, vector<256x4xf32>
    tpu.vector_store %arg10[%c0_105, %c36], %2 {strides = array<i32>} : memref<256x40xf32, #tpu.memory_space<vmem>>, vector<256x4xf32>,
    %c0_106 = arith.constant 0 : index
    %c0_107 = arith.constant 0 : index
    %75 = vector.load %arg10[%c0_106, %c0_107] : memref<256x40xf32, #tpu.memory_space<vmem>>, vector<256x40xf32>
    %c0_108 = arith.constant 0 : index
    %c0_109 = arith.constant 0 : index
    %76 = vector.load %arg4[%c0_108, %c0_109] : memref<40x128xf32, #tpu.memory_space<vmem>>, vector<40x128xf32>
    %cst_110 = arith.constant dense<0.000000e+00> : vector<256x128xf32>
    %77 = tpu.matmul %75, %76, %cst_110 {dimension_numbers = #tpu.dot_dimension_numbers<[1], [0], [0], [1], [0, 0, 1, 1], [], []>} : vector<256x40xf32>, vector<40x128xf32>, vector<256x128xf32> -> vector<256x128xf32>
    %c0_111 = arith.constant 0 : index
    %c0_112 = arith.constant 0 : index
    %78 = vector.load %arg5[%c0_111, %c0_112] : memref<1x128xf32, #tpu.memory_space<vmem>>, vector<1x128xf32>
    %79 = vector.broadcast %78 : vector<1x128xf32> to vector<256x128xf32>
    %80 = arith.addf %77, %79 : vector<256x128xf32>
    %81 = vector.shape_cast %80 : vector<256x128xf32> to vector<16x16x128xf32>
    %c0_113 = arith.constant 0 : index
    %c0_114 = arith.constant 0 : index
    %c0_115 = arith.constant 0 : index
    %82 = vector.load %arg11[%c0_113, %c0_114, %c0_115] : memref<16x16x128xf32, #tpu.memory_space<vmem>>, vector<16x16x128xf32>
    tpu.vector_store %arg11[%c0_113, %c0_114, %c0_115], %81 {strides = array<i32>} : memref<16x16x128xf32, #tpu.memory_space<vmem>>, vector<16x16x128xf32>,
    %c0_116 = arith.constant 0 : index
    %c0_117 = arith.constant 0 : index
    %c0_118 = arith.constant 0 : index
    %83 = tpu.strided_load %arg11[%c0_116, %c0_117, %c0_118] {strides = array<i32: 2, 2, 1>} : memref<16x16x128xf32, #tpu.memory_space<vmem>>, vector<8x8x128xf32>
    %c0_119 = arith.constant 0 : index
    %c1_120 = arith.constant 1 : index
    %c0_121 = arith.constant 0 : index
    %84 = tpu.strided_load %arg11[%c0_119, %c1_120, %c0_121] {strides = array<i32: 2, 2, 1>} : memref<16x16x128xf32, #tpu.memory_space<vmem>>, vector<8x8x128xf32>
    %85 = arith.addf %83, %84 : vector<8x8x128xf32>
    %c1_122 = arith.constant 1 : index
    %c0_123 = arith.constant 0 : index
    %c0_124 = arith.constant 0 : index
    %86 = tpu.strided_load %arg11[%c1_122, %c0_123, %c0_124] {strides = array<i32: 2, 2, 1>} : memref<16x16x128xf32, #tpu.memory_space<vmem>>, vector<8x8x128xf32>
    %87 = arith.addf %85, %86 : vector<8x8x128xf32>
    %c1_125 = arith.constant 1 : index
    %c1_126 = arith.constant 1 : index
    %c0_127 = arith.constant 0 : index
    %88 = tpu.strided_load %arg11[%c1_125, %c1_126, %c0_127] {strides = array<i32: 2, 2, 1>} : memref<16x16x128xf32, #tpu.memory_space<vmem>>, vector<8x8x128xf32>
    %89 = arith.addf %87, %88 : vector<8x8x128xf32>
    %cst_128 = arith.constant 2.500000e-01 : f32
    %90 = vector.broadcast %cst_128 : f32 to vector<8x8x128xf32>
    %91 = arith.mulf %89, %90 : vector<8x8x128xf32>
    %92 = vector.shape_cast %91 : vector<8x8x128xf32> to vector<64x128xf32>
    %c0_129 = arith.constant 0 : index
    %c0_130 = arith.constant 0 : index
    %c0_131 = arith.constant 0 : index
    %93 = vector.load %arg6[%c0_129, %c0_130, %c0_131] : memref<1x64x128xf32, #tpu.memory_space<vmem>>, vector<1x64x128xf32>
    %94 = vector.shape_cast %93 : vector<1x64x128xf32> to vector<64x128xf32>
    %95 = vector.shape_cast %92 : vector<64x128xf32> to vector<1x64x128xf32>
    tpu.vector_store %arg6[%c0_129, %c0_130, %c0_131], %95 {strides = array<i32>} : memref<1x64x128xf32, #tpu.memory_space<vmem>>, vector<1x64x128xf32>,
    return
  }
  func.func @transform_0(%arg0: i32) -> (i32, i32, i32, i32) {
    %c0_i32 = arith.constant 0 : i32
    %c0_i32_0 = arith.constant 0 : i32
    %c0_i32_1 = arith.constant 0 : i32
    %c0_i32_2 = arith.constant 0 : i32
    return %arg0, %c0_i32, %c0_i32_0, %c0_i32_1 : i32, i32, i32, i32
  }
  func.func @transform_1(%arg0: i32) -> (i32, i32) {
    %c0_i32 = arith.constant 0 : i32
    %c0_i32_0 = arith.constant 0 : i32
    %c0_i32_1 = arith.constant 0 : i32
    return %c0_i32, %c0_i32_0 : i32, i32
  }
  func.func @transform_2(%arg0: i32) -> (i32, i32) {
    %c0_i32 = arith.constant 0 : i32
    %c0_i32_0 = arith.constant 0 : i32
    %c0_i32_1 = arith.constant 0 : i32
    return %c0_i32, %c0_i32_0 : i32, i32
  }
  func.func @transform_3(%arg0: i32) -> (i32, i32) {
    %c0_i32 = arith.constant 0 : i32
    %c0_i32_0 = arith.constant 0 : i32
    %c0_i32_1 = arith.constant 0 : i32
    return %c0_i32, %c0_i32_0 : i32, i32
  }
  func.func @transform_4(%arg0: i32) -> (i32, i32) {
    %c0_i32 = arith.constant 0 : i32
    %c0_i32_0 = arith.constant 0 : i32
    %c0_i32_1 = arith.constant 0 : i32
    return %c0_i32, %c0_i32_0 : i32, i32
  }
  func.func @transform_5(%arg0: i32) -> (i32, i32, i32) {
    %c0_i32 = arith.constant 0 : i32
    %c0_i32_0 = arith.constant 0 : i32
    %c0_i32_1 = arith.constant 0 : i32
    return %arg0, %c0_i32, %c0_i32_0 : i32, i32, i32
  }
}

</mosaic_0001>

<llo_original>
// kernel: tpu_custom_call.1
$region0: #{tpu_custom_call.1}
  #allocation0 [shape = 'u32[]', space=smem, size = 0x4, offset = 0x4, fixed_abs, tag = 'smem constant byte address 0x4 - core index']
  #allocation1 [shape = 'u32[144,128]{1,0:T(1,128)}', space=vmem, size = 0x12000, scoped, tag = 'internal scratch']
  #allocation2 [shape = 'f32[18,18,4]{2,1,0:T(8,128)}', space=vmem, size = 0x36000, scoped, tag = 'scratch operand']
  #allocation3 [shape = 'f32[256,36]{1,0:T(8,128)}', space=vmem, size = 0x20000, scoped, tag = 'scratch operand']
  #allocation4 [shape = 'f32[18,18,4]{2,1,0:T(8,128)}', space=vmem, size = 0x36000, scoped, tag = 'scratch operand']
  #allocation5 [shape = 'f32[256,40]{1,0:T(8,128)}', space=vmem, size = 0x20000, scoped, tag = 'scratch operand']
  #allocation6 [shape = 'f32[16,16,128]{2,1,0:T(8,128)}', space=vmem, size = 0x20000, scoped, tag = 'scratch operand']
  %s0 = inlined_call_operand.vmem [shape: f32[2,16,16,4], index: 0, kind: input, shape index: {}]
  %s1 = inlined_call_operand.vmem [shape: f32[36,4], index: 1, kind: input, shape index: {}]
  %s2 = inlined_call_operand.vmem [shape: f32[1,4], index: 2, kind: input, shape index: {}]
  %s3 = inlined_call_operand.vmem [shape: f32[40,128], index: 3, kind: input, shape index: {}]
  %s4 = inlined_call_operand.vmem [shape: f32[1,128], index: 4, kind: input, shape index: {}]
  %s5 = inlined_call_operand.hbm [shape: f32[2,64,128], index: 5, kind: output, shape index: {}]
  %s6 = sld [smem:[#allocation0]]
  $region53: #{tpu_custom_call.1} parent=0
    _
  %s8 = ssub.s32 1, %s6
  %s9 = scalar_select 0, %s8, %s6
  $region1: #{tpu_custom_call.1} parent=0
    #allocation7 [shape = 'u8[65536]{0}', space=vmem, size = 0x10000, scoped, tag = 'output window, operand 0']
    #allocation8 [shape = 's32[2]{0}', space=sflag, size = 0x8, scoped, tag = 'scoped memory for tpu_custom_call.1']
    %10 = vsyncpa [#allocation8], 0
    %s11 = scalar_lea.sflag [#allocation8], 1
    %12 = vsyncpa %s11, 0
    loop: start=0, step=1, limit=4
    $region2: #{tpu_custom_call.1} parent=1 // loop_pre_header
      _
    $region3: #{tpu_custom_call.1} parent=1 // loop_header
      %s14 = sphi 0, %s18
      %p15 = scmp.ge.s32.totalorder %s14, 4
      %s24 = sphi 0, %s26
      %s27 = sphi 0, %s24
      %s28 = sphi 0, %s27
      %s44 = sphi 0, %s28
      %s48 = sphi 0, %s48
      %s50 = sphi 0, %s48
      %s51 = sphi 0, %s50
      %s65 = sphi 0, %s51
      %s69 = sphi 0, %s69
      %s71 = sphi 0, %s69
      %s72 = sphi 0, %s71
      %s86 = sphi 0, %s72
      %s90 = sphi 0, %s90
      %s92 = sphi 0, %s90
      %s93 = sphi 0, %s92
      %s107 = sphi 0, %s93
      %s111 = sphi 0, %s111
      %s113 = sphi 0, %s111
      %s114 = sphi 0, %s113
      %s128 = sphi 0, %s114
      %s134 = sphi 0, %s136
      %s137 = sphi 0, %s134
      %s138 = sphi 0, %s137
      %s154 = sphi 0, %s138
    $region4: #{tpu_custom_call.1} parent=1 // loop_header_branch
      %17 = sbr.rel (%p15) target = $region8
    $region5: #{tpu_custom_call.1} parent=1 // loop_body
      %s19 = ssub.s32 %s14, 1
      %s20 = ssub.s32 %s14, 2
      %s21 = sadd.s32 %s14, 1
      %s22 = ssub.s32 %s14, %s21
      %p23 = scmp.eq.s32.totalorder %s22, 0
      %s25 = sadd.s32 %s24, 1
      %s26 = scalar_select %p23, %s24, %s25
      %p29 = pneg %p23
      %p30 = scmp.eq.s32.totalorder %s14, 1
      %p31 = por %p29, %p30
      %p32 = scmp.ne.s32.totalorder %s24, %s27
      %p33 = scmp.eq.s32.totalorder %s14, 0
      %p34 = por %p32, %p33
      %p35 = scmp.ne.s32.totalorder %s24, %s27
      %p36 = scmp.eq.s32.totalorder %s19, 1
      %p37 = por %p35, %p36
      %p38 = scmp.ne.s32.totalorder %s27, %s28
      %p39 = scmp.eq.s32.totalorder %s19, 0
      %p40 = por %p38, %p39
      %p41 = scmp.ne.s32.totalorder %s27, %s28
      %p42 = scmp.eq.s32.totalorder %s20, 1
      %p43 = por %p41, %p42
      %p45 = scmp.ne.s32.totalorder %s28, %s44
      %p46 = scmp.eq.s32.totalorder %s20, 0
      %p47 = por %p45, %p46
      %s49 = sadd.s32 %s48, 1
      %p52 = scmp.eq.s32.totalorder %s14, 1
      %p53 = scmp.ne.s32.totalorder %s48, %s50
      %p54 = scmp.eq.s32.totalorder %s14, 0
      %p55 = por %p53, %p54
      %p56 = scmp.ne.s32.totalorder %s48, %s50
      %p57 = scmp.eq.s32.totalorder %s19, 1
      %p58 = por %p56, %p57
      %p59 = scmp.ne.s32.totalorder %s50, %s51
      %p60 = scmp.eq.s32.totalorder %s19, 0
      %p61 = por %p59, %p60
      %p62 = scmp.ne.s32.totalorder %s50, %s51
      %p63 = scmp.eq.s32.totalorder %s20, 1
      %p64 = por %p62, %p63
      %p66 = scmp.ne.s32.totalorder %s51, %s65
      %p67 = scmp.eq.s32.totalorder %s20, 0
      %p68 = por %p66, %p67
      %s70 = sadd.s32 %s69, 1
      %p73 = scmp.eq.s32.totalorder %s14, 1
      %p74 = scmp.ne.s32.totalorder %s69, %s71
      %p75 = scmp.eq.s32.totalorder %s14, 0
      %p76 = por %p74, %p75
      %p77 = scmp.ne.s32.totalorder %s69, %s71
      %p78 = scmp.eq.s32.totalorder %s19, 1
      %p79 = por %p77, %p78
      %p80 = scmp.ne.s32.totalorder %s71, %s72
      %p81 = scmp.eq.s32.totalorder %s19, 0
      %p82 = por %p80, %p81
      %p83 = scmp.ne.s32.totalorder %s71, %s72
      %p84 = scmp.eq.s32.totalorder %s20, 1
      %p85 = por %p83, %p84
      %p87 = scmp.ne.s32.totalorder %s72, %s86
      %p88 = scmp.eq.s32.totalorder %s20, 0
      %p89 = por %p87, %p88
      %s91 = sadd.s32 %s90, 1
      %p94 = scmp.eq.s32.totalorder %s14, 1
      %p95 = scmp.ne.s32.totalorder %s90, %s92
      %p96 = scmp.eq.s32.totalorder %s14, 0
      %p97 = por %p95, %p96
      %p98 = scmp.ne.s32.totalorder %s90, %s92
      %p99 = scmp.eq.s32.totalorder %s19, 1
      %p100 = por %p98, %p99
      %p101 = scmp.ne.s32.totalorder %s92, %s93
      %p102 = scmp.eq.s32.totalorder %s19, 0
      %p103 = por %p101, %p102
      %p104 = scmp.ne.s32.totalorder %s92, %s93
      %p105 = scmp.eq.s32.totalorder %s20, 1
      %p106 = por %p104, %p105
      %p108 = scmp.ne.s32.totalorder %s93, %s107
      %p109 = scmp.eq.s32.totalorder %s20, 0
      %p110 = por %p108, %p109
      %s112 = sadd.s32 %s111, 1
      %p115 = scmp.eq.s32.totalorder %s14, 1
      %p116 = scmp.ne.s32.totalorder %s111, %s113
      %p117 = scmp.eq.s32.totalorder %s14, 0
      %p118 = por %p116, %p117
      %p119 = scmp.ne.s32.totalorder %s111, %s113
      %p120 = scmp.eq.s32.totalorder %s19, 1
      %p121 = por %p119, %p120
      %p122 = scmp.ne.s32.totalorder %s113, %s114
      %p123 = scmp.eq.s32.totalorder %s19, 0
      %p124 = por %p122, %p123
      %p125 = scmp.ne.s32.totalorder %s113, %s114
      %p126 = scmp.eq.s32.totalorder %s20, 1
      %p127 = por %p125, %p126
      %p129 = scmp.ne.s32.totalorder %s114, %s128
      %p130 = scmp.eq.s32.totalorder %s20, 0
      %p131 = por %p129, %p130
      %s132 = ssub.s32 %s14, %s21
      %p133 = scmp.eq.s32.totalorder %s132, 0
      %s135 = sadd.s32 %s134, 1
      %s136 = scalar_select %p133, %s134, %s135
      %p139 = pneg %p133
      %p140 = scmp.eq.s32.totalorder %s14, 1
      %p141 = por %p139, %p140
      %p142 = scmp.ne.s32.totalorder %s134, %s137
      %p143 = scmp.eq.s32.totalorder %s14, 0
      %p144 = por %p142, %p143
      %p145 = scmp.ne.s32.totalorder %s134, %s137
      %p146 = scmp.eq.s32.totalorder %s19, 1
      %p147 = por %p145, %p146
      %p148 = scmp.ne.s32.totalorder %s137, %s138
      %p149 = scmp.eq.s32.totalorder %s19, 0
      %p150 = por %p148, %p149
      %p151 = scmp.ne.s32.totalorder %s137, %s138
      %p152 = scmp.eq.s32.totalorder %s20, 1
      %p153 = por %p151, %p152
      %p155 = scmp.ne.s32.totalorder %s138, %s154
      %p156 = scmp.eq.s32.totalorder %s20, 0
      %p157 = por %p155, %p156
      %p158 = scmp.le.s32.totalorder 1, %s14
      %p159 = scmp.lt.s32.totalorder %s14, 3
      %p160 = pnand %p158, %p159
      %p161 = pneg %p160
      // Predicated region
      $region9: #{tpu_custom_call.1} parent=5 // pred_check
        _
      $region10: #{tpu_custom_call.1} parent=5 // pred_check_branch
        %163 = sbr.rel (%p160) target = $region12
      $region11: #{tpu_custom_call.1} parent=5 // pred_region
        %s164 = ssub.s32 %s14, 1
        // Predicated region
        $region13: #{tpu_custom_call.1} parent=11 // pred_check
          %p165 = pneg %p61
        $region14: #{tpu_custom_call.1} parent=11 // pred_check_branch
          %167 = sbr.rel (%p165) target = $region16
        $region15: #{tpu_custom_call.1} parent=11 // pred_region
          _
        $region16: #{tpu_custom_call.1} parent=11 // pred_fallthru
          _
        // Predicated region
        $region17: #{tpu_custom_call.1} parent=11 // pred_check
          %p168 = pneg %p82
        $region18: #{tpu_custom_call.1} parent=11 // pred_check_branch
          %170 = sbr.rel (%p168) target = $region20
        $region19: #{tpu_custom_call.1} parent=11 // pred_region
          _
        $region20: #{tpu_custom_call.1} parent=11 // pred_fallthru
          _
        // Predicated region
        $region21: #{tpu_custom_call.1} parent=11 // pred_check
          %p171 = pneg %p103
        $region22: #{tpu_custom_call.1} parent=11 // pred_check_branch
          %173 = sbr.rel (%p171) target = $region24
        $region23: #{tpu_custom_call.1} parent=11 // pred_region
          _
        $region24: #{tpu_custom_call.1} parent=11 // pred_fallthru
          _
        // Predicated region
        $region25: #{tpu_custom_call.1} parent=11 // pred_check
          %p174 = pneg %p124
        $region26: #{tpu_custom_call.1} parent=11 // pred_check_branch
          %176 = sbr.rel (%p174) target = $region28
        $region27: #{tpu_custom_call.1} parent=11 // pred_region
          _
        $region28: #{tpu_custom_call.1} parent=11 // pred_fallthru
          _
      $region12: #{tpu_custom_call.1} parent=5 // pred_fallthru
        _
      %p177 = scmp.lt.s32.totalorder %s14, 2
      // Predicated region
      $region29: #{tpu_custom_call.1} parent=5 // pred_check
        %p178 = pneg %p177
      $region30: #{tpu_custom_call.1} parent=5 // pred_check_branch
        %180 = sbr.rel (%p178) target = $region32
      $region31: #{tpu_custom_call.1} parent=5 // pred_region
        // Predicated region
        $region33: #{tpu_custom_call.1} parent=31 // pred_check
          %p181 = pneg %p34
        $region34: #{tpu_custom_call.1} parent=31 // pred_check_branch
          %183 = sbr.rel (%p181) target = $region36
        $region35: #{tpu_custom_call.1} parent=31 // pred_region
          %p184 = scmp.lt.s32.totalorder %s14, 1
          %s185 = scalar_select %p184, %s14, 1
          %s186 = smul.addr %s185, 32
          %s187 = smul.addr %s186, 8
          %s188 = scalar_lea.vmem %s0, %s187
        $region36: #{tpu_custom_call.1} parent=31 // pred_fallthru
          _
      $region32: #{tpu_custom_call.1} parent=5 // pred_fallthru
        _
      %p189 = scmp.le.s32.totalorder 1, %s14
      %p190 = scmp.lt.s32.totalorder %s14, 3
      %p191 = pnand %p189, %p190
      %p192 = pneg %p191
      // Predicated region
      $region37: #{tpu_custom_call.1} parent=5 // pred_check
        _
      $region38: #{tpu_custom_call.1} parent=5 // pred_check_branch
        %194 = sbr.rel (%p191) target = $region40
      $region39: #{tpu_custom_call.1} parent=5 // pred_region
        %s195 = ssub.s32 %s14, 1
        %p196 = scmp.lt.s32.totalorder %s19, 1
        %s197 = scalar_select %p196, %s19, 1
        %s198 = smul.addr %s197, 32
        %s199 = smul.addr %s198, 8
        %s200 = scalar_lea.vmem %s0, %s199
        %p201 = pneg %p40
        %p202 = pneg %p37
        %p203 = pneg %p61
        %p204 = pneg %p58
        %p205 = pneg %p82
        %p206 = pneg %p79
        %p207 = pneg %p103
        %p208 = pneg %p100
        %p209 = pneg %p124
        %p210 = pneg %p121
        %p211 = pneg %p150
        %p212 = pneg %p147
        %s213 = sand.u32 %s137, 1
        %s214 = scalar_lea.sflag [#allocation8], %s213
        %s215 = sand.u32 %s137, 1
        %s216 = smul.addr %s215, 64
        %s217 = scalar_lea.vmem [#allocation7], %s216
        %p218 = scmp.lt.s32.totalorder %s19, 1
        %s219 = scalar_select %p218, %s19, 1
        %s220 = smul.addr %s219, 32
        %s221 = smul.addr %s220, 8
        %s222 = scalar_lea.vmem %s0, %s221
        %v223 = vld [vmem:[%s222] sm:$0xff]
        %v224 = vld [vmem:[%s222 + $0x8] sm:$0xff]
        %v225 = vld [vmem:[%s222 + $0x10] sm:$0xff]
        %v226 = vld [vmem:[%s222 + $0x18] sm:$0xff]
        %v227 = vld [vmem:[%s222 + $0x20] sm:$0xff]
        %v228 = vld [vmem:[%s222 + $0x28] sm:$0xff]
        %v229 = vld [vmem:[%s222 + $0x30] sm:$0xff]
        %v230 = vld [vmem:[%s222 + $0x38] sm:$0xff]
        %v231 = vld [vmem:[%s222 + $0x40] sm:$0xff]
        %v232 = vld [vmem:[%s222 + $0x48] sm:$0xff]
        %v233 = vld [vmem:[%s222 + $0x50] sm:$0xff]
        %v234 = vld [vmem:[%s222 + $0x58] sm:$0xff]
        %v235 = vld [vmem:[%s222 + $0x60] sm:$0xff]
        %v236 = vld [vmem:[%s222 + $0x68] sm:$0xff]
        %v237 = vld [vmem:[%s222 + $0x70] sm:$0xff]
        %v238 = vld [vmem:[%s222 + $0x78] sm:$0xff]
        %v239 = vld [vmem:[%s222 + $0x80] sm:$0xff]
        %v240 = vld [vmem:[%s222 + $0x88] sm:$0xff]
        %v241 = vld [vmem:[%s222 + $0x90] sm:$0xff]
        %v242 = vld [vmem:[%s222 + $0x98] sm:$0xff]
        %v243 = vld [vmem:[%s222 + $0xa0] sm:$0xff]
        %v244 = vld [vmem:[%s222 + $0xa8] sm:$0xff]
        %v245 = vld [vmem:[%s222 + $0xb0] sm:$0xff]
        %v246 = vld [vmem:[%s222 + $0xb8] sm:$0xff]
        %v247 = vld [vmem:[%s222 + $0xc0] sm:$0xff]
        %v248 = vld [vmem:[%s222 + $0xc8] sm:$0xff]
        %v249 = vld [vmem:[%s222 + $0xd0] sm:$0xff]
        %v250 = vld [vmem:[%s222 + $0xd8] sm:$0xff]
        %v251 = vld [vmem:[%s222 + $0xe0] sm:$0xff]
        %v252 = vld [vmem:[%s222 + $0xe8] sm:$0xff]
        %v253 = vld [vmem:[%s222 + $0xf0] sm:$0xff]
        %v254 = vld [vmem:[%s222 + $0xf8] sm:$0xff]
        %vm255 = vcmask 31744
        %256 = vst.msk [vmem:[#allocation2] sm:$0xff] %vm255, 0.0
        %257 = vst.msk [vmem:[#allocation2 + $0x8] sm:$0xff] %vm255, 0.0
        %vm258 = vcmask 25600
        %259 = vst.msk [vmem:[#allocation2 + $0x10] sm:$0x3] %vm258, 0.0
        %260 = vst.msk [vmem:[#allocation2 + $0x18] sm:$0xff] %vm255, 0.0
        %261 = vst.msk [vmem:[#allocation2 + $0x20] sm:$0xff] %vm255, 0.0
        %262 = vst.msk [vmem:[#allocation2 + $0x28] sm:$0x3] %vm258, 0.0
        %263 = vst.msk [vmem:[#allocation2 + $0x30] sm:$0xff] %vm255, 0.0
        %264 = vst.msk [vmem:[#allocation2 + $0x38] sm:$0xff] %vm255, 0.0
        %265 = vst.msk [vmem:[#allocation2 + $0x40] sm:$0x3] %vm258, 0.0
        %266 = vst.msk [vmem:[#allocation2 + $0x48] sm:$0xff] %vm255, 0.0
        %267 = vst.msk [vmem:[#allocation2 + $0x50] sm:$0xff] %vm255, 0.0
        %268 = vst.msk [vmem:[#allocation2 + $0x58] sm:$0x3] %vm258, 0.0
        %269 = vst.msk [vmem:[#allocation2 + $0x60] sm:$0xff] %vm255, 0.0
        %270 = vst.msk [vmem:[#allocation2 + $0x68] sm:$0xff] %vm255, 0.0
        %271 = vst.msk [vmem:[#allocation2 + $0x70] sm:$0x3] %vm258, 0.0
        %272 = vst.msk [vmem:[#allocation2 + $0x78] sm:$0xff] %vm255, 0.0
        %273 = vst.msk [vmem:[#allocation2 + $0x80] sm:$0xff] %vm255, 0.0
        %274 = vst.msk [vmem:[#allocation2 + $0x88] sm:$0x3] %vm258, 0.0
        %275 = vst.msk [vmem:[#allocation2 + $0x90] sm:$0xff] %vm255, 0.0
        %276 = vst.msk [vmem:[#allocation2 + $0x98] sm:$0xff] %vm255, 0.0
        %277 = vst.msk [vmem:[#allocation2 + $0xa0] sm:$0x3] %vm258, 0.0
        %278 = vst.msk [vmem:[#allocation2 + $0xa8] sm:$0xff] %vm255, 0.0
        %279 = vst.msk [vmem:[#allocation2 + $0xb0] sm:$0xff] %vm255, 0.0
        %280 = vst.msk [vmem:[#allocation2 + $0xb8] sm:$0x3] %vm258, 0.0
        %281 = vst.msk [vmem:[#allocation2 + $0xc0] sm:$0xff] %vm255, 0.0
        %282 = vst.msk [vmem:[#allocation2 + $0xc8] sm:$0xff] %vm255, 0.0
        %283 = vst.msk [vmem:[#allocation2 + $0xd0] sm:$0x3] %vm258, 0.0
        %284 = vst.msk [vmem:[#allocation2 + $0xd8] sm:$0xff] %vm255, 0.0
        %285 = vst.msk [vmem:[#allocation2 + $0xe0] sm:$0xff] %vm255, 0.0
        %286 = vst.msk [vmem:[#allocation2 + $0xe8] sm:$0x3] %vm258, 0.0
        %287 = vst.msk [vmem:[#allocation2 + $0xf0] sm:$0xff] %vm255, 0.0
        %288 = vst.msk [vmem:[#allocation2 + $0xf8] sm:$0xff] %vm255, 0.0
        %289 = vst.msk [vmem:[#allocation2 + $0x100] sm:$0x3] %vm258, 0.0
        %290 = vst.msk [vmem:[#allocation2 + $0x108] sm:$0xff] %vm255, 0.0
        %291 = vst.msk [vmem:[#allocation2 + $0x110] sm:$0xff] %vm255, 0.0
        %292 = vst.msk [vmem:[#allocation2 + $0x118] sm:$0x3] %vm258, 0.0
        %293 = vst.msk [vmem:[#allocation2 + $0x120] sm:$0xff] %vm255, 0.0
        %294 = vst.msk [vmem:[#allocation2 + $0x128] sm:$0xff] %vm255, 0.0
        %295 = vst.msk [vmem:[#allocation2 + $0x130] sm:$0x3] %vm258, 0.0
        %296 = vst.msk [vmem:[#allocation2 + $0x138] sm:$0xff] %vm255, 0.0
        %297 = vst.msk [vmem:[#allocation2 + $0x140] sm:$0xff] %vm255, 0.0
        %298 = vst.msk [vmem:[#allocation2 + $0x148] sm:$0x3] %vm258, 0.0
        %299 = vst.msk [vmem:[#allocation2 + $0x150] sm:$0xff] %vm255, 0.0
        %300 = vst.msk [vmem:[#allocation2 + $0x158] sm:$0xff] %vm255, 0.0
        %301 = vst.msk [vmem:[#allocation2 + $0x160] sm:$0x3] %vm258, 0.0
        %302 = vst.msk [vmem:[#allocation2 + $0x168] sm:$0xff] %vm255, 0.0
        %303 = vst.msk [vmem:[#allocation2 + $0x170] sm:$0xff] %vm255, 0.0
        %304 = vst.msk [vmem:[#allocation2 + $0x178] sm:$0x3] %vm258, 0.0
        %305 = vst.msk [vmem:[#allocation2 + $0x180] sm:$0xff] %vm255, 0.0
        %306 = vst.msk [vmem:[#allocation2 + $0x188] sm:$0xff] %vm255, 0.0
        %307 = vst.msk [vmem:[#allocation2 + $0x190] sm:$0x3] %vm258, 0.0
        %308 = vst.msk [vmem:[#allocation2 + $0x198] sm:$0xff] %vm255, 0.0
        %309 = vst.msk [vmem:[#allocation2 + $0x1a0] sm:$0xff] %vm255, 0.0
        %310 = vst.msk [vmem:[#allocation2 + $0x1a8] sm:$0x3] %vm258, 0.0
        %v311 = vmax.f32 %v223, 0.0
        %v312 = vmax.f32 %v224, 0.0
        %v313 = vmax.f32 %v225, 0.0
        %v314 = vmax.f32 %v226, 0.0
        %v315 = vmax.f32 %v227, 0.0
        %v316 = vmax.f32 %v228, 0.0
        %v317 = vmax.f32 %v229, 0.0
        %v318 = vmax.f32 %v230, 0.0
        %v319 = vmax.f32 %v231, 0.0
        %v320 = vmax.f32 %v232, 0.0
        %v321 = vmax.f32 %v233, 0.0
        %v322 = vmax.f32 %v234, 0.0
        %v323 = vmax.f32 %v235, 0.0
        %v324 = vmax.f32 %v236, 0.0
        %v325 = vmax.f32 %v237, 0.0
        %v326 = vmax.f32 %v238, 0.0
        %v327 = vmax.f32 %v239, 0.0
        %v328 = vmax.f32 %v240, 0.0
        %v329 = vmax.f32 %v241, 0.0
        %v330 = vmax.f32 %v242, 0.0
        %v331 = vmax.f32 %v243, 0.0
        %v332 = vmax.f32 %v244, 0.0
        %v333 = vmax.f32 %v245, 0.0
        %v334 = vmax.f32 %v246, 0.0
        %v335 = vmax.f32 %v247, 0.0
        %v336 = vmax.f32 %v248, 0.0
        %v337 = vmax.f32 %v249, 0.0
        %v338 = vmax.f32 %v250, 0.0
        %v339 = vmax.f32 %v251, 0.0
        %v340 = vmax.f32 %v252, 0.0
        %v341 = vmax.f32 %v253, 0.0
        %v342 = vmax.f32 %v254, 0.0
        %s343 = scalar_lea.vmem [#allocation2], 24
        %344 = vst.msk [vmem:[%s343 + $0x1] sm:$0xff] %vm255, %v311
        %345 = vst.msk [vmem:[%s343 + $0x9] sm:$0xff] %vm255, %v312
        %346 = vst.msk [vmem:[%s343 + $0x19] sm:$0xff] %vm255, %v313
        %347 = vst.msk [vmem:[%s343 + $0x21] sm:$0xff] %vm255, %v314
        %348 = vst.msk [vmem:[%s343 + $0x31] sm:$0xff] %vm255, %v315
        %349 = vst.msk [vmem:[%s343 + $0x39] sm:$0xff] %vm255, %v316
        %350 = vst.msk [vmem:[%s343 + $0x49] sm:$0xff] %vm255, %v317
        %351 = vst.msk [vmem:[%s343 + $0x51] sm:$0xff] %vm255, %v318
        %352 = vst.msk [vmem:[%s343 + $0x61] sm:$0xff] %vm255, %v319
        %353 = vst.msk [vmem:[%s343 + $0x69] sm:$0xff] %vm255, %v320
        %354 = vst.msk [vmem:[%s343 + $0x79] sm:$0xff] %vm255, %v321
        %355 = vst.msk [vmem:[%s343 + $0x81] sm:$0xff] %vm255, %v322
        %356 = vst.msk [vmem:[%s343 + $0x91] sm:$0xff] %vm255, %v323
        %357 = vst.msk [vmem:[%s343 + $0x99] sm:$0xff] %vm255, %v324
        %358 = vst.msk [vmem:[%s343 + $0xa9] sm:$0xff] %vm255, %v325
        %359 = vst.msk [vmem:[%s343 + $0xb1] sm:$0xff] %vm255, %v326
        %360 = vst.msk [vmem:[%s343 + $0xc1] sm:$0xff] %vm255, %v327
        %361 = vst.msk [vmem:[%s343 + $0xc9] sm:$0xff] %vm255, %v328
        %362 = vst.msk [vmem:[%s343 + $0xd9] sm:$0xff] %vm255, %v329
        %363 = vst.msk [vmem:[%s343 + $0xe1] sm:$0xff] %vm255, %v330
        %364 = vst.msk [vmem:[%s343 + $0xf1] sm:$0xff] %vm255, %v331
        %365 = vst.msk [vmem:[%s343 + $0xf9] sm:$0xff] %vm255, %v332
        %366 = vst.msk [vmem:[%s343 + $0x109] sm:$0xff] %vm255, %v333
        %367 = vst.msk [vmem:[%s343 + $0x111] sm:$0xff] %vm255, %v334
        %368 = vst.msk [vmem:[%s343 + $0x121] sm:$0xff] %vm255, %v335
        %369 = vst.msk [vmem:[%s343 + $0x129] sm:$0xff] %vm255, %v336
        %370 = vst.msk [vmem:[%s343 + $0x139] sm:$0xff] %vm255, %v337
        %371 = vst.msk [vmem:[%s343 + $0x141] sm:$0xff] %vm255, %v338
        %372 = vst.msk [vmem:[%s343 + $0x151] sm:$0xff] %vm255, %v339
        %373 = vst.msk [vmem:[%s343 + $0x159] sm:$0xff] %vm255, %v340
        %374 = vst.msk [vmem:[%s343 + $0x169] sm:$0xff] %vm255, %v341
        %375 = vst.msk [vmem:[%s343 + $0x171] sm:$0xff] %vm255, %v342
        %v376 = vld [vmem:[#allocation2] sm:$0xff]
        %v377 = vld [vmem:[#allocation2 + $0x8] sm:$0xff]
        %v378 = vld [vmem:[#allocation2 + $0x18] sm:$0xff]
        %v379 = vld [vmem:[#allocation2 + $0x20] sm:$0xff]
        %v380 = vld [vmem:[#allocation2 + $0x30] sm:$0xff]
        %v381 = vld [vmem:[#allocation2 + $0x38] sm:$0xff]
        %v382 = vld [vmem:[#allocation2 + $0x48] sm:$0xff]
        %v383 = vld [vmem:[#allocation2 + $0x50] sm:$0xff]
        %v384 = vld [vmem:[#allocation2 + $0x60] sm:$0xff]
        %v385 = vld [vmem:[#allocation2 + $0x68] sm:$0xff]
        %v386 = vld [vmem:[#allocation2 + $0x78] sm:$0xff]
        %v387 = vld [vmem:[#allocation2 + $0x80] sm:$0xff]
        %v388 = vld [vmem:[#allocation2 + $0x90] sm:$0xff]
        %v389 = vld [vmem:[#allocation2 + $0x98] sm:$0xff]
        %v390 = vld [vmem:[#allocation2 + $0xa8] sm:$0xff]
        %v391 = vld [vmem:[#allocation2 + $0xb0] sm:$0xff]
        %v392 = vld [vmem:[#allocation2 + $0xc0] sm:$0xff]
        %v393 = vld [vmem:[#allocation2 + $0xc8] sm:$0xff]
        %v394 = vld [vmem:[#allocation2 + $0xd8] sm:$0xff]
        %v395 = vld [vmem:[#allocation2 + $0xe0] sm:$0xff]
        %v396 = vld [vmem:[#allocation2 + $0xf0] sm:$0xff]
        %v397 = vld [vmem:[#allocation2 + $0xf8] sm:$0xff]
        %v398 = vld [vmem:[#allocation2 + $0x108] sm:$0xff]
        %v399 = vld [vmem:[#allocation2 + $0x110] sm:$0xff]
        %v400 = vld [vmem:[#allocation2 + $0x120] sm:$0xff]
        %v401 = vld [vmem:[#allocation2 + $0x128] sm:$0xff]
        %v402 = vld [vmem:[#allocation2 + $0x138] sm:$0xff]
        %v403 = vld [vmem:[#allocation2 + $0x140] sm:$0xff]
        %v404 = vld [vmem:[#allocation2 + $0x150] sm:$0xff]
        %v405 = vld [vmem:[#allocation2 + $0x158] sm:$0xff]
        %v406 = vld [vmem:[#allocation2 + $0x168] sm:$0xff]
        %v407 = vld [vmem:[#allocation2 + $0x170] sm:$0xff]
        %408 = vst.msk [vmem:[#allocation3] sm:$0xff] %vm255, %v376
        %409 = vst.msk [vmem:[#allocation3 + $0x8] sm:$0xff] %vm255, %v377
        %410 = vst.msk [vmem:[#allocation3 + $0x10] sm:$0xff] %vm255, %v378
        %411 = vst.msk [vmem:[#allocation3 + $0x18] sm:$0xff] %vm255, %v379
        %412 = vst.msk [vmem:[#allocation3 + $0x20] sm:$0xff] %vm255, %v380
        %413 = vst.msk [vmem:[#allocation3 + $0x28] sm:$0xff] %vm255, %v381
        %414 = vst.msk [vmem:[#allocation3 + $0x30] sm:$0xff] %vm255, %v382
        %415 = vst.msk [vmem:[#allocation3 + $0x38] sm:$0xff] %vm255, %v383
        %416 = vst.msk [vmem:[#allocation3 + $0x40] sm:$0xff] %vm255, %v384
        %417 = vst.msk [vmem:[#allocation3 + $0x48] sm:$0xff] %vm255, %v385
        %418 = vst.msk [vmem:[#allocation3 + $0x50] sm:$0xff] %vm255, %v386
        %419 = vst.msk [vmem:[#allocation3 + $0x58] sm:$0xff] %vm255, %v387
        %420 = vst.msk [vmem:[#allocation3 + $0x60] sm:$0xff] %vm255, %v388
        %421 = vst.msk [vmem:[#allocation3 + $0x68] sm:$0xff] %vm255, %v389
        %422 = vst.msk [vmem:[#allocation3 + $0x70] sm:$0xff] %vm255, %v390
        %423 = vst.msk [vmem:[#allocation3 + $0x78] sm:$0xff] %vm255, %v391
        %424 = vst.msk [vmem:[#allocation3 + $0x80] sm:$0xff] %vm255, %v392
        %425 = vst.msk [vmem:[#allocation3 + $0x88] sm:$0xff] %vm255, %v393
        %426 = vst.msk [vmem:[#allocation3 + $0x90] sm:$0xff] %vm255, %v394
        %427 = vst.msk [vmem:[#allocation3 + $0x98] sm:$0xff] %vm255, %v395
        %428 = vst.msk [vmem:[#allocation3 + $0xa0] sm:$0xff] %vm255, %v396
        %429 = vst.msk [vmem:[#allocation3 + $0xa8] sm:$0xff] %vm255, %v397
        %430 = vst.msk [vmem:[#allocation3 + $0xb0] sm:$0xff] %vm255, %v398
        %431 = vst.msk [vmem:[#allocation3 + $0xb8] sm:$0xff] %vm255, %v399
        %432 = vst.msk [vmem:[#allocation3 + $0xc0] sm:$0xff] %vm255, %v400
        %433 = vst.msk [vmem:[#allocation3 + $0xc8] sm:$0xff] %vm255, %v401
        %434 = vst.msk [vmem:[#allocation3 + $0xd0] sm:$0xff] %vm255, %v402
        %435 = vst.msk [vmem:[#allocation3 + $0xd8] sm:$0xff] %vm255, %v403
        %436 = vst.msk [vmem:[#allocation3 + $0xe0] sm:$0xff] %vm255, %v404
        %437 = vst.msk [vmem:[#allocation3 + $0xe8] sm:$0xff] %vm255, %v405
        %438 = vst.msk [vmem:[#allocation3 + $0xf0] sm:$0xff] %vm255, %v406
        %439 = vst.msk [vmem:[#allocation3 + $0xf8] sm:$0xff] %vm255, %v407
        %v440 = vld [vmem:[#allocation2 + $0x1] sm:$0xff]
        %v441 = vld [vmem:[#allocation2 + $0x9] sm:$0xff]
        %v442 = vld [vmem:[#allocation2 + $0x19] sm:$0xff]
        %v443 = vld [vmem:[#allocation2 + $0x21] sm:$0xff]
        %v444 = vld [vmem:[#allocation2 + $0x31] sm:$0xff]
        %v445 = vld [vmem:[#allocation2 + $0x39] sm:$0xff]
        %v446 = vld [vmem:[#allocation2 + $0x49] sm:$0xff]
        %v447 = vld [vmem:[#allocation2 + $0x51] sm:$0xff]
        %v448 = vld [vmem:[#allocation2 + $0x61] sm:$0xff]
        %v449 = vld [vmem:[#allocation2 + $0x69] sm:$0xff]
        %v450 = vld [vmem:[#allocation2 + $0x79] sm:$0xff]
        %v451 = vld [vmem:[#allocation2 + $0x81] sm:$0xff]
        %v452 = vld [vmem:[#allocation2 + $0x91] sm:$0xff]
        %v453 = vld [vmem:[#allocation2 + $0x99] sm:$0xff]
        %v454 = vld [vmem:[#allocation2 + $0xa9] sm:$0xff]
        %v455 = vld [vmem:[#allocation2 + $0xb1] sm:$0xff]
        %v456 = vld [vmem:[#allocation2 + $0xc1] sm:$0xff]
        %v457 = vld [vmem:[#allocation2 + $0xc9] sm:$0xff]
        %v458 = vld [vmem:[#allocation2 + $0xd9] sm:$0xff]
        %v459 = vld [vmem:[#allocation2 + $0xe1] sm:$0xff]
        %v460 = vld [vmem:[#allocation2 + $0xf1] sm:$0xff]
        %v461 = vld [vmem:[#allocation2 + $0xf9] sm:$0xff]
        %v462 = vld [vmem:[#allocation2 + $0x109] sm:$0xff]
        %v463 = vld [vmem:[#allocation2 + $0x111] sm:$0xff]
        %v464 = vld [vmem:[#allocation2 + $0x121] sm:$0xff]
        %v465 = vld [vmem:[#allocation2 + $0x129] sm:$0xff]
        %v466 = vld [vmem:[#allocation2 + $0x139] sm:$0xff]
        %v467 = vld [vmem:[#allocation2 + $0x141] sm:$0xff]
        %v468 = vld [vmem:[#allocation2 + $0x151] sm:$0xff]
        %v469 = vld [vmem:[#allocation2 + $0x159] sm:$0xff]
        %v470 = vld [vmem:[#allocation2 + $0x169] sm:$0xff]
        %v471 = vld [vmem:[#allocation2 + $0x171] sm:$0xff]
        %504 = vrot.lane.b32.xlu0 %v440, 4
        %v505 = vpop.permute.xlu0 %504
        %506 = vrot.lane.b32.xlu0 %v441, 4
        %v507 = vpop.permute.xlu0 %506
        %508 = vrot.lane.b32.xlu0 %v442, 4
        %v509 = vpop.permute.xlu0 %508
        %510 = vrot.lane.b32.xlu0 %v443, 4
        %v511 = vpop.permute.xlu0 %510
        %512 = vrot.lane.b32.xlu0 %v444, 4
        %v513 = vpop.permute.xlu0 %512
        %514 = vrot.lane.b32.xlu0 %v445, 4
        %v515 = vpop.permute.xlu0 %514
        %516 = vrot.lane.b32.xlu0 %v446, 4
        %v517 = vpop.permute.xlu0 %516
        %518 = vrot.lane.b32.xlu0 %v447, 4
        %v519 = vpop.permute.xlu0 %518
        %520 = vrot.lane.b32.xlu0 %v448, 4
        %v521 = vpop.permute.xlu0 %520
        %522 = vrot.lane.b32.xlu0 %v449, 4
        %v523 = vpop.permute.xlu0 %522
        %524 = vrot.lane.b32.xlu0 %v450, 4
        %v525 = vpop.permute.xlu0 %524
        %526 = vrot.lane.b32.xlu0 %v451, 4
        %v527 = vpop.permute.xlu0 %526
        %528 = vrot.lane.b32.xlu0 %v452, 4
        %v529 = vpop.permute.xlu0 %528
        %530 = vrot.lane.b32.xlu0 %v453, 4
        %v531 = vpop.permute.xlu0 %530
        %532 = vrot.lane.b32.xlu0 %v454, 4
        %v533 = vpop.permute.xlu0 %532
        %534 = vrot.lane.b32.xlu0 %v455, 4
        %v535 = vpop.permute.xlu0 %534
        %536 = vrot.lane.b32.xlu0 %v456, 4
        %v537 = vpop.permute.xlu0 %536
        %538 = vrot.lane.b32.xlu0 %v457, 4
        %v539 = vpop.permute.xlu0 %538
        %540 = vrot.lane.b32.xlu0 %v458, 4
        %v541 = vpop.permute.xlu0 %540
        %542 = vrot.lane.b32.xlu0 %v459, 4
        %v543 = vpop.permute.xlu0 %542
        %544 = vrot.lane.b32.xlu0 %v460, 4
        %v545 = vpop.permute.xlu0 %544
        %546 = vrot.lane.b32.xlu0 %v461, 4
        %v547 = vpop.permute.xlu0 %546
        %548 = vrot.lane.b32.xlu0 %v462, 4
        %v549 = vpop.permute.xlu0 %548
        %550 = vrot.lane.b32.xlu0 %v463, 4
        %v551 = vpop.permute.xlu0 %550
        %552 = vrot.lane.b32.xlu0 %v464, 4
        %v553 = vpop.permute.xlu0 %552
        %554 = vrot.lane.b32.xlu0 %v465, 4
        %v555 = vpop.permute.xlu0 %554
        %556 = vrot.lane.b32.xlu0 %v466, 4
        %v557 = vpop.permute.xlu0 %556
        %558 = vrot.lane.b32.xlu0 %v467, 4
        %v559 = vpop.permute.xlu0 %558
        %560 = vrot.lane.b32.xlu0 %v468, 4
        %v561 = vpop.permute.xlu0 %560
        %562 = vrot.lane.b32.xlu0 %v469, 4
        %v563 = vpop.permute.xlu0 %562
        %564 = vrot.lane.b32.xlu0 %v470, 4
        %v565 = vpop.permute.xlu0 %564
        %566 = vrot.lane.b32.xlu0 %v471, 4
        %v567 = vpop.permute.xlu0 %566
        %vm600 = vcmask 64544
        %601 = vst.msk [vmem:[#allocation3] sm:$0xff] %vm600, %v505
        %602 = vst.msk [vmem:[#allocation3 + $0x8] sm:$0xff] %vm600, %v507
        %603 = vst.msk [vmem:[#allocation3 + $0x10] sm:$0xff] %vm600, %v509
        %604 = vst.msk [vmem:[#allocation3 + $0x18] sm:$0xff] %vm600, %v511
        %605 = vst.msk [vmem:[#allocation3 + $0x20] sm:$0xff] %vm600, %v513
        %606 = vst.msk [vmem:[#allocation3 + $0x28] sm:$0xff] %vm600, %v515
        %607 = vst.msk [vmem:[#allocation3 + $0x30] sm:$0xff] %vm600, %v517
        %608 = vst.msk [vmem:[#allocation3 + $0x38] sm:$0xff] %vm600, %v519
        %609 = vst.msk [vmem:[#allocation3 + $0x40] sm:$0xff] %vm600, %v521
        %610 = vst.msk [vmem:[#allocation3 + $0x48] sm:$0xff] %vm600, %v523
        %611 = vst.msk [vmem:[#allocation3 + $0x50] sm:$0xff] %vm600, %v525
        %612 = vst.msk [vmem:[#allocation3 + $0x58] sm:$0xff] %vm600, %v527
        %613 = vst.msk [vmem:[#allocation3 + $0x60] sm:$0xff] %vm600, %v529
        %614 = vst.msk [vmem:[#allocation3 + $0x68] sm:$0xff] %vm600, %v531
        %615 = vst.msk [vmem:[#allocation3 + $0x70] sm:$0xff] %vm600, %v533
        %616 = vst.msk [vmem:[#allocation3 + $0x78] sm:$0xff] %vm600, %v535
        %617 = vst.msk [vmem:[#allocation3 + $0x80] sm:$0xff] %vm600, %v537
        %618 = vst.msk [vmem:[#allocation3 + $0x88] sm:$0xff] %vm600, %v539
        %619 = vst.msk [vmem:[#allocation3 + $0x90] sm:$0xff] %vm600, %v541
        %620 = vst.msk [vmem:[#allocation3 + $0x98] sm:$0xff] %vm600, %v543
        %621 = vst.msk [vmem:[#allocation3 + $0xa0] sm:$0xff] %vm600, %v545
        %622 = vst.msk [vmem:[#allocation3 + $0xa8] sm:$0xff] %vm600, %v547
        %623 = vst.msk [vmem:[#allocation3 + $0xb0] sm:$0xff] %vm600, %v549
        %624 = vst.msk [vmem:[#allocation3 + $0xb8] sm:$0xff] %vm600, %v551
        %625 = vst.msk [vmem:[#allocation3 + $0xc0] sm:$0xff] %vm600, %v553
        %626 = vst.msk [vmem:[#allocation3 + $0xc8] sm:$0xff] %vm600, %v555
        %627 = vst.msk [vmem:[#allocation3 + $0xd0] sm:$0xff] %vm600, %v557
        %628 = vst.msk [vmem:[#allocation3 + $0xd8] sm:$0xff] %vm600, %v559
        %629 = vst.msk [vmem:[#allocation3 + $0xe0] sm:$0xff] %vm600, %v561
        %630 = vst.msk [vmem:[#allocation3 + $0xe8] sm:$0xff] %vm600, %v563
        %631 = vst.msk [vmem:[#allocation3 + $0xf0] sm:$0xff] %vm600, %v565
        %632 = vst.msk [vmem:[#allocation3 + $0xf8] sm:$0xff] %vm600, %v567
        %v633 = vld [vmem:[#allocation2 + $0x2] sm:$0xff]
        %v634 = vld [vmem:[#allocation2 + $0xa] sm:$0xff]
        %v635 = vld [vmem:[#allocation2 + $0x1a] sm:$0xff]
        %v636 = vld [vmem:[#allocation2 + $0x22] sm:$0xff]
        %v637 = vld [vmem:[#allocation2 + $0x32] sm:$0xff]
        %v638 = vld [vmem:[#allocation2 + $0x3a] sm:$0xff]
        %v639 = vld [vmem:[#allocation2 + $0x4a] sm:$0xff]
        %v640 = vld [vmem:[#allocation2 + $0x52] sm:$0xff]
        %v641 = vld [vmem:[#allocation2 + $0x62] sm:$0xff]
        %v642 = vld [vmem:[#allocation2 + $0x6a] sm:$0xff]
        %v643 = vld [vmem:[#allocation2 + $0x7a] sm:$0xff]
        %v644 = vld [vmem:[#allocation2 + $0x82] sm:$0xff]
        %v645 = vld [vmem:[#allocation2 + $0x92] sm:$0xff]
        %v646 = vld [vmem:[#allocation2 + $0x9a] sm:$0xff]
        %v647 = vld [vmem:[#allocation2 + $0xaa] sm:$0xff]
        %v648 = vld [vmem:[#allocation2 + $0xb2] sm:$0xff]
        %v649 = vld [vmem:[#allocation2 + $0xc2] sm:$0xff]
        %v650 = vld [vmem:[#allocation2 + $0xca] sm:$0xff]
        %v651 = vld [vmem:[#allocation2 + $0xda] sm:$0xff]
        %v652 = vld [vmem:[#allocation2 + $0xe2] sm:$0xff]
        %v653 = vld [vmem:[#allocation2 + $0xf2] sm:$0xff]
        %v654 = vld [vmem:[#allocation2 + $0xfa] sm:$0xff]
        %v655 = vld [vmem:[#allocation2 + $0x10a] sm:$0xff]
        %v656 = vld [vmem:[#allocation2 + $0x112] sm:$0xff]
        %v657 = vld [vmem:[#allocation2 + $0x122] sm:$0xff]
        %v658 = vld [vmem:[#allocation2 + $0x12a] sm:$0xff]
        %v659 = vld [vmem:[#allocation2 + $0x13a] sm:$0xff]
        %v660 = vld [vmem:[#allocation2 + $0x142] sm:$0xff]
        %v661 = vld [vmem:[#allocation2 + $0x152] sm:$0xff]
        %v662 = vld [vmem:[#allocation2 + $0x15a] sm:$0xff]
        %v663 = vld [vmem:[#allocation2 + $0x16a] sm:$0xff]
        %v664 = vld [vmem:[#allocation2 + $0x172] sm:$0xff]
        %697 = vrot.lane.b32.xlu0 %v633, 8
        %v698 = vpop.permute.xlu0 %697
        %699 = vrot.lane.b32.xlu0 %v634, 8
        %v700 = vpop.permute.xlu0 %699
        %701 = vrot.lane.b32.xlu0 %v635, 8
        %v702 = vpop.permute.xlu0 %701
        %703 = vrot.lane.b32.xlu0 %v636, 8
        %v704 = vpop.permute.xlu0 %703
        %705 = vrot.lane.b32.xlu0 %v637, 8
        %v706 = vpop.permute.xlu0 %705
        %707 = vrot.lane.b32.xlu0 %v638, 8
        %v708 = vpop.permute.xlu0 %707
        %709 = vrot.lane.b32.xlu0 %v639, 8
        %v710 = vpop.permute.xlu0 %709
        %711 = vrot.lane.b32.xlu0 %v640, 8
        %v712 = vpop.permute.xlu0 %711
        %713 = vrot.lane.b32.xlu0 %v641, 8
        %v714 = vpop.permute.xlu0 %713
        %715 = vrot.lane.b32.xlu0 %v642, 8
        %v716 = vpop.permute.xlu0 %715
        %717 = vrot.lane.b32.xlu0 %v643, 8
        %v718 = vpop.permute.xlu0 %717
        %719 = vrot.lane.b32.xlu0 %v644, 8
        %v720 = vpop.permute.xlu0 %719
        %721 = vrot.lane.b32.xlu0 %v645, 8
        %v722 = vpop.permute.xlu0 %721
        %723 = vrot.lane.b32.xlu0 %v646, 8
        %v724 = vpop.permute.xlu0 %723
        %725 = vrot.lane.b32.xlu0 %v647, 8
        %v726 = vpop.permute.xlu0 %725
        %727 = vrot.lane.b32.xlu0 %v648, 8
        %v728 = vpop.permute.xlu0 %727
        %729 = vrot.lane.b32.xlu0 %v649, 8
        %v730 = vpop.permute.xlu0 %729
        %731 = vrot.lane.b32.xlu0 %v650, 8
        %v732 = vpop.permute.xlu0 %731
        %733 = vrot.lane.b32.xlu0 %v651, 8
        %v734 = vpop.permute.xlu0 %733
        %735 = vrot.lane.b32.xlu0 %v652, 8
        %v736 = vpop.permute.xlu0 %735
        %737 = vrot.lane.b32.xlu0 %v653, 8
        %v738 = vpop.permute.xlu0 %737
        %739 = vrot.lane.b32.xlu0 %v654, 8
        %v740 = vpop.permute.xlu0 %739
        %741 = vrot.lane.b32.xlu0 %v655, 8
        %v742 = vpop.permute.xlu0 %741
        %743 = vrot.lane.b32.xlu0 %v656, 8
        %v744 = vpop.permute.xlu0 %743
        %745 = vrot.lane.b32.xlu0 %v657, 8
        %v746 = vpop.permute.xlu0 %745
        %747 = vrot.lane.b32.xlu0 %v658, 8
        %v748 = vpop.permute.xlu0 %747
        %749 = vrot.lane.b32.xlu0 %v659, 8
        %v750 = vpop.permute.xlu0 %749
        %751 = vrot.lane.b32.xlu0 %v660, 8
        %v752 = vpop.permute.xlu0 %751
        %753 = vrot.lane.b32.xlu0 %v661, 8
        %v754 = vpop.permute.xlu0 %753
        %755 = vrot.lane.b32.xlu0 %v662, 8
        %v756 = vpop.permute.xlu0 %755
        %757 = vrot.lane.b32.xlu0 %v663, 8
        %v758 = vpop.permute.xlu0 %757
        %759 = vrot.lane.b32.xlu0 %v664, 8
        %v760 = vpop.permute.xlu0 %759
        %vm793 = vcmask 97344
        %794 = vst.msk [vmem:[#allocation3] sm:$0xff] %vm793, %v698
        %795 = vst.msk [vmem:[#allocation3 + $0x8] sm:$0xff] %vm793, %v700
        %796 = vst.msk [vmem:[#allocation3 + $0x10] sm:$0xff] %vm793, %v702
        %797 = vst.msk [vmem:[#allocation3 + $0x18] sm:$0xff] %vm793, %v704
        %798 = vst.msk [vmem:[#allocation3 + $0x20] sm:$0xff] %vm793, %v706
        %799 = vst.msk [vmem:[#allocation3 + $0x28] sm:$0xff] %vm793, %v708
        %800 = vst.msk [vmem:[#allocation3 + $0x30] sm:$0xff] %vm793, %v710
        %801 = vst.msk [vmem:[#allocation3 + $0x38] sm:$0xff] %vm793, %v712
        %802 = vst.msk [vmem:[#allocation3 + $0x40] sm:$0xff] %vm793, %v714
        %803 = vst.msk [vmem:[#allocation3 + $0x48] sm:$0xff] %vm793, %v716
        %804 = vst.msk [vmem:[#allocation3 + $0x50] sm:$0xff] %vm793, %v718
        %805 = vst.msk [vmem:[#allocation3 + $0x58] sm:$0xff] %vm793, %v720
        %806 = vst.msk [vmem:[#allocation3 + $0x60] sm:$0xff] %vm793, %v722
        %807 = vst.msk [vmem:[#allocation3 + $0x68] sm:$0xff] %vm793, %v724
        %808 = vst.msk [vmem:[#allocation3 + $0x70] sm:$0xff] %vm793, %v726
        %809 = vst.msk [vmem:[#allocation3 + $0x78] sm:$0xff] %vm793, %v728
        %810 = vst.msk [vmem:[#allocation3 + $0x80] sm:$0xff] %vm793, %v730
        %811 = vst.msk [vmem:[#allocation3 + $0x88] sm:$0xff] %vm793, %v732
        %812 = vst.msk [vmem:[#allocation3 + $0x90] sm:$0xff] %vm793, %v734
        %813 = vst.msk [vmem:[#allocation3 + $0x98] sm:$0xff] %vm793, %v736
        %814 = vst.msk [vmem:[#allocation3 + $0xa0] sm:$0xff] %vm793, %v738
        %815 = vst.msk [vmem:[#allocation3 + $0xa8] sm:$0xff] %vm793, %v740
        %816 = vst.msk [vmem:[#allocation3 + $0xb0] sm:$0xff] %vm793, %v742
        %817 = vst.msk [vmem:[#allocation3 + $0xb8] sm:$0xff] %vm793, %v744
        %818 = vst.msk [vmem:[#allocation3 + $0xc0] sm:$0xff] %vm793, %v746
        %819 = vst.msk [vmem:[#allocation3 + $0xc8] sm:$0xff] %vm793, %v748
        %820 = vst.msk [vmem:[#allocation3 + $0xd0] sm:$0xff] %vm793, %v750
        %821 = vst.msk [vmem:[#allocation3 + $0xd8] sm:$0xff] %vm793, %v752
        %822 = vst.msk [vmem:[#allocation3 + $0xe0] sm:$0xff] %vm793, %v754
        %823 = vst.msk [vmem:[#allocation3 + $0xe8] sm:$0xff] %vm793, %v756
        %824 = vst.msk [vmem:[#allocation3 + $0xf0] sm:$0xff] %vm793, %v758
        %825 = vst.msk [vmem:[#allocation3 + $0xf8] sm:$0xff] %vm793, %v760
        %v826 = vld [vmem:[%s343] sm:$0xff]
        %v827 = vld [vmem:[%s343 + $0x8] sm:$0xff]
        %v828 = vld [vmem:[%s343 + $0x18] sm:$0xff]
        %v829 = vld [vmem:[%s343 + $0x20] sm:$0xff]
        %v830 = vld [vmem:[%s343 + $0x30] sm:$0xff]
        %v831 = vld [vmem:[%s343 + $0x38] sm:$0xff]
        %v832 = vld [vmem:[%s343 + $0x48] sm:$0xff]
        %v833 = vld [vmem:[%s343 + $0x50] sm:$0xff]
        %v834 = vld [vmem:[%s343 + $0x60] sm:$0xff]
        %v835 = vld [vmem:[%s343 + $0x68] sm:$0xff]
        %v836 = vld [vmem:[%s343 + $0x78] sm:$0xff]
        %v837 = vld [vmem:[%s343 + $0x80] sm:$0xff]
        %v838 = vld [vmem:[%s343 + $0x90] sm:$0xff]
        %v839 = vld [vmem:[%s343 + $0x98] sm:$0xff]
        %v840 = vld [vmem:[%s343 + $0xa8] sm:$0xff]
        %v841 = vld [vmem:[%s343 + $0xb0] sm:$0xff]
        %v842 = vld [vmem:[%s343 + $0xc0] sm:$0xff]
        %v843 = vld [vmem:[%s343 + $0xc8] sm:$0xff]
        %v844 = vld [vmem:[%s343 + $0xd8] sm:$0xff]
        %v845 = vld [vmem:[%s343 + $0xe0] sm:$0xff]
        %v846 = vld [vmem:[%s343 + $0xf0] sm:$0xff]
        %v847 = vld [vmem:[%s343 + $0xf8] sm:$0xff]
        %v848 = vld [vmem:[%s343 + $0x108] sm:$0xff]
        %v849 = vld [vmem:[%s343 + $0x110] sm:$0xff]
        %v850 = vld [vmem:[%s343 + $0x120] sm:$0xff]
        %v851 = vld [vmem:[%s343 + $0x128] sm:$0xff]
        %v852 = vld [vmem:[%s343 + $0x138] sm:$0xff]
        %v853 = vld [vmem:[%s343 + $0x140] sm:$0xff]
        %v854 = vld [vmem:[%s343 + $0x150] sm:$0xff]
        %v855 = vld [vmem:[%s343 + $0x158] sm:$0xff]
        %v856 = vld [vmem:[%s343 + $0x168] sm:$0xff]
        %v857 = vld [vmem:[%s343 + $0x170] sm:$0xff]
        %890 = vrot.lane.b32.xlu0 %v826, 12
        %v891 = vpop.permute.xlu0 %890
        %892 = vrot.lane.b32.xlu0 %v827, 12
        %v893 = vpop.permute.xlu0 %892
        %894 = vrot.lane.b32.xlu0 %v828, 12
        %v895 = vpop.permute.xlu0 %894
        %896 = vrot.lane.b32.xlu0 %v829, 12
        %v897 = vpop.permute.xlu0 %896
        %898 = vrot.lane.b32.xlu0 %v830, 12
        %v899 = vpop.permute.xlu0 %898
        %900 = vrot.lane.b32.xlu0 %v831, 12
        %v901 = vpop.permute.xlu0 %900
        %902 = vrot.lane.b32.xlu0 %v832, 12
        %v903 = vpop.permute.xlu0 %902
        %904 = vrot.lane.b32.xlu0 %v833, 12
        %v905 = vpop.permute.xlu0 %904
        %906 = vrot.lane.b32.xlu0 %v834, 12
        %v907 = vpop.permute.xlu0 %906
        %908 = vrot.lane.b32.xlu0 %v835, 12
        %v909 = vpop.permute.xlu0 %908
        %910 = vrot.lane.b32.xlu0 %v836, 12
        %v911 = vpop.permute.xlu0 %910
        %912 = vrot.lane.b32.xlu0 %v837, 12
        %v913 = vpop.permute.xlu0 %912
        %914 = vrot.lane.b32.xlu0 %v838, 12
        %v915 = vpop.permute.xlu0 %914
        %916 = vrot.lane.b32.xlu0 %v839, 12
        %v917 = vpop.permute.xlu0 %916
        %918 = vrot.lane.b32.xlu0 %v840, 12
        %v919 = vpop.permute.xlu0 %918
        %920 = vrot.lane.b32.xlu0 %v841, 12
        %v921 = vpop.permute.xlu0 %920
        %922 = vrot.lane.b32.xlu0 %v842, 12
        %v923 = vpop.permute.xlu0 %922
        %924 = vrot.lane.b32.xlu0 %v843, 12
        %v925 = vpop.permute.xlu0 %924
        %926 = vrot.lane.b32.xlu0 %v844, 12
        %v927 = vpop.permute.xlu0 %926
        %928 = vrot.lane.b32.xlu0 %v845, 12
        %v929 = vpop.permute.xlu0 %928
        %930 = vrot.lane.b32.xlu0 %v846, 12
        %v931 = vpop.permute.xlu0 %930
        %932 = vrot.lane.b32.xlu0 %v847, 12
        %v933 = vpop.permute.xlu0 %932
        %934 = vrot.lane.b32.xlu0 %v848, 12
        %v935 = vpop.permute.xlu0 %934
        %936 = vrot.lane.b32.xlu0 %v849, 12
        %v937 = vpop.permute.xlu0 %936
        %938 = vrot.lane.b32.xlu0 %v850, 12
        %v939 = vpop.permute.xlu0 %938
        %940 = vrot.lane.b32.xlu0 %v851, 12
        %v941 = vpop.permute.xlu0 %940
        %942 = vrot.lane.b32.xlu0 %v852, 12
        %v943 = vpop.permute.xlu0 %942
        %944 = vrot.lane.b32.xlu0 %v853, 12
        %v945 = vpop.permute.xlu0 %944
        %946 = vrot.lane.b32.xlu0 %v854, 12
        %v947 = vpop.permute.xlu0 %946
        %948 = vrot.lane.b32.xlu0 %v855, 12
        %v949 = vpop.permute.xlu0 %948
        %950 = vrot.lane.b32.xlu0 %v856, 12
        %v951 = vpop.permute.xlu0 %950
        %952 = vrot.lane.b32.xlu0 %v857, 12
        %v953 = vpop.permute.xlu0 %952
        %vm986 = vcmask 130144
        %987 = vst.msk [vmem:[#allocation3] sm:$0xff] %vm986, %v891
        %988 = vst.msk [vmem:[#allocation3 + $0x8] sm:$0xff] %vm986, %v893
        %989 = vst.msk [vmem:[#allocation3 + $0x10] sm:$0xff] %vm986, %v895
        %990 = vst.msk [vmem:[#allocation3 + $0x18] sm:$0xff] %vm986, %v897
        %991 = vst.msk [vmem:[#allocation3 + $0x20] sm:$0xff] %vm986, %v899
        %992 = vst.msk [vmem:[#allocation3 + $0x28] sm:$0xff] %vm986, %v901
        %993 = vst.msk [vmem:[#allocation3 + $0x30] sm:$0xff] %vm986, %v903
        %994 = vst.msk [vmem:[#allocation3 + $0x38] sm:$0xff] %vm986, %v905
        %995 = vst.msk [vmem:[#allocation3 + $0x40] sm:$0xff] %vm986, %v907
        %996 = vst.msk [vmem:[#allocation3 + $0x48] sm:$0xff] %vm986, %v909
        %997 = vst.msk [vmem:[#allocation3 + $0x50] sm:$0xff] %vm986, %v911
        %998 = vst.msk [vmem:[#allocation3 + $0x58] sm:$0xff] %vm986, %v913
        %999 = vst.msk [vmem:[#allocation3 + $0x60] sm:$0xff] %vm986, %v915
        %1000 = vst.msk [vmem:[#allocation3 + $0x68] sm:$0xff] %vm986, %v917
        %1001 = vst.msk [vmem:[#allocation3 + $0x70] sm:$0xff] %vm986, %v919
        %1002 = vst.msk [vmem:[#allocation3 + $0x78] sm:$0xff] %vm986, %v921
        %1003 = vst.msk [vmem:[#allocation3 + $0x80] sm:$0xff] %vm986, %v923
        %1004 = vst.msk [vmem:[#allocation3 + $0x88] sm:$0xff] %vm986, %v925
        %1005 = vst.msk [vmem:[#allocation3 + $0x90] sm:$0xff] %vm986, %v927
        %1006 = vst.msk [vmem:[#allocation3 + $0x98] sm:$0xff] %vm986, %v929
        %1007 = vst.msk [vmem:[#allocation3 + $0xa0] sm:$0xff] %vm986, %v931
        %1008 = vst.msk [vmem:[#allocation3 + $0xa8] sm:$0xff] %vm986, %v933
        %1009 = vst.msk [vmem:[#allocation3 + $0xb0] sm:$0xff] %vm986, %v935
        %1010 = vst.msk [vmem:[#allocation3 + $0xb8] sm:$0xff] %vm986, %v937
        %1011 = vst.msk [vmem:[#allocation3 + $0xc0] sm:$0xff] %vm986, %v939
        %1012 = vst.msk [vmem:[#allocation3 + $0xc8] sm:$0xff] %vm986, %v941
        %1013 = vst.msk [vmem:[#allocation3 + $0xd0] sm:$0xff] %vm986, %v943
        %1014 = vst.msk [vmem:[#allocation3 + $0xd8] sm:$0xff] %vm986, %v945
        %1015 = vst.msk [vmem:[#allocation3 + $0xe0] sm:$0xff] %vm986, %v947
        %1016 = vst.msk [vmem:[#allocation3 + $0xe8] sm:$0xff] %vm986, %v949
        %1017 = vst.msk [vmem:[#allocation3 + $0xf0] sm:$0xff] %vm986, %v951
        %1018 = vst.msk [vmem:[#allocation3 + $0xf8] sm:$0xff] %vm986, %v953
        %v1019 = vld [vmem:[%s343 + $0x1] sm:$0xff]
        %v1020 = vld [vmem:[%s343 + $0x9] sm:$0xff]
        %v1021 = vld [vmem:[%s343 + $0x19] sm:$0xff]
        %v1022 = vld [vmem:[%s343 + $0x21] sm:$0xff]
        %v1023 = vld [vmem:[%s343 + $0x31] sm:$0xff]
        %v1024 = vld [vmem:[%s343 + $0x39] sm:$0xff]
        %v1025 = vld [vmem:[%s343 + $0x49] sm:$0xff]
        %v1026 = vld [vmem:[%s343 + $0x51] sm:$0xff]
        %v1027 = vld [vmem:[%s343 + $0x61] sm:$0xff]
        %v1028 = vld [vmem:[%s343 + $0x69] sm:$0xff]
        %v1029 = vld [vmem:[%s343 + $0x79] sm:$0xff]
        %v1030 = vld [vmem:[%s343 + $0x81] sm:$0xff]
        %v1031 = vld [vmem:[%s343 + $0x91] sm:$0xff]
        %v1032 = vld [vmem:[%s343 + $0x99] sm:$0xff]
        %v1033 = vld [vmem:[%s343 + $0xa9] sm:$0xff]
        %v1034 = vld [vmem:[%s343 + $0xb1] sm:$0xff]
        %v1035 = vld [vmem:[%s343 + $0xc1] sm:$0xff]
        %v1036 = vld [vmem:[%s343 + $0xc9] sm:$0xff]
        %v1037 = vld [vmem:[%s343 + $0xd9] sm:$0xff]
        %v1038 = vld [vmem:[%s343 + $0xe1] sm:$0xff]
        %v1039 = vld [vmem:[%s343 + $0xf1] sm:$0xff]
        %v1040 = vld [vmem:[%s343 + $0xf9] sm:$0xff]
        %v1041 = vld [vmem:[%s343 + $0x109] sm:$0xff]
        %v1042 = vld [vmem:[%s343 + $0x111] sm:$0xff]
        %v1043 = vld [vmem:[%s343 + $0x121] sm:$0xff]
        %v1044 = vld [vmem:[%s343 + $0x129] sm:$0xff]
        %v1045 = vld [vmem:[%s343 + $0x139] sm:$0xff]
        %v1046 = vld [vmem:[%s343 + $0x141] sm:$0xff]
        %v1047 = vld [vmem:[%s343 + $0x151] sm:$0xff]
        %v1048 = vld [vmem:[%s343 + $0x159] sm:$0xff]
        %v1049 = vld [vmem:[%s343 + $0x169] sm:$0xff]
        %v1050 = vld [vmem:[%s343 + $0x171] sm:$0xff]
        %1083 = vrot.lane.b32.xlu0 %v1019, 16
        %v1084 = vpop.permute.xlu0 %1083
        %1085 = vrot.lane.b32.xlu0 %v1020, 16
        %v1086 = vpop.permute.xlu0 %1085
        %1087 = vrot.lane.b32.xlu0 %v1021, 16
        %v1088 = vpop.permute.xlu0 %1087
        %1089 = vrot.lane.b32.xlu0 %v1022, 16
        %v1090 = vpop.permute.xlu0 %1089
        %1091 = vrot.lane.b32.xlu0 %v1023, 16
        %v1092 = vpop.permute.xlu0 %1091
        %1093 = vrot.lane.b32.xlu0 %v1024, 16
        %v1094 = vpop.permute.xlu0 %1093
        %1095 = vrot.lane.b32.xlu0 %v1025, 16
        %v1096 = vpop.permute.xlu0 %1095
        %1097 = vrot.lane.b32.xlu0 %v1026, 16
        %v1098 = vpop.permute.xlu0 %1097
        %1099 = vrot.lane.b32.xlu0 %v1027, 16
        %v1100 = vpop.permute.xlu0 %1099
        %1101 = vrot.lane.b32.xlu0 %v1028, 16
        %v1102 = vpop.permute.xlu0 %1101
        %1103 = vrot.lane.b32.xlu0 %v1029, 16
        %v1104 = vpop.permute.xlu0 %1103
        %1105 = vrot.lane.b32.xlu0 %v1030, 16
        %v1106 = vpop.permute.xlu0 %1105
        %1107 = vrot.lane.b32.xlu0 %v1031, 16
        %v1108 = vpop.permute.xlu0 %1107
        %1109 = vrot.lane.b32.xlu0 %v1032, 16
        %v1110 = vpop.permute.xlu0 %1109
        %1111 = vrot.lane.b32.xlu0 %v1033, 16
        %v1112 = vpop.permute.xlu0 %1111
        %1113 = vrot.lane.b32.xlu0 %v1034, 16
        %v1114 = vpop.permute.xlu0 %1113
        %1115 = vrot.lane.b32.xlu0 %v1035, 16
        %v1116 = vpop.permute.xlu0 %1115
        %1117 = vrot.lane.b32.xlu0 %v1036, 16
        %v1118 = vpop.permute.xlu0 %1117
        %1119 = vrot.lane.b32.xlu0 %v1037, 16
        %v1120 = vpop.permute.xlu0 %1119
        %1121 = vrot.lane.b32.xlu0 %v1038, 16
        %v1122 = vpop.permute.xlu0 %1121
        %1123 = vrot.lane.b32.xlu0 %v1039, 16
        %v1124 = vpop.permute.xlu0 %1123
        %1125 = vrot.lane.b32.xlu0 %v1040, 16
        %v1126 = vpop.permute.xlu0 %1125
        %1127 = vrot.lane.b32.xlu0 %v1041, 16
        %v1128 = vpop.permute.xlu0 %1127
        %1129 = vrot.lane.b32.xlu0 %v1042, 16
        %v1130 = vpop.permute.xlu0 %1129
        %1131 = vrot.lane.b32.xlu0 %v1043, 16
        %v1132 = vpop.permute.xlu0 %1131
        %1133 = vrot.lane.b32.xlu0 %v1044, 16
        %v1134 = vpop.permute.xlu0 %1133
        %1135 = vrot.lane.b32.xlu0 %v1045, 16
        %v1136 = vpop.permute.xlu0 %1135
        %1137 = vrot.lane.b32.xlu0 %v1046, 16
        %v1138 = vpop.permute.xlu0 %1137
        %1139 = vrot.lane.b32.xlu0 %v1047, 16
        %v1140 = vpop.permute.xlu0 %1139
        %1141 = vrot.lane.b32.xlu0 %v1048, 16
        %v1142 = vpop.permute.xlu0 %1141
        %1143 = vrot.lane.b32.xlu0 %v1049, 16
        %v1144 = vpop.permute.xlu0 %1143
        %1145 = vrot.lane.b32.xlu0 %v1050, 16
        %v1146 = vpop.permute.xlu0 %1145
        %vm1179 = vcmask 162944
        %1180 = vst.msk [vmem:[#allocation3] sm:$0xff] %vm1179, %v1084
        %1181 = vst.msk [vmem:[#allocation3 + $0x8] sm:$0xff] %vm1179, %v1086
        %1182 = vst.msk [vmem:[#allocation3 + $0x10] sm:$0xff] %vm1179, %v1088
        %1183 = vst.msk [vmem:[#allocation3 + $0x18] sm:$0xff] %vm1179, %v1090
        %1184 = vst.msk [vmem:[#allocation3 + $0x20] sm:$0xff] %vm1179, %v1092
        %1185 = vst.msk [vmem:[#allocation3 + $0x28] sm:$0xff] %vm1179, %v1094
        %1186 = vst.msk [vmem:[#allocation3 + $0x30] sm:$0xff] %vm1179, %v1096
        %1187 = vst.msk [vmem:[#allocation3 + $0x38] sm:$0xff] %vm1179, %v1098
        %1188 = vst.msk [vmem:[#allocation3 + $0x40] sm:$0xff] %vm1179, %v1100
        %1189 = vst.msk [vmem:[#allocation3 + $0x48] sm:$0xff] %vm1179, %v1102
        %1190 = vst.msk [vmem:[#allocation3 + $0x50] sm:$0xff] %vm1179, %v1104
        %1191 = vst.msk [vmem:[#allocation3 + $0x58] sm:$0xff] %vm1179, %v1106
        %1192 = vst.msk [vmem:[#allocation3 + $0x60] sm:$0xff] %vm1179, %v1108
        %1193 = vst.msk [vmem:[#allocation3 + $0x68] sm:$0xff] %vm1179, %v1110
        %1194 = vst.msk [vmem:[#allocation3 + $0x70] sm:$0xff] %vm1179, %v1112
        %1195 = vst.msk [vmem:[#allocation3 + $0x78] sm:$0xff] %vm1179, %v1114
        %1196 = vst.msk [vmem:[#allocation3 + $0x80] sm:$0xff] %vm1179, %v1116
        %1197 = vst.msk [vmem:[#allocation3 + $0x88] sm:$0xff] %vm1179, %v1118
        %1198 = vst.msk [vmem:[#allocation3 + $0x90] sm:$0xff] %vm1179, %v1120
        %1199 = vst.msk [vmem:[#allocation3 + $0x98] sm:$0xff] %vm1179, %v1122
        %1200 = vst.msk [vmem:[#allocation3 + $0xa0] sm:$0xff] %vm1179, %v1124
        %1201 = vst.msk [vmem:[#allocation3 + $0xa8] sm:$0xff] %vm1179, %v1126
        %1202 = vst.msk [vmem:[#allocation3 + $0xb0] sm:$0xff] %vm1179, %v1128
        %1203 = vst.msk [vmem:[#allocation3 + $0xb8] sm:$0xff] %vm1179, %v1130
        %1204 = vst.msk [vmem:[#allocation3 + $0xc0] sm:$0xff] %vm1179, %v1132
        %1205 = vst.msk [vmem:[#allocation3 + $0xc8] sm:$0xff] %vm1179, %v1134
        %1206 = vst.msk [vmem:[#allocation3 + $0xd0] sm:$0xff] %vm1179, %v1136
        %1207 = vst.msk [vmem:[#allocation3 + $0xd8] sm:$0xff] %vm1179, %v1138
        %1208 = vst.msk [vmem:[#allocation3 + $0xe0] sm:$0xff] %vm1179, %v1140
        %1209 = vst.msk [vmem:[#allocation3 + $0xe8] sm:$0xff] %vm1179, %v1142
        %1210 = vst.msk [vmem:[#allocation3 + $0xf0] sm:$0xff] %vm1179, %v1144
        %1211 = vst.msk [vmem:[#allocation3 + $0xf8] sm:$0xff] %vm1179, %v1146
        %v1212 = vld [vmem:[%s343 + $0x2] sm:$0xff]
        %v1213 = vld [vmem:[%s343 + $0xa] sm:$0xff]
        %v1214 = vld [vmem:[%s343 + $0x1a] sm:$0xff]
        %v1215 = vld [vmem:[%s343 + $0x22] sm:$0xff]
        %v1216 = vld [vmem:[%s343 + $0x32] sm:$0xff]
        %v1217 = vld [vmem:[%s343 + $0x3a] sm:$0xff]
        %v1218 = vld [vmem:[%s343 + $0x4a] sm:$0xff]
        %v1219 = vld [vmem:[%s343 + $0x52] sm:$0xff]
        %v1220 = vld [vmem:[%s343 + $0x62] sm:$0xff]
        %v1221 = vld [vmem:[%s343 + $0x6a] sm:$0xff]
        %v1222 = vld [vmem:[%s343 + $0x7a] sm:$0xff]
        %v1223 = vld [vmem:[%s343 + $0x82] sm:$0xff]
        %v1224 = vld [vmem:[%s343 + $0x92] sm:$0xff]
        %v1225 = vld [vmem:[%s343 + $0x9a] sm:$0xff]
        %v1226 = vld [vmem:[%s343 + $0xaa] sm:$0xff]
        %v1227 = vld [vmem:[%s343 + $0xb2] sm:$0xff]
        %v1228 = vld [vmem:[%s343 + $0xc2] sm:$0xff]
        %v1229 = vld [vmem:[%s343 + $0xca] sm:$0xff]
        %v1230 = vld [vmem:[%s343 + $0xda] sm:$0xff]
        %v1231 = vld [vmem:[%s343 + $0xe2] sm:$0xff]
        %v1232 = vld [vmem:[%s343 + $0xf2] sm:$0xff]
        %v1233 = vld [vmem:[%s343 + $0xfa] sm:$0xff]
        %v1234 = vld [vmem:[%s343 + $0x10a] sm:$0xff]
        %v1235 = vld [vmem:[%s343 + $0x112] sm:$0xff]
        %v1236 = vld [vmem:[%s343 + $0x122] sm:$0xff]
        %v1237 = vld [vmem:[%s343 + $0x12a] sm:$0xff]
        %v1238 = vld [vmem:[%s343 + $0x13a] sm:$0xff]
        %v1239 = vld [vmem:[%s343 + $0x142] sm:$0xff]
        %v1240 = vld [vmem:[%s343 + $0x152] sm:$0xff]
        %v1241 = vld [vmem:[%s343 + $0x15a] sm:$0xff]
        %v1242 = vld [vmem:[%s343 + $0x16a] sm:$0xff]
        %v1243 = vld [vmem:[%s343 + $0x172] sm:$0xff]
        %1276 = vrot.lane.b32.xlu0 %v1212, 20
        %v1277 = vpop.permute.xlu0 %1276
        %1278 = vrot.lane.b32.xlu0 %v1213, 20
        %v1279 = vpop.permute.xlu0 %1278
        %1280 = vrot.lane.b32.xlu0 %v1214, 20
        %v1281 = vpop.permute.xlu0 %1280
        %1282 = vrot.lane.b32.xlu0 %v1215, 20
        %v1283 = vpop.permute.xlu0 %1282
        %1284 = vrot.lane.b32.xlu0 %v1216, 20
        %v1285 = vpop.permute.xlu0 %1284
        %1286 = vrot.lane.b32.xlu0 %v1217, 20
        %v1287 = vpop.permute.xlu0 %1286
        %1288 = vrot.lane.b32.xlu0 %v1218, 20
        %v1289 = vpop.permute.xlu0 %1288
        %1290 = vrot.lane.b32.xlu0 %v1219, 20
        %v1291 = vpop.permute.xlu0 %1290
        %1292 = vrot.lane.b32.xlu0 %v1220, 20
        %v1293 = vpop.permute.xlu0 %1292
        %1294 = vrot.lane.b32.xlu0 %v1221, 20
        %v1295 = vpop.permute.xlu0 %1294
        %1296 = vrot.lane.b32.xlu0 %v1222, 20
        %v1297 = vpop.permute.xlu0 %1296
        %1298 = vrot.lane.b32.xlu0 %v1223, 20
        %v1299 = vpop.permute.xlu0 %1298
        %1300 = vrot.lane.b32.xlu0 %v1224, 20
        %v1301 = vpop.permute.xlu0 %1300
        %1302 = vrot.lane.b32.xlu0 %v1225, 20
        %v1303 = vpop.permute.xlu0 %1302
        %1304 = vrot.lane.b32.xlu0 %v1226, 20
        %v1305 = vpop.permute.xlu0 %1304
        %1306 = vrot.lane.b32.xlu0 %v1227, 20
        %v1307 = vpop.permute.xlu0 %1306
        %1308 = vrot.lane.b32.xlu0 %v1228, 20
        %v1309 = vpop.permute.xlu0 %1308
        %1310 = vrot.lane.b32.xlu0 %v1229, 20
        %v1311 = vpop.permute.xlu0 %1310
        %1312 = vrot.lane.b32.xlu0 %v1230, 20
        %v1313 = vpop.permute.xlu0 %1312
        %1314 = vrot.lane.b32.xlu0 %v1231, 20
        %v1315 = vpop.permute.xlu0 %1314
        %1316 = vrot.lane.b32.xlu0 %v1232, 20
        %v1317 = vpop.permute.xlu0 %1316
        %1318 = vrot.lane.b32.xlu0 %v1233, 20
        %v1319 = vpop.permute.xlu0 %1318
        %1320 = vrot.lane.b32.xlu0 %v1234, 20
        %v1321 = vpop.permute.xlu0 %1320
        %1322 = vrot.lane.b32.xlu0 %v1235, 20
        %v1323 = vpop.permute.xlu0 %1322
        %1324 = vrot.lane.b32.xlu0 %v1236, 20
        %v1325 = vpop.permute.xlu0 %1324
        %1326 = vrot.lane.b32.xlu0 %v1237, 20
        %v1327 = vpop.permute.xlu0 %1326
        %1328 = vrot.lane.b32.xlu0 %v1238, 20
        %v1329 = vpop.permute.xlu0 %1328
        %1330 = vrot.lane.b32.xlu0 %v1239, 20
        %v1331 = vpop.permute.xlu0 %1330
        %1332 = vrot.lane.b32.xlu0 %v1240, 20
        %v1333 = vpop.permute.xlu0 %1332
        %1334 = vrot.lane.b32.xlu0 %v1241, 20
        %v1335 = vpop.permute.xlu0 %1334
        %1336 = vrot.lane.b32.xlu0 %v1242, 20
        %v1337 = vpop.permute.xlu0 %1336
        %1338 = vrot.lane.b32.xlu0 %v1243, 20
        %v1339 = vpop.permute.xlu0 %1338
        %vm1372 = vcmask 195744
        %1373 = vst.msk [vmem:[#allocation3] sm:$0xff] %vm1372, %v1277
        %1374 = vst.msk [vmem:[#allocation3 + $0x8] sm:$0xff] %vm1372, %v1279
        %1375 = vst.msk [vmem:[#allocation3 + $0x10] sm:$0xff] %vm1372, %v1281
        %1376 = vst.msk [vmem:[#allocation3 + $0x18] sm:$0xff] %vm1372, %v1283
        %1377 = vst.msk [vmem:[#allocation3 + $0x20] sm:$0xff] %vm1372, %v1285
        %1378 = vst.msk [vmem:[#allocation3 + $0x28] sm:$0xff] %vm1372, %v1287
        %1379 = vst.msk [vmem:[#allocation3 + $0x30] sm:$0xff] %vm1372, %v1289
        %1380 = vst.msk [vmem:[#allocation3 + $0x38] sm:$0xff] %vm1372, %v1291
        %1381 = vst.msk [vmem:[#allocation3 + $0x40] sm:$0xff] %vm1372, %v1293
        %1382 = vst.msk [vmem:[#allocation3 + $0x48] sm:$0xff] %vm1372, %v1295
        %1383 = vst.msk [vmem:[#allocation3 + $0x50] sm:$0xff] %vm1372, %v1297
        %1384 = vst.msk [vmem:[#allocation3 + $0x58] sm:$0xff] %vm1372, %v1299
        %1385 = vst.msk [vmem:[#allocation3 + $0x60] sm:$0xff] %vm1372, %v1301
        %1386 = vst.msk [vmem:[#allocation3 + $0x68] sm:$0xff] %vm1372, %v1303
        %1387 = vst.msk [vmem:[#allocation3 + $0x70] sm:$0xff] %vm1372, %v1305
        %1388 = vst.msk [vmem:[#allocation3 + $0x78] sm:$0xff] %vm1372, %v1307
        %1389 = vst.msk [vmem:[#allocation3 + $0x80] sm:$0xff] %vm1372, %v1309
        %1390 = vst.msk [vmem:[#allocation3 + $0x88] sm:$0xff] %vm1372, %v1311
        %1391 = vst.msk [vmem:[#allocation3 + $0x90] sm:$0xff] %vm1372, %v1313
        %1392 = vst.msk [vmem:[#allocation3 + $0x98] sm:$0xff] %vm1372, %v1315
        %1393 = vst.msk [vmem:[#allocation3 + $0xa0] sm:$0xff] %vm1372, %v1317
        %1394 = vst.msk [vmem:[#allocation3 + $0xa8] sm:$0xff] %vm1372, %v1319
        %1395 = vst.msk [vmem:[#allocation3 + $0xb0] sm:$0xff] %vm1372, %v1321
        %1396 = vst.msk [vmem:[#allocation3 + $0xb8] sm:$0xff] %vm1372, %v1323
        %1397 = vst.msk [vmem:[#allocation3 + $0xc0] sm:$0xff] %vm1372, %v1325
        %1398 = vst.msk [vmem:[#allocation3 + $0xc8] sm:$0xff] %vm1372, %v1327
        %1399 = vst.msk [vmem:[#allocation3 + $0xd0] sm:$0xff] %vm1372, %v1329
        %1400 = vst.msk [vmem:[#allocation3 + $0xd8] sm:$0xff] %vm1372, %v1331
        %1401 = vst.msk [vmem:[#allocation3 + $0xe0] sm:$0xff] %vm1372, %v1333
        %1402 = vst.msk [vmem:[#allocation3 + $0xe8] sm:$0xff] %vm1372, %v1335
        %1403 = vst.msk [vmem:[#allocation3 + $0xf0] sm:$0xff] %vm1372, %v1337
        %1404 = vst.msk [vmem:[#allocation3 + $0xf8] sm:$0xff] %vm1372, %v1339
        %s1405 = scalar_lea.vmem [#allocation2], 48
        %v1406 = vld [vmem:[%s1405] sm:$0xff]
        %v1407 = vld [vmem:[%s1405 + $0x8] sm:$0xff]
        %v1408 = vld [vmem:[%s1405 + $0x18] sm:$0xff]
        %v1409 = vld [vmem:[%s1405 + $0x20] sm:$0xff]
        %v1410 = vld [vmem:[%s1405 + $0x30] sm:$0xff]
        %v1411 = vld [vmem:[%s1405 + $0x38] sm:$0xff]
        %v1412 = vld [vmem:[%s1405 + $0x48] sm:$0xff]
        %v1413 = vld [vmem:[%s1405 + $0x50] sm:$0xff]
        %v1414 = vld [vmem:[%s1405 + $0x60] sm:$0xff]
        %v1415 = vld [vmem:[%s1405 + $0x68] sm:$0xff]
        %v1416 = vld [vmem:[%s1405 + $0x78] sm:$0xff]
        %v1417 = vld [vmem:[%s1405 + $0x80] sm:$0xff]
        %v1418 = vld [vmem:[%s1405 + $0x90] sm:$0xff]
        %v1419 = vld [vmem:[%s1405 + $0x98] sm:$0xff]
        %v1420 = vld [vmem:[%s1405 + $0xa8] sm:$0xff]
        %v1421 = vld [vmem:[%s1405 + $0xb0] sm:$0xff]
        %v1422 = vld [vmem:[%s1405 + $0xc0] sm:$0xff]
        %v1423 = vld [vmem:[%s1405 + $0xc8] sm:$0xff]
        %v1424 = vld [vmem:[%s1405 + $0xd8] sm:$0xff]
        %v1425 = vld [vmem:[%s1405 + $0xe0] sm:$0xff]
        %v1426 = vld [vmem:[%s1405 + $0xf0] sm:$0xff]
        %v1427 = vld [vmem:[%s1405 + $0xf8] sm:$0xff]
        %v1428 = vld [vmem:[%s1405 + $0x108] sm:$0xff]
        %v1429 = vld [vmem:[%s1405 + $0x110] sm:$0xff]
        %v1430 = vld [vmem:[%s1405 + $0x120] sm:$0xff]
        %v1431 = vld [vmem:[%s1405 + $0x128] sm:$0xff]
        %v1432 = vld [vmem:[%s1405 + $0x138] sm:$0xff]
        %v1433 = vld [vmem:[%s1405 + $0x140] sm:$0xff]
        %v1434 = vld [vmem:[%s1405 + $0x150] sm:$0xff]
        %v1435 = vld [vmem:[%s1405 + $0x158] sm:$0xff]
        %v1436 = vld [vmem:[%s1405 + $0x168] sm:$0xff]
        %v1437 = vld [vmem:[%s1405 + $0x170] sm:$0xff]
        %1470 = vrot.lane.b32.xlu0 %v1406, 24
        %v1471 = vpop.permute.xlu0 %1470
        %1472 = vrot.lane.b32.xlu0 %v1407, 24
        %v1473 = vpop.permute.xlu0 %1472
        %1474 = vrot.lane.b32.xlu0 %v1408, 24
        %v1475 = vpop.permute.xlu0 %1474
        %1476 = vrot.lane.b32.xlu0 %v1409, 24
        %v1477 = vpop.permute.xlu0 %1476
        %1478 = vrot.lane.b32.xlu0 %v1410, 24
        %v1479 = vpop.permute.xlu0 %1478
        %1480 = vrot.lane.b32.xlu0 %v1411, 24
        %v1481 = vpop.permute.xlu0 %1480
        %1482 = vrot.lane.b32.xlu0 %v1412, 24
        %v1483 = vpop.permute.xlu0 %1482
        %1484 = vrot.lane.b32.xlu0 %v1413, 24
        %v1485 = vpop.permute.xlu0 %1484
        %1486 = vrot.lane.b32.xlu0 %v1414, 24
        %v1487 = vpop.permute.xlu0 %1486
        %1488 = vrot.lane.b32.xlu0 %v1415, 24
        %v1489 = vpop.permute.xlu0 %1488
        %1490 = vrot.lane.b32.xlu0 %v1416, 24
        %v1491 = vpop.permute.xlu0 %1490
        %1492 = vrot.lane.b32.xlu0 %v1417, 24
        %v1493 = vpop.permute.xlu0 %1492
        %1494 = vrot.lane.b32.xlu0 %v1418, 24
        %v1495 = vpop.permute.xlu0 %1494
        %1496 = vrot.lane.b32.xlu0 %v1419, 24
        %v1497 = vpop.permute.xlu0 %1496
        %1498 = vrot.lane.b32.xlu0 %v1420, 24
        %v1499 = vpop.permute.xlu0 %1498
        %1500 = vrot.lane.b32.xlu0 %v1421, 24
        %v1501 = vpop.permute.xlu0 %1500
        %1502 = vrot.lane.b32.xlu0 %v1422, 24
        %v1503 = vpop.permute.xlu0 %1502
        %1504 = vrot.lane.b32.xlu0 %v1423, 24
        %v1505 = vpop.permute.xlu0 %1504
        %1506 = vrot.lane.b32.xlu0 %v1424, 24
        %v1507 = vpop.permute.xlu0 %1506
        %1508 = vrot.lane.b32.xlu0 %v1425, 24
        %v1509 = vpop.permute.xlu0 %1508
        %1510 = vrot.lane.b32.xlu0 %v1426, 24
        %v1511 = vpop.permute.xlu0 %1510
        %1512 = vrot.lane.b32.xlu0 %v1427, 24
        %v1513 = vpop.permute.xlu0 %1512
        %1514 = vrot.lane.b32.xlu0 %v1428, 24
        %v1515 = vpop.permute.xlu0 %1514
        %1516 = vrot.lane.b32.xlu0 %v1429, 24
        %v1517 = vpop.permute.xlu0 %1516
        %1518 = vrot.lane.b32.xlu0 %v1430, 24
        %v1519 = vpop.permute.xlu0 %1518
        %1520 = vrot.lane.b32.xlu0 %v1431, 24
        %v1521 = vpop.permute.xlu0 %1520
        %1522 = vrot.lane.b32.xlu0 %v1432, 24
        %v1523 = vpop.permute.xlu0 %1522
        %1524 = vrot.lane.b32.xlu0 %v1433, 24
        %v1525 = vpop.permute.xlu0 %1524
        %1526 = vrot.lane.b32.xlu0 %v1434, 24
        %v1527 = vpop.permute.xlu0 %1526
        %1528 = vrot.lane.b32.xlu0 %v1435, 24
        %v1529 = vpop.permute.xlu0 %1528
        %1530 = vrot.lane.b32.xlu0 %v1436, 24
        %v1531 = vpop.permute.xlu0 %1530
        %1532 = vrot.lane.b32.xlu0 %v1437, 24
        %v1533 = vpop.permute.xlu0 %1532
        %vm1566 = vcmask 228544
        %1567 = vst.msk [vmem:[#allocation3] sm:$0xff] %vm1566, %v1471
        %1568 = vst.msk [vmem:[#allocation3 + $0x8] sm:$0xff] %vm1566, %v1473
        %1569 = vst.msk [vmem:[#allocation3 + $0x10] sm:$0xff] %vm1566, %v1475
        %1570 = vst.msk [vmem:[#allocation3 + $0x18] sm:$0xff] %vm1566, %v1477
        %1571 = vst.msk [vmem:[#allocation3 + $0x20] sm:$0xff] %vm1566, %v1479
        %1572 = vst.msk [vmem:[#allocation3 + $0x28] sm:$0xff] %vm1566, %v1481
        %1573 = vst.msk [vmem:[#allocation3 + $0x30] sm:$0xff] %vm1566, %v1483
        %1574 = vst.msk [vmem:[#allocation3 + $0x38] sm:$0xff] %vm1566, %v1485
        %1575 = vst.msk [vmem:[#allocation3 + $0x40] sm:$0xff] %vm1566, %v1487
        %1576 = vst.msk [vmem:[#allocation3 + $0x48] sm:$0xff] %vm1566, %v1489
        %1577 = vst.msk [vmem:[#allocation3 + $0x50] sm:$0xff] %vm1566, %v1491
        %1578 = vst.msk [vmem:[#allocation3 + $0x58] sm:$0xff] %vm1566, %v1493
        %1579 = vst.msk [vmem:[#allocation3 + $0x60] sm:$0xff] %vm1566, %v1495
        %1580 = vst.msk [vmem:[#allocation3 + $0x68] sm:$0xff] %vm1566, %v1497
        %1581 = vst.msk [vmem:[#allocation3 + $0x70] sm:$0xff] %vm1566, %v1499
        %1582 = vst.msk [vmem:[#allocation3 + $0x78] sm:$0xff] %vm1566, %v1501
        %1583 = vst.msk [vmem:[#allocation3 + $0x80] sm:$0xff] %vm1566, %v1503
        %1584 = vst.msk [vmem:[#allocation3 + $0x88] sm:$0xff] %vm1566, %v1505
        %1585 = vst.msk [vmem:[#allocation3 + $0x90] sm:$0xff] %vm1566, %v1507
        %1586 = vst.msk [vmem:[#allocation3 + $0x98] sm:$0xff] %vm1566, %v1509
        %1587 = vst.msk [vmem:[#allocation3 + $0xa0] sm:$0xff] %vm1566, %v1511
        %1588 = vst.msk [vmem:[#allocation3 + $0xa8] sm:$0xff] %vm1566, %v1513
        %1589 = vst.msk [vmem:[#allocation3 + $0xb0] sm:$0xff] %vm1566, %v1515
        %1590 = vst.msk [vmem:[#allocation3 + $0xb8] sm:$0xff] %vm1566, %v1517
        %1591 = vst.msk [vmem:[#allocation3 + $0xc0] sm:$0xff] %vm1566, %v1519
        %1592 = vst.msk [vmem:[#allocation3 + $0xc8] sm:$0xff] %vm1566, %v1521
        %1593 = vst.msk [vmem:[#allocation3 + $0xd0] sm:$0xff] %vm1566, %v1523
        %1594 = vst.msk [vmem:[#allocation3 + $0xd8] sm:$0xff] %vm1566, %v1525
        %1595 = vst.msk [vmem:[#allocation3 + $0xe0] sm:$0xff] %vm1566, %v1527
        %1596 = vst.msk [vmem:[#allocation3 + $0xe8] sm:$0xff] %vm1566, %v1529
        %1597 = vst.msk [vmem:[#allocation3 + $0xf0] sm:$0xff] %vm1566, %v1531
        %1598 = vst.msk [vmem:[#allocation3 + $0xf8] sm:$0xff] %vm1566, %v1533
        %v1599 = vld [vmem:[%s1405 + $0x1] sm:$0xff]
        %v1600 = vld [vmem:[%s1405 + $0x9] sm:$0xff]
        %v1601 = vld [vmem:[%s1405 + $0x19] sm:$0xff]
        %v1602 = vld [vmem:[%s1405 + $0x21] sm:$0xff]
        %v1603 = vld [vmem:[%s1405 + $0x31] sm:$0xff]
        %v1604 = vld [vmem:[%s1405 + $0x39] sm:$0xff]
        %v1605 = vld [vmem:[%s1405 + $0x49] sm:$0xff]
        %v1606 = vld [vmem:[%s1405 + $0x51] sm:$0xff]
        %v1607 = vld [vmem:[%s1405 + $0x61] sm:$0xff]
        %v1608 = vld [vmem:[%s1405 + $0x69] sm:$0xff]
        %v1609 = vld [vmem:[%s1405 + $0x79] sm:$0xff]
        %v1610 = vld [vmem:[%s1405 + $0x81] sm:$0xff]
        %v1611 = vld [vmem:[%s1405 + $0x91] sm:$0xff]
        %v1612 = vld [vmem:[%s1405 + $0x99] sm:$0xff]
        %v1613 = vld [vmem:[%s1405 + $0xa9] sm:$0xff]
        %v1614 = vld [vmem:[%s1405 + $0xb1] sm:$0xff]
        %v1615 = vld [vmem:[%s1405 + $0xc1] sm:$0xff]
        %v1616 = vld [vmem:[%s1405 + $0xc9] sm:$0xff]
        %v1617 = vld [vmem:[%s1405 + $0xd9] sm:$0xff]
        %v1618 = vld [vmem:[%s1405 + $0xe1] sm:$0xff]
        %v1619 = vld [vmem:[%s1405 + $0xf1] sm:$0xff]
        %v1620 = vld [vmem:[%s1405 + $0xf9] sm:$0xff]
        %v1621 = vld [vmem:[%s1405 + $0x109] sm:$0xff]
        %v1622 = vld [vmem:[%s1405 + $0x111] sm:$0xff]
        %v1623 = vld [vmem:[%s1405 + $0x121] sm:$0xff]
        %v1624 = vld [vmem:[%s1405 + $0x129] sm:$0xff]
        %v1625 = vld [vmem:[%s1405 + $0x139] sm:$0xff]
        %v1626 = vld [vmem:[%s1405 + $0x141] sm:$0xff]
        %v1627 = vld [vmem:[%s1405 + $0x151] sm:$0xff]
        %v1628 = vld [vmem:[%s1405 + $0x159] sm:$0xff]
        %v1629 = vld [vmem:[%s1405 + $0x169] sm:$0xff]
        %v1630 = vld [vmem:[%s1405 + $0x171] sm:$0xff]
        %1663 = vrot.lane.b32.xlu0 %v1599, 28
        %v1664 = vpop.permute.xlu0 %1663
        %1665 = vrot.lane.b32.xlu0 %v1600, 28
        %v1666 = vpop.permute.xlu0 %1665
        %1667 = vrot.lane.b32.xlu0 %v1601, 28
        %v1668 = vpop.permute.xlu0 %1667
        %1669 = vrot.lane.b32.xlu0 %v1602, 28
        %v1670 = vpop.permute.xlu0 %1669
        %1671 = vrot.lane.b32.xlu0 %v1603, 28
        %v1672 = vpop.permute.xlu0 %1671
        %1673 = vrot.lane.b32.xlu0 %v1604, 28
        %v1674 = vpop.permute.xlu0 %1673
        %1675 = vrot.lane.b32.xlu0 %v1605, 28
        %v1676 = vpop.permute.xlu0 %1675
        %1677 = vrot.lane.b32.xlu0 %v1606, 28
        %v1678 = vpop.permute.xlu0 %1677
        %1679 = vrot.lane.b32.xlu0 %v1607, 28
        %v1680 = vpop.permute.xlu0 %1679
        %1681 = vrot.lane.b32.xlu0 %v1608, 28
        %v1682 = vpop.permute.xlu0 %1681
        %1683 = vrot.lane.b32.xlu0 %v1609, 28
        %v1684 = vpop.permute.xlu0 %1683
        %1685 = vrot.lane.b32.xlu0 %v1610, 28
        %v1686 = vpop.permute.xlu0 %1685
        %1687 = vrot.lane.b32.xlu0 %v1611, 28
        %v1688 = vpop.permute.xlu0 %1687
        %1689 = vrot.lane.b32.xlu0 %v1612, 28
        %v1690 = vpop.permute.xlu0 %1689
        %1691 = vrot.lane.b32.xlu0 %v1613, 28
        %v1692 = vpop.permute.xlu0 %1691
        %1693 = vrot.lane.b32.xlu0 %v1614, 28
        %v1694 = vpop.permute.xlu0 %1693
        %1695 = vrot.lane.b32.xlu0 %v1615, 28
        %v1696 = vpop.permute.xlu0 %1695
        %1697 = vrot.lane.b32.xlu0 %v1616, 28
        %v1698 = vpop.permute.xlu0 %1697
        %1699 = vrot.lane.b32.xlu0 %v1617, 28
        %v1700 = vpop.permute.xlu0 %1699
        %1701 = vrot.lane.b32.xlu0 %v1618, 28
        %v1702 = vpop.permute.xlu0 %1701
        %1703 = vrot.lane.b32.xlu0 %v1619, 28
        %v1704 = vpop.permute.xlu0 %1703
        %1705 = vrot.lane.b32.xlu0 %v1620, 28
        %v1706 = vpop.permute.xlu0 %1705
        %1707 = vrot.lane.b32.xlu0 %v1621, 28
        %v1708 = vpop.permute.xlu0 %1707
        %1709 = vrot.lane.b32.xlu0 %v1622, 28
        %v1710 = vpop.permute.xlu0 %1709
        %1711 = vrot.lane.b32.xlu0 %v1623, 28
        %v1712 = vpop.permute.xlu0 %1711
        %1713 = vrot.lane.b32.xlu0 %v1624, 28
        %v1714 = vpop.permute.xlu0 %1713
        %1715 = vrot.lane.b32.xlu0 %v1625, 28
        %v1716 = vpop.permute.xlu0 %1715
        %1717 = vrot.lane.b32.xlu0 %v1626, 28
        %v1718 = vpop.permute.xlu0 %1717
        %1719 = vrot.lane.b32.xlu0 %v1627, 28
        %v1720 = vpop.permute.xlu0 %1719
        %1721 = vrot.lane.b32.xlu0 %v1628, 28
        %v1722 = vpop.permute.xlu0 %1721
        %1723 = vrot.lane.b32.xlu0 %v1629, 28
        %v1724 = vpop.permute.xlu0 %1723
        %1725 = vrot.lane.b32.xlu0 %v1630, 28
        %v1726 = vpop.permute.xlu0 %1725
        %vm1759 = vcmask 261344
        %1760 = vst.msk [vmem:[#allocation3] sm:$0xff] %vm1759, %v1664
        %1761 = vst.msk [vmem:[#allocation3 + $0x8] sm:$0xff] %vm1759, %v1666
        %1762 = vst.msk [vmem:[#allocation3 + $0x10] sm:$0xff] %vm1759, %v1668
        %1763 = vst.msk [vmem:[#allocation3 + $0x18] sm:$0xff] %vm1759, %v1670
        %1764 = vst.msk [vmem:[#allocation3 + $0x20] sm:$0xff] %vm1759, %v1672
        %1765 = vst.msk [vmem:[#allocation3 + $0x28] sm:$0xff] %vm1759, %v1674
        %1766 = vst.msk [vmem:[#allocation3 + $0x30] sm:$0xff] %vm1759, %v1676
        %1767 = vst.msk [vmem:[#allocation3 + $0x38] sm:$0xff] %vm1759, %v1678
        %1768 = vst.msk [vmem:[#allocation3 + $0x40] sm:$0xff] %vm1759, %v1680
        %1769 = vst.msk [vmem:[#allocation3 + $0x48] sm:$0xff] %vm1759, %v1682
        %1770 = vst.msk [vmem:[#allocation3 + $0x50] sm:$0xff] %vm1759, %v1684
        %1771 = vst.msk [vmem:[#allocation3 + $0x58] sm:$0xff] %vm1759, %v1686
        %1772 = vst.msk [vmem:[#allocation3 + $0x60] sm:$0xff] %vm1759, %v1688
        %1773 = vst.msk [vmem:[#allocation3 + $0x68] sm:$0xff] %vm1759, %v1690
        %1774 = vst.msk [vmem:[#allocation3 + $0x70] sm:$0xff] %vm1759, %v1692
        %1775 = vst.msk [vmem:[#allocation3 + $0x78] sm:$0xff] %vm1759, %v1694
        %1776 = vst.msk [vmem:[#allocation3 + $0x80] sm:$0xff] %vm1759, %v1696
        %1777 = vst.msk [vmem:[#allocation3 + $0x88] sm:$0xff] %vm1759, %v1698
        %1778 = vst.msk [vmem:[#allocation3 + $0x90] sm:$0xff] %vm1759, %v1700
        %1779 = vst.msk [vmem:[#allocation3 + $0x98] sm:$0xff] %vm1759, %v1702
        %1780 = vst.msk [vmem:[#allocation3 + $0xa0] sm:$0xff] %vm1759, %v1704
        %1781 = vst.msk [vmem:[#allocation3 + $0xa8] sm:$0xff] %vm1759, %v1706
        %1782 = vst.msk [vmem:[#allocation3 + $0xb0] sm:$0xff] %vm1759, %v1708
        %1783 = vst.msk [vmem:[#allocation3 + $0xb8] sm:$0xff] %vm1759, %v1710
        %1784 = vst.msk [vmem:[#allocation3 + $0xc0] sm:$0xff] %vm1759, %v1712
        %1785 = vst.msk [vmem:[#allocation3 + $0xc8] sm:$0xff] %vm1759, %v1714
        %1786 = vst.msk [vmem:[#allocation3 + $0xd0] sm:$0xff] %vm1759, %v1716
        %1787 = vst.msk [vmem:[#allocation3 + $0xd8] sm:$0xff] %vm1759, %v1718
        %1788 = vst.msk [vmem:[#allocation3 + $0xe0] sm:$0xff] %vm1759, %v1720
        %1789 = vst.msk [vmem:[#allocation3 + $0xe8] sm:$0xff] %vm1759, %v1722
        %1790 = vst.msk [vmem:[#allocation3 + $0xf0] sm:$0xff] %vm1759, %v1724
        %1791 = vst.msk [vmem:[#allocation3 + $0xf8] sm:$0xff] %vm1759, %v1726
        %v1792 = vld [vmem:[%s1405 + $0x2] sm:$0xff]
        %v1793 = vld [vmem:[%s1405 + $0xa] sm:$0xff]
        %v1794 = vld [vmem:[%s1405 + $0x1a] sm:$0xff]
        %v1795 = vld [vmem:[%s1405 + $0x22] sm:$0xff]
        %v1796 = vld [vmem:[%s1405 + $0x32] sm:$0xff]
        %v1797 = vld [vmem:[%s1405 + $0x3a] sm:$0xff]
        %v1798 = vld [vmem:[%s1405 + $0x4a] sm:$0xff]
        %v1799 = vld [vmem:[%s1405 + $0x52] sm:$0xff]
        %v1800 = vld [vmem:[%s1405 + $0x62] sm:$0xff]
        %v1801 = vld [vmem:[%s1405 + $0x6a] sm:$0xff]
        %v1802 = vld [vmem:[%s1405 + $0x7a] sm:$0xff]
        %v1803 = vld [vmem:[%s1405 + $0x82] sm:$0xff]
        %v1804 = vld [vmem:[%s1405 + $0x92] sm:$0xff]
        %v1805 = vld [vmem:[%s1405 + $0x9a] sm:$0xff]
        %v1806 = vld [vmem:[%s1405 + $0xaa] sm:$0xff]
        %v1807 = vld [vmem:[%s1405 + $0xb2] sm:$0xff]
        %v1808 = vld [vmem:[%s1405 + $0xc2] sm:$0xff]
        %v1809 = vld [vmem:[%s1405 + $0xca] sm:$0xff]
        %v1810 = vld [vmem:[%s1405 + $0xda] sm:$0xff]
        %v1811 = vld [vmem:[%s1405 + $0xe2] sm:$0xff]
        %v1812 = vld [vmem:[%s1405 + $0xf2] sm:$0xff]
        %v1813 = vld [vmem:[%s1405 + $0xfa] sm:$0xff]
        %v1814 = vld [vmem:[%s1405 + $0x10a] sm:$0xff]
        %v1815 = vld [vmem:[%s1405 + $0x112] sm:$0xff]
        %v1816 = vld [vmem:[%s1405 + $0x122] sm:$0xff]
        %v1817 = vld [vmem:[%s1405 + $0x12a] sm:$0xff]
        %v1818 = vld [vmem:[%s1405 + $0x13a] sm:$0xff]
        %v1819 = vld [vmem:[%s1405 + $0x142] sm:$0xff]
        %v1820 = vld [vmem:[%s1405 + $0x152] sm:$0xff]
        %v1821 = vld [vmem:[%s1405 + $0x15a] sm:$0xff]
        %v1822 = vld [vmem:[%s1405 + $0x16a] sm:$0xff]
        %v1823 = vld [vmem:[%s1405 + $0x172] sm:$0xff]
        %1856 = vrot.lane.b32.xlu0 %v1792, 32
        %v1857 = vpop.permute.xlu0 %1856
        %1858 = vrot.lane.b32.xlu0 %v1793, 32
        %v1859 = vpop.permute.xlu0 %1858
        %1860 = vrot.lane.b32.xlu0 %v1794, 32
        %v1861 = vpop.permute.xlu0 %1860
        %1862 = vrot.lane.b32.xlu0 %v1795, 32
        %v1863 = vpop.permute.xlu0 %1862
        %1864 = vrot.lane.b32.xlu0 %v1796, 32
        %v1865 = vpop.permute.xlu0 %1864
        %1866 = vrot.lane.b32.xlu0 %v1797, 32
        %v1867 = vpop.permute.xlu0 %1866
        %1868 = vrot.lane.b32.xlu0 %v1798, 32
        %v1869 = vpop.permute.xlu0 %1868
        %1870 = vrot.lane.b32.xlu0 %v1799, 32
        %v1871 = vpop.permute.xlu0 %1870
        %1872 = vrot.lane.b32.xlu0 %v1800, 32
        %v1873 = vpop.permute.xlu0 %1872
        %1874 = vrot.lane.b32.xlu0 %v1801, 32
        %v1875 = vpop.permute.xlu0 %1874
        %1876 = vrot.lane.b32.xlu0 %v1802, 32
        %v1877 = vpop.permute.xlu0 %1876
        %1878 = vrot.lane.b32.xlu0 %v1803, 32
        %v1879 = vpop.permute.xlu0 %1878
        %1880 = vrot.lane.b32.xlu0 %v1804, 32
        %v1881 = vpop.permute.xlu0 %1880
        %1882 = vrot.lane.b32.xlu0 %v1805, 32
        %v1883 = vpop.permute.xlu0 %1882
        %1884 = vrot.lane.b32.xlu0 %v1806, 32
        %v1885 = vpop.permute.xlu0 %1884
        %1886 = vrot.lane.b32.xlu0 %v1807, 32
        %v1887 = vpop.permute.xlu0 %1886
        %1888 = vrot.lane.b32.xlu0 %v1808, 32
        %v1889 = vpop.permute.xlu0 %1888
        %1890 = vrot.lane.b32.xlu0 %v1809, 32
        %v1891 = vpop.permute.xlu0 %1890
        %1892 = vrot.lane.b32.xlu0 %v1810, 32
        %v1893 = vpop.permute.xlu0 %1892
        %1894 = vrot.lane.b32.xlu0 %v1811, 32
        %v1895 = vpop.permute.xlu0 %1894
        %1896 = vrot.lane.b32.xlu0 %v1812, 32
        %v1897 = vpop.permute.xlu0 %1896
        %1898 = vrot.lane.b32.xlu0 %v1813, 32
        %v1899 = vpop.permute.xlu0 %1898
        %1900 = vrot.lane.b32.xlu0 %v1814, 32
        %v1901 = vpop.permute.xlu0 %1900
        %1902 = vrot.lane.b32.xlu0 %v1815, 32
        %v1903 = vpop.permute.xlu0 %1902
        %1904 = vrot.lane.b32.xlu0 %v1816, 32
        %v1905 = vpop.permute.xlu0 %1904
        %1906 = vrot.lane.b32.xlu0 %v1817, 32
        %v1907 = vpop.permute.xlu0 %1906
        %1908 = vrot.lane.b32.xlu0 %v1818, 32
        %v1909 = vpop.permute.xlu0 %1908
        %1910 = vrot.lane.b32.xlu0 %v1819, 32
        %v1911 = vpop.permute.xlu0 %1910
        %1912 = vrot.lane.b32.xlu0 %v1820, 32
        %v1913 = vpop.permute.xlu0 %1912
        %1914 = vrot.lane.b32.xlu0 %v1821, 32
        %v1915 = vpop.permute.xlu0 %1914
        %1916 = vrot.lane.b32.xlu0 %v1822, 32
        %v1917 = vpop.permute.xlu0 %1916
        %1918 = vrot.lane.b32.xlu0 %v1823, 32
        %v1919 = vpop.permute.xlu0 %1918
        %vm1952 = vcmask 294144
        %1953 = vst.msk [vmem:[#allocation3] sm:$0xff] %vm1952, %v1857
        %1954 = vst.msk [vmem:[#allocation3 + $0x8] sm:$0xff] %vm1952, %v1859
        %1955 = vst.msk [vmem:[#allocation3 + $0x10] sm:$0xff] %vm1952, %v1861
        %1956 = vst.msk [vmem:[#allocation3 + $0x18] sm:$0xff] %vm1952, %v1863
        %1957 = vst.msk [vmem:[#allocation3 + $0x20] sm:$0xff] %vm1952, %v1865
        %1958 = vst.msk [vmem:[#allocation3 + $0x28] sm:$0xff] %vm1952, %v1867
        %1959 = vst.msk [vmem:[#allocation3 + $0x30] sm:$0xff] %vm1952, %v1869
        %1960 = vst.msk [vmem:[#allocation3 + $0x38] sm:$0xff] %vm1952, %v1871
        %1961 = vst.msk [vmem:[#allocation3 + $0x40] sm:$0xff] %vm1952, %v1873
        %1962 = vst.msk [vmem:[#allocation3 + $0x48] sm:$0xff] %vm1952, %v1875
        %1963 = vst.msk [vmem:[#allocation3 + $0x50] sm:$0xff] %vm1952, %v1877
        %1964 = vst.msk [vmem:[#allocation3 + $0x58] sm:$0xff] %vm1952, %v1879
        %1965 = vst.msk [vmem:[#allocation3 + $0x60] sm:$0xff] %vm1952, %v1881
        %1966 = vst.msk [vmem:[#allocation3 + $0x68] sm:$0xff] %vm1952, %v1883
        %1967 = vst.msk [vmem:[#allocation3 + $0x70] sm:$0xff] %vm1952, %v1885
        %1968 = vst.msk [vmem:[#allocation3 + $0x78] sm:$0xff] %vm1952, %v1887
        %1969 = vst.msk [vmem:[#allocation3 + $0x80] sm:$0xff] %vm1952, %v1889
        %1970 = vst.msk [vmem:[#allocation3 + $0x88] sm:$0xff] %vm1952, %v1891
        %1971 = vst.msk [vmem:[#allocation3 + $0x90] sm:$0xff] %vm1952, %v1893
        %1972 = vst.msk [vmem:[#allocation3 + $0x98] sm:$0xff] %vm1952, %v1895
        %1973 = vst.msk [vmem:[#allocation3 + $0xa0] sm:$0xff] %vm1952, %v1897
        %1974 = vst.msk [vmem:[#allocation3 + $0xa8] sm:$0xff] %vm1952, %v1899
        %1975 = vst.msk [vmem:[#allocation3 + $0xb0] sm:$0xff] %vm1952, %v1901
        %1976 = vst.msk [vmem:[#allocation3 + $0xb8] sm:$0xff] %vm1952, %v1903
        %1977 = vst.msk [vmem:[#allocation3 + $0xc0] sm:$0xff] %vm1952, %v1905
        %1978 = vst.msk [vmem:[#allocation3 + $0xc8] sm:$0xff] %vm1952, %v1907
        %1979 = vst.msk [vmem:[#allocation3 + $0xd0] sm:$0xff] %vm1952, %v1909
        %1980 = vst.msk [vmem:[#allocation3 + $0xd8] sm:$0xff] %vm1952, %v1911
        %1981 = vst.msk [vmem:[#allocation3 + $0xe0] sm:$0xff] %vm1952, %v1913
        %1982 = vst.msk [vmem:[#allocation3 + $0xe8] sm:$0xff] %vm1952, %v1915
        %1983 = vst.msk [vmem:[#allocation3 + $0xf0] sm:$0xff] %vm1952, %v1917
        %1984 = vst.msk [vmem:[#allocation3 + $0xf8] sm:$0xff] %vm1952, %v1919
        %v1985 = vld [vmem:[#allocation3] sm:$0xff]
        %v1986 = vld [vmem:[#allocation3 + $0x8] sm:$0xff]
        %v1987 = vld [vmem:[#allocation3 + $0x10] sm:$0xff]
        %v1988 = vld [vmem:[#allocation3 + $0x18] sm:$0xff]
        %v1989 = vld [vmem:[#allocation3 + $0x20] sm:$0xff]
        %v1990 = vld [vmem:[#allocation3 + $0x28] sm:$0xff]
        %v1991 = vld [vmem:[#allocation3 + $0x30] sm:$0xff]
        %v1992 = vld [vmem:[#allocation3 + $0x38] sm:$0xff]
        %v1993 = vld [vmem:[#allocation3 + $0x40] sm:$0xff]
        %v1994 = vld [vmem:[#allocation3 + $0x48] sm:$0xff]
        %v1995 = vld [vmem:[#allocation3 + $0x50] sm:$0xff]
        %v1996 = vld [vmem:[#allocation3 + $0x58] sm:$0xff]
        %v1997 = vld [vmem:[#allocation3 + $0x60] sm:$0xff]
        %v1998 = vld [vmem:[#allocation3 + $0x68] sm:$0xff]
        %v1999 = vld [vmem:[#allocation3 + $0x70] sm:$0xff]
        %v2000 = vld [vmem:[#allocation3 + $0x78] sm:$0xff]
        %v2001 = vld [vmem:[#allocation3 + $0x80] sm:$0xff]
        %v2002 = vld [vmem:[#allocation3 + $0x88] sm:$0xff]
        %v2003 = vld [vmem:[#allocation3 + $0x90] sm:$0xff]
        %v2004 = vld [vmem:[#allocation3 + $0x98] sm:$0xff]
        %v2005 = vld [vmem:[#allocation3 + $0xa0] sm:$0xff]
        %v2006 = vld [vmem:[#allocation3 + $0xa8] sm:$0xff]
        %v2007 = vld [vmem:[#allocation3 + $0xb0] sm:$0xff]
        %v2008 = vld [vmem:[#allocation3 + $0xb8] sm:$0xff]
        %v2009 = vld [vmem:[#allocation3 + $0xc0] sm:$0xff]
        %v2010 = vld [vmem:[#allocation3 + $0xc8] sm:$0xff]
        %v2011 = vld [vmem:[#allocation3 + $0xd0] sm:$0xff]
        %v2012 = vld [vmem:[#allocation3 + $0xd8] sm:$0xff]
        %v2013 = vld [vmem:[#allocation3 + $0xe0] sm:$0xff]
        %v2014 = vld [vmem:[#allocation3 + $0xe8] sm:$0xff]
        %v2015 = vld [vmem:[#allocation3 + $0xf0] sm:$0xff]
        %v2016 = vld [vmem:[#allocation3 + $0xf8] sm:$0xff]
        %v2017 = vld [vmem:[%s1] sm:$0xff]
        %v2018 = vld [vmem:[%s1 + $0x8] sm:$0xff]
        %v2019 = vld [vmem:[%s1 + $0x10] sm:$0xff]
        %v2020 = vld [vmem:[%s1 + $0x18] sm:$0xff]
        %v2021 = vld [vmem:[%s1 + $0x20] sm:$0xf]
        %v2022 = vld [vmem:[%s2] sm:$0x1]
        %v2024 = vlaneseq
        %v2025 = vshrl.u32 %v2024, 7
        %v2026 = vsub.s32 0, %v2025
        %v2027 = vrot.slane %v2022, %v2026
        %vm2029 = vcmask 293888
        %v2031 = vsel %vm2029, %v1985, 0
        %v2034 = vsel %vm2029, %v1986, 0
        %v2037 = vsel %vm2029, %v1987, 0
        %v2040 = vsel %vm2029, %v1988, 0
        %v2043 = vsel %vm2029, %v1989, 0
        %v2046 = vsel %vm2029, %v1990, 0
        %v2049 = vsel %vm2029, %v1991, 0
        %v2052 = vsel %vm2029, %v1992, 0
        %v2055 = vsel %vm2029, %v1993, 0
        %v2058 = vsel %vm2029, %v1994, 0
        %v2061 = vsel %vm2029, %v1995, 0
        %v2064 = vsel %vm2029, %v1996, 0
        %v2067 = vsel %vm2029, %v1997, 0
        %v2070 = vsel %vm2029, %v1998, 0
        %v2073 = vsel %vm2029, %v1999, 0
        %v2076 = vsel %vm2029, %v2000, 0
        %v2079 = vsel %vm2029, %v2001, 0
        %v2082 = vsel %vm2029, %v2002, 0
        %v2085 = vsel %vm2029, %v2003, 0
        %v2088 = vsel %vm2029, %v2004, 0
        %v2091 = vsel %vm2029, %v2005, 0
        %v2094 = vsel %vm2029, %v2006, 0
        %v2097 = vsel %vm2029, %v2007, 0
        %v2100 = vsel %vm2029, %v2008, 0
        %v2103 = vsel %vm2029, %v2009, 0
        %v2106 = vsel %vm2029, %v2010, 0
        %v2109 = vsel %vm2029, %v2011, 0
        %v2112 = vsel %vm2029, %v2012, 0
        %v2115 = vsel %vm2029, %v2013, 0
        %v2118 = vsel %vm2029, %v2014, 0
        %v2121 = vsel %vm2029, %v2015, 0
        %v2124 = vsel %vm2029, %v2016, 0
        %vm2126 = vcmask 1043456
        %v2128 = vsel %vm2126, %v2021, 0
        %2130 = vmatprep.subr.mxu0 0.0
        %2131 = vmatpush1.msra.mxu0 %v2017
        %2132 = vmatprep.subr.mxu0 0.0
        %2133 = vmatpush1.msra.mxu0 %v2018
        %2134 = vmatprep.subr.mxu0 0.0
        %2135 = vmatpush1.msra.mxu0 %v2019
        %2136 = vmatprep.subr.mxu0 0.0
        %2137 = vmatpush1.msra.mxu0 %v2020
        %2138 = vmatprep.subr.mxu0 0.0
        %2139 = vmatpush1.msra.mxu0 %v2128
        %2140 = vmatprep.subr.mxu0 0.0
        %2141 = vmatpush1.msra.mxu0 0.0
        %2142 = vmatprep.subr.mxu0 0.0
        %2143 = vmatpush1.msra.mxu0 0.0
        %2144 = vmatprep.subr.mxu0 0.0
        %2145 = vmatpush1.msra.mxu0 0.0
        %2146 = vmatprep.subr.mxu0 0.0
        %2147 = vmatpush1.msra.mxu0 0.0
        %2148 = vmatprep.subr.mxu0 0.0
        %2149 = vmatpush1.msra.mxu0 0.0
        %2150 = vmatprep.subr.mxu0 0.0
        %2151 = vmatpush1.msra.mxu0 0.0
        %2152 = vmatprep.subr.mxu0 0.0
        %2153 = vmatpush1.msra.mxu0 0.0
        %2154 = vmatprep.subr.mxu0 0.0
        %2155 = vmatpush1.msra.mxu0 0.0
        %2156 = vmatprep.subr.mxu0 0.0
        %2157 = vmatpush1.msra.mxu0 0.0
        %2158 = vmatprep.subr.mxu0 0.0
        %2159 = vmatpush1.msra.mxu0 0.0
        %2160 = vmatprep.subr.mxu0 0.0
        %2161 = vmatpush1.msra.mxu0 0.0
        %2162 = vmatprep.subr.mxu0 0.0
        %2163 = vmatpush1.msra.mxu0 0.0
        %2164 = vmatprep.subr.mxu0 0.0
        %2165 = vmatpush1.msra.mxu0 0.0
        %2166 = vmatprep.subr.mxu0 0.0
        %2167 = vmatpush1.msra.mxu0 0.0
        %2168 = vmatprep.subr.mxu0 0.0
        %2169 = vmatpush1.msra.mxu0 0.0
        %2170 = vmatprep.subr.mxu0 0.0
        %2171 = vmatpush1.msra.mxu0 0.0
        %2172 = vmatprep.subr.mxu0 0.0
        %2173 = vmatpush1.msra.mxu0 0.0
        %2174 = vmatprep.subr.mxu0 0.0
        %2175 = vmatpush1.msra.mxu0 0.0
        %2176 = vmatprep.subr.mxu0 0.0
        %2177 = vmatpush1.msra.mxu0 0.0
        %2178 = vmatprep.subr.mxu0 0.0
        %2179 = vmatpush1.msra.mxu0 0.0
        %2180 = vmatprep.subr.mxu0 0.0
        %2181 = vmatpush1.msra.mxu0 0.0
        %2182 = vmatprep.subr.mxu0 0.0
        %2183 = vmatpush1.msra.mxu0 0.0
        %2184 = vmatprep.subr.mxu0 0.0
        %2185 = vmatpush1.msra.mxu0 0.0
        %2186 = vmatprep.subr.mxu0 0.0
        %2187 = vmatpush1.msra.mxu0 0.0
        %2188 = vmatprep.subr.mxu0 0.0
        %2189 = vmatpush1.msra.mxu0 0.0
        %2190 = vmatprep.subr.mxu0 0.0
        %2191 = vmatpush1.msra.mxu0 0.0
        %2192 = vmatprep.subr.mxu0 0.0
        %2193 = vmatpush1.msra.mxu0 0.0
        %2194 = vmatprep.mubr.f32.mxu0 0.0
        %2195 = vmatmul.mubr.f32.gmra.mrb[0].mxu0 %v2031
        %v2196 = vpop.f32.mrb[0].mxu0
        %v2197 = vadd.f32 %v2027, %v2196
        %v2198 = vpop.f32.mrb[0].mxu0
        %2199 = vmatprep.mubr.f32.mxu0 0.0
        %2200 = vmatmul.mubr.f32.gmra.mrb[0].mxu0 %v2034
        %v2201 = vpop.f32.mrb[0].mxu0
        %v2202 = vadd.f32 %v2027, %v2201
        %v2203 = vpop.f32.mrb[0].mxu0
        %2204 = vmatprep.mubr.f32.mxu0 0.0
        %2205 = vmatmul.mubr.f32.gmra.mrb[0].mxu0 %v2037
        %v2206 = vpop.f32.mrb[0].mxu0
        %v2207 = vadd.f32 %v2027, %v2206
        %v2208 = vpop.f32.mrb[0].mxu0
        %2209 = vmatprep.mubr.f32.mxu0 0.0
        %2210 = vmatmul.mubr.f32.gmra.mrb[0].mxu0 %v2040
        %v2211 = vpop.f32.mrb[0].mxu0
        %v2212 = vadd.f32 %v2027, %v2211
        %v2213 = vpop.f32.mrb[0].mxu0
        %2214 = vmatprep.mubr.f32.mxu0 0.0
        %2215 = vmatmul.mubr.f32.gmra.mrb[0].mxu0 %v2043
        %v2216 = vpop.f32.mrb[0].mxu0
        %v2217 = vadd.f32 %v2027, %v2216
        %v2218 = vpop.f32.mrb[0].mxu0
        %2219 = vmatprep.mubr.f32.mxu0 0.0
        %2220 = vmatmul.mubr.f32.gmra.mrb[0].mxu0 %v2046
        %v2221 = vpop.f32.mrb[0].mxu0
        %v2222 = vadd.f32 %v2027, %v2221
        %v2223 = vpop.f32.mrb[0].mxu0
        %2224 = vmatprep.mubr.f32.mxu0 0.0
        %2225 = vmatmul.mubr.f32.gmra.mrb[0].mxu0 %v2049
        %v2226 = vpop.f32.mrb[0].mxu0
        %v2227 = vadd.f32 %v2027, %v2226
        %v2228 = vpop.f32.mrb[0].mxu0
        %2229 = vmatprep.mubr.f32.mxu0 0.0
        %2230 = vmatmul.mubr.f32.gmra.mrb[0].mxu0 %v2052
        %v2231 = vpop.f32.mrb[0].mxu0
        %v2232 = vadd.f32 %v2027, %v2231
        %v2233 = vpop.f32.mrb[0].mxu0
        %2234 = vmatprep.mubr.f32.mxu0 0.0
        %2235 = vmatmul.mubr.f32.gmra.mrb[0].mxu0 %v2055
        %v2236 = vpop.f32.mrb[0].mxu0
        %v2237 = vadd.f32 %v2027, %v2236
        %v2238 = vpop.f32.mrb[0].mxu0
        %2239 = vmatprep.mubr.f32.mxu0 0.0
        %2240 = vmatmul.mubr.f32.gmra.mrb[0].mxu0 %v2058
        %v2241 = vpop.f32.mrb[0].mxu0
        %v2242 = vadd.f32 %v2027, %v2241
        %v2243 = vpop.f32.mrb[0].mxu0
        %2244 = vmatprep.mubr.f32.mxu0 0.0
        %2245 = vmatmul.mubr.f32.gmra.mrb[0].mxu0 %v2061
        %v2246 = vpop.f32.mrb[0].mxu0
        %v2247 = vadd.f32 %v2027, %v2246
        %v2248 = vpop.f32.mrb[0].mxu0
        %2249 = vmatprep.mubr.f32.mxu0 0.0
        %2250 = vmatmul.mubr.f32.gmra.mrb[0].mxu0 %v2064
        %v2251 = vpop.f32.mrb[0].mxu0
        %v2252 = vadd.f32 %v2027, %v2251
        %v2253 = vpop.f32.mrb[0].mxu0
        %2254 = vmatprep.mubr.f32.mxu0 0.0
        %2255 = vmatmul.mubr.f32.gmra.mrb[0].mxu0 %v2067
        %v2256 = vpop.f32.mrb[0].mxu0
        %v2257 = vadd.f32 %v2027, %v2256
        %v2258 = vpop.f32.mrb[0].mxu0
        %2259 = vmatprep.mubr.f32.mxu0 0.0
        %2260 = vmatmul.mubr.f32.gmra.mrb[0].mxu0 %v2070
        %v2261 = vpop.f32.mrb[0].mxu0
        %v2262 = vadd.f32 %v2027, %v2261
        %v2263 = vpop.f32.mrb[0].mxu0
        %2264 = vmatprep.mubr.f32.mxu0 0.0
        %2265 = vmatmul.mubr.f32.gmra.mrb[0].mxu0 %v2073
        %v2266 = vpop.f32.mrb[0].mxu0
        %v2267 = vadd.f32 %v2027, %v2266
        %v2268 = vpop.f32.mrb[0].mxu0
        %2269 = vmatprep.mubr.f32.mxu0 0.0
        %2270 = vmatmul.mubr.f32.gmra.mrb[0].mxu0 %v2076
        %v2271 = vpop.f32.mrb[0].mxu0
        %v2272 = vadd.f32 %v2027, %v2271
        %v2273 = vpop.f32.mrb[0].mxu0
        %2274 = vmatprep.mubr.f32.mxu0 0.0
        %2275 = vmatmul.mubr.f32.gmra.mrb[0].mxu0 %v2079
        %v2276 = vpop.f32.mrb[0].mxu0
        %v2277 = vadd.f32 %v2027, %v2276
        %v2278 = vpop.f32.mrb[0].mxu0
        %2279 = vmatprep.mubr.f32.mxu0 0.0
        %2280 = vmatmul.mubr.f32.gmra.mrb[0].mxu0 %v2082
        %v2281 = vpop.f32.mrb[0].mxu0
        %v2282 = vadd.f32 %v2027, %v2281
        %v2283 = vpop.f32.mrb[0].mxu0
        %2284 = vmatprep.mubr.f32.mxu0 0.0
        %2285 = vmatmul.mubr.f32.gmra.mrb[0].mxu0 %v2085
        %v2286 = vpop.f32.mrb[0].mxu0
        %v2287 = vadd.f32 %v2027, %v2286
        %v2288 = vpop.f32.mrb[0].mxu0
        %2289 = vmatprep.mubr.f32.mxu0 0.0
        %2290 = vmatmul.mubr.f32.gmra.mrb[0].mxu0 %v2088
        %v2291 = vpop.f32.mrb[0].mxu0
        %v2292 = vadd.f32 %v2027, %v2291
        %v2293 = vpop.f32.mrb[0].mxu0
        %2294 = vmatprep.mubr.f32.mxu0 0.0
        %2295 = vmatmul.mubr.f32.gmra.mrb[0].mxu0 %v2091
        %v2296 = vpop.f32.mrb[0].mxu0
        %v2297 = vadd.f32 %v2027, %v2296
        %v2298 = vpop.f32.mrb[0].mxu0
        %2299 = vmatprep.mubr.f32.mxu0 0.0
        %2300 = vmatmul.mubr.f32.gmra.mrb[0].mxu0 %v2094
        %v2301 = vpop.f32.mrb[0].mxu0
        %v2302 = vadd.f32 %v2027, %v2301
        %v2303 = vpop.f32.mrb[0].mxu0
        %2304 = vmatprep.mubr.f32.mxu0 0.0
        %2305 = vmatmul.mubr.f32.gmra.mrb[0].mxu0 %v2097
        %v2306 = vpop.f32.mrb[0].mxu0
        %v2307 = vadd.f32 %v2027, %v2306
        %v2308 = vpop.f32.mrb[0].mxu0
        %2309 = vmatprep.mubr.f32.mxu0 0.0
        %2310 = vmatmul.mubr.f32.gmra.mrb[0].mxu0 %v2100
        %v2311 = vpop.f32.mrb[0].mxu0
        %v2312 = vadd.f32 %v2027, %v2311
        %v2313 = vpop.f32.mrb[0].mxu0
        %2314 = vmatprep.mubr.f32.mxu0 0.0
        %2315 = vmatmul.mubr.f32.gmra.mrb[0].mxu0 %v2103
        %v2316 = vpop.f32.mrb[0].mxu0
        %v2317 = vadd.f32 %v2027, %v2316
        %v2318 = vpop.f32.mrb[0].mxu0
        %2319 = vmatprep.mubr.f32.mxu0 0.0
        %2320 = vmatmul.mubr.f32.gmra.mrb[0].mxu0 %v2106
        %v2321 = vpop.f32.mrb[0].mxu0
        %v2322 = vadd.f32 %v2027, %v2321
        %v2323 = vpop.f32.mrb[0].mxu0
        %2324 = vmatprep.mubr.f32.mxu0 0.0
        %2325 = vmatmul.mubr.f32.gmra.mrb[0].mxu0 %v2109
        %v2326 = vpop.f32.mrb[0].mxu0
        %v2327 = vadd.f32 %v2027, %v2326
        %v2328 = vpop.f32.mrb[0].mxu0
        %2329 = vmatprep.mubr.f32.mxu0 0.0
        %2330 = vmatmul.mubr.f32.gmra.mrb[0].mxu0 %v2112
        %v2331 = vpop.f32.mrb[0].mxu0
        %v2332 = vadd.f32 %v2027, %v2331
        %v2333 = vpop.f32.mrb[0].mxu0
        %2334 = vmatprep.mubr.f32.mxu0 0.0
        %2335 = vmatmul.mubr.f32.gmra.mrb[0].mxu0 %v2115
        %v2336 = vpop.f32.mrb[0].mxu0
        %v2337 = vadd.f32 %v2027, %v2336
        %v2338 = vpop.f32.mrb[0].mxu0
        %2339 = vmatprep.mubr.f32.mxu0 0.0
        %2340 = vmatmul.mubr.f32.gmra.mrb[0].mxu0 %v2118
        %v2341 = vpop.f32.mrb[0].mxu0
        %v2342 = vadd.f32 %v2027, %v2341
        %v2343 = vpop.f32.mrb[0].mxu0
        %2344 = vmatprep.mubr.f32.mxu0 0.0
        %2345 = vmatmul.mubr.f32.gmra.mrb[0].mxu0 %v2121
        %v2346 = vpop.f32.mrb[0].mxu0
        %v2347 = vadd.f32 %v2027, %v2346
        %v2348 = vpop.f32.mrb[0].mxu0
        %2349 = vmatprep.mubr.f32.mxu0 0.0
        %2350 = vmatmul.mubr.f32.gmra.mrb[0].mxu0 %v2124
        %v2351 = vpop.f32.mrb[0].mxu0
        %v2352 = vadd.f32 %v2027, %v2351
        %v2353 = vpop.f32.mrb[0].mxu0
        %2354 = vdwg.mxu0
        %2355 = vst.msk [vmem:[#allocation4] sm:$0xff] %vm255, 0.0
        %2356 = vst.msk [vmem:[#allocation4 + $0x8] sm:$0xff] %vm255, 0.0
        %2357 = vst.msk [vmem:[#allocation4 + $0x10] sm:$0x3] %vm258, 0.0
        %2358 = vst.msk [vmem:[#allocation4 + $0x18] sm:$0xff] %vm255, 0.0
        %2359 = vst.msk [vmem:[#allocation4 + $0x20] sm:$0xff] %vm255, 0.0
        %2360 = vst.msk [vmem:[#allocation4 + $0x28] sm:$0x3] %vm258, 0.0
        %2361 = vst.msk [vmem:[#allocation4 + $0x30] sm:$0xff] %vm255, 0.0
        %2362 = vst.msk [vmem:[#allocation4 + $0x38] sm:$0xff] %vm255, 0.0
        %2363 = vst.msk [vmem:[#allocation4 + $0x40] sm:$0x3] %vm258, 0.0
        %2364 = vst.msk [vmem:[#allocation4 + $0x48] sm:$0xff] %vm255, 0.0
        %2365 = vst.msk [vmem:[#allocation4 + $0x50] sm:$0xff] %vm255, 0.0
        %2366 = vst.msk [vmem:[#allocation4 + $0x58] sm:$0x3] %vm258, 0.0
        %2367 = vst.msk [vmem:[#allocation4 + $0x60] sm:$0xff] %vm255, 0.0
        %2368 = vst.msk [vmem:[#allocation4 + $0x68] sm:$0xff] %vm255, 0.0
        %2369 = vst.msk [vmem:[#allocation4 + $0x70] sm:$0x3] %vm258, 0.0
        %2370 = vst.msk [vmem:[#allocation4 + $0x78] sm:$0xff] %vm255, 0.0
        %2371 = vst.msk [vmem:[#allocation4 + $0x80] sm:$0xff] %vm255, 0.0
        %2372 = vst.msk [vmem:[#allocation4 + $0x88] sm:$0x3] %vm258, 0.0
        %2373 = vst.msk [vmem:[#allocation4 + $0x90] sm:$0xff] %vm255, 0.0
        %2374 = vst.msk [vmem:[#allocation4 + $0x98] sm:$0xff] %vm255, 0.0
        %2375 = vst.msk [vmem:[#allocation4 + $0xa0] sm:$0x3] %vm258, 0.0
        %2376 = vst.msk [vmem:[#allocation4 + $0xa8] sm:$0xff] %vm255, 0.0
        %2377 = vst.msk [vmem:[#allocation4 + $0xb0] sm:$0xff] %vm255, 0.0
        %2378 = vst.msk [vmem:[#allocation4 + $0xb8] sm:$0x3] %vm258, 0.0
        %2379 = vst.msk [vmem:[#allocation4 + $0xc0] sm:$0xff] %vm255, 0.0
        %2380 = vst.msk [vmem:[#allocation4 + $0xc8] sm:$0xff] %vm255, 0.0
        %2381 = vst.msk [vmem:[#allocation4 + $0xd0] sm:$0x3] %vm258, 0.0
        %2382 = vst.msk [vmem:[#allocation4 + $0xd8] sm:$0xff] %vm255, 0.0
        %2383 = vst.msk [vmem:[#allocation4 + $0xe0] sm:$0xff] %vm255, 0.0
        %2384 = vst.msk [vmem:[#allocation4 + $0xe8] sm:$0x3] %vm258, 0.0
        %2385 = vst.msk [vmem:[#allocation4 + $0xf0] sm:$0xff] %vm255, 0.0
        %2386 = vst.msk [vmem:[#allocation4 + $0xf8] sm:$0xff] %vm255, 0.0
        %2387 = vst.msk [vmem:[#allocation4 + $0x100] sm:$0x3] %vm258, 0.0
        %2388 = vst.msk [vmem:[#allocation4 + $0x108] sm:$0xff] %vm255, 0.0
        %2389 = vst.msk [vmem:[#allocation4 + $0x110] sm:$0xff] %vm255, 0.0
        %2390 = vst.msk [vmem:[#allocation4 + $0x118] sm:$0x3] %vm258, 0.0
        %2391 = vst.msk [vmem:[#allocation4 + $0x120] sm:$0xff] %vm255, 0.0
        %2392 = vst.msk [vmem:[#allocation4 + $0x128] sm:$0xff] %vm255, 0.0
        %2393 = vst.msk [vmem:[#allocation4 + $0x130] sm:$0x3] %vm258, 0.0
        %2394 = vst.msk [vmem:[#allocation4 + $0x138] sm:$0xff] %vm255, 0.0
        %2395 = vst.msk [vmem:[#allocation4 + $0x140] sm:$0xff] %vm255, 0.0
        %2396 = vst.msk [vmem:[#allocation4 + $0x148] sm:$0x3] %vm258, 0.0
        %2397 = vst.msk [vmem:[#allocation4 + $0x150] sm:$0xff] %vm255, 0.0
        %2398 = vst.msk [vmem:[#allocation4 + $0x158] sm:$0xff] %vm255, 0.0
        %2399 = vst.msk [vmem:[#allocation4 + $0x160] sm:$0x3] %vm258, 0.0
        %2400 = vst.msk [vmem:[#allocation4 + $0x168] sm:$0xff] %vm255, 0.0
        %2401 = vst.msk [vmem:[#allocation4 + $0x170] sm:$0xff] %vm255, 0.0
        %2402 = vst.msk [vmem:[#allocation4 + $0x178] sm:$0x3] %vm258, 0.0
        %2403 = vst.msk [vmem:[#allocation4 + $0x180] sm:$0xff] %vm255, 0.0
        %2404 = vst.msk [vmem:[#allocation4 + $0x188] sm:$0xff] %vm255, 0.0
        %2405 = vst.msk [vmem:[#allocation4 + $0x190] sm:$0x3] %vm258, 0.0
        %2406 = vst.msk [vmem:[#allocation4 + $0x198] sm:$0xff] %vm255, 0.0
        %2407 = vst.msk [vmem:[#allocation4 + $0x1a0] sm:$0xff] %vm255, 0.0
        %2408 = vst.msk [vmem:[#allocation4 + $0x1a8] sm:$0x3] %vm258, 0.0
        %v2409 = vmax.f32 %v2197, 0.0
        %v2410 = vmax.f32 %v2202, 0.0
        %v2411 = vmax.f32 %v2207, 0.0
        %v2412 = vmax.f32 %v2212, 0.0
        %v2413 = vmax.f32 %v2217, 0.0
        %v2414 = vmax.f32 %v2222, 0.0
        %v2415 = vmax.f32 %v2227, 0.0
        %v2416 = vmax.f32 %v2232, 0.0
        %v2417 = vmax.f32 %v2237, 0.0
        %v2418 = vmax.f32 %v2242, 0.0
        %v2419 = vmax.f32 %v2247, 0.0
        %v2420 = vmax.f32 %v2252, 0.0
        %v2421 = vmax.f32 %v2257, 0.0
        %v2422 = vmax.f32 %v2262, 0.0
        %v2423 = vmax.f32 %v2267, 0.0
        %v2424 = vmax.f32 %v2272, 0.0
        %v2425 = vmax.f32 %v2277, 0.0
        %v2426 = vmax.f32 %v2282, 0.0
        %v2427 = vmax.f32 %v2287, 0.0
        %v2428 = vmax.f32 %v2292, 0.0
        %v2429 = vmax.f32 %v2297, 0.0
        %v2430 = vmax.f32 %v2302, 0.0
        %v2431 = vmax.f32 %v2307, 0.0
        %v2432 = vmax.f32 %v2312, 0.0
        %v2433 = vmax.f32 %v2317, 0.0
        %v2434 = vmax.f32 %v2322, 0.0
        %v2435 = vmax.f32 %v2327, 0.0
        %v2436 = vmax.f32 %v2332, 0.0
        %v2437 = vmax.f32 %v2337, 0.0
        %v2438 = vmax.f32 %v2342, 0.0
        %v2439 = vmax.f32 %v2347, 0.0
        %v2440 = vmax.f32 %v2352, 0.0
        %s2441 = scalar_lea.vmem [#allocation4], 24
        %2442 = vst.msk [vmem:[%s2441 + $0x1] sm:$0xff] %vm255, %v2409
        %2443 = vst.msk [vmem:[%s2441 + $0x9] sm:$0xff] %vm255, %v2410
        %2444 = vst.msk [vmem:[%s2441 + $0x19] sm:$0xff] %vm255, %v2411
        %2445 = vst.msk [vmem:[%s2441 + $0x21] sm:$0xff] %vm255, %v2412
        %2446 = vst.msk [vmem:[%s2441 + $0x31] sm:$0xff] %vm255, %v2413
        %2447 = vst.msk [vmem:[%s2441 + $0x39] sm:$0xff] %vm255, %v2414
        %2448 = vst.msk [vmem:[%s2441 + $0x49] sm:$0xff] %vm255, %v2415
        %2449 = vst.msk [vmem:[%s2441 + $0x51] sm:$0xff] %vm255, %v2416
        %2450 = vst.msk [vmem:[%s2441 + $0x61] sm:$0xff] %vm255, %v2417
        %2451 = vst.msk [vmem:[%s2441 + $0x69] sm:$0xff] %vm255, %v2418
        %2452 = vst.msk [vmem:[%s2441 + $0x79] sm:$0xff] %vm255, %v2419
        %2453 = vst.msk [vmem:[%s2441 + $0x81] sm:$0xff] %vm255, %v2420
        %2454 = vst.msk [vmem:[%s2441 + $0x91] sm:$0xff] %vm255, %v2421
        %2455 = vst.msk [vmem:[%s2441 + $0x99] sm:$0xff] %vm255, %v2422
        %2456 = vst.msk [vmem:[%s2441 + $0xa9] sm:$0xff] %vm255, %v2423
        %2457 = vst.msk [vmem:[%s2441 + $0xb1] sm:$0xff] %vm255, %v2424
        %2458 = vst.msk [vmem:[%s2441 + $0xc1] sm:$0xff] %vm255, %v2425
        %2459 = vst.msk [vmem:[%s2441 + $0xc9] sm:$0xff] %vm255, %v2426
        %2460 = vst.msk [vmem:[%s2441 + $0xd9] sm:$0xff] %vm255, %v2427
        %2461 = vst.msk [vmem:[%s2441 + $0xe1] sm:$0xff] %vm255, %v2428
        %2462 = vst.msk [vmem:[%s2441 + $0xf1] sm:$0xff] %vm255, %v2429
        %2463 = vst.msk [vmem:[%s2441 + $0xf9] sm:$0xff] %vm255, %v2430
        %2464 = vst.msk [vmem:[%s2441 + $0x109] sm:$0xff] %vm255, %v2431
        %2465 = vst.msk [vmem:[%s2441 + $0x111] sm:$0xff] %vm255, %v2432
        %2466 = vst.msk [vmem:[%s2441 + $0x121] sm:$0xff] %vm255, %v2433
        %2467 = vst.msk [vmem:[%s2441 + $0x129] sm:$0xff] %vm255, %v2434
        %2468 = vst.msk [vmem:[%s2441 + $0x139] sm:$0xff] %vm255, %v2435
        %2469 = vst.msk [vmem:[%s2441 + $0x141] sm:$0xff] %vm255, %v2436
        %2470 = vst.msk [vmem:[%s2441 + $0x151] sm:$0xff] %vm255, %v2437
        %2471 = vst.msk [vmem:[%s2441 + $0x159] sm:$0xff] %vm255, %v2438
        %2472 = vst.msk [vmem:[%s2441 + $0x169] sm:$0xff] %vm255, %v2439
        %2473 = vst.msk [vmem:[%s2441 + $0x171] sm:$0xff] %vm255, %v2440
        %v2474 = vld [vmem:[#allocation4] sm:$0xff]
        %v2475 = vld [vmem:[#allocation4 + $0x8] sm:$0xff]
        %v2476 = vld [vmem:[#allocation4 + $0x18] sm:$0xff]
        %v2477 = vld [vmem:[#allocation4 + $0x20] sm:$0xff]
        %v2478 = vld [vmem:[#allocation4 + $0x30] sm:$0xff]
        %v2479 = vld [vmem:[#allocation4 + $0x38] sm:$0xff]
        %v2480 = vld [vmem:[#allocation4 + $0x48] sm:$0xff]
        %v2481 = vld [vmem:[#allocation4 + $0x50] sm:$0xff]
        %v2482 = vld [vmem:[#allocation4 + $0x60] sm:$0xff]
        %v2483 = vld [vmem:[#allocation4 + $0x68] sm:$0xff]
        %v2484 = vld [vmem:[#allocation4 + $0x78] sm:$0xff]
        %v2485 = vld [vmem:[#allocation4 + $0x80] sm:$0xff]
        %v2486 = vld [vmem:[#allocation4 + $0x90] sm:$0xff]
        %v2487 = vld [vmem:[#allocation4 + $0x98] sm:$0xff]
        %v2488 = vld [vmem:[#allocation4 + $0xa8] sm:$0xff]
        %v2489 = vld [vmem:[#allocation4 + $0xb0] sm:$0xff]
        %v2490 = vld [vmem:[#allocation4 + $0xc0] sm:$0xff]
        %v2491 = vld [vmem:[#allocation4 + $0xc8] sm:$0xff]
        %v2492 = vld [vmem:[#allocation4 + $0xd8] sm:$0xff]
        %v2493 = vld [vmem:[#allocation4 + $0xe0] sm:$0xff]
        %v2494 = vld [vmem:[#allocation4 + $0xf0] sm:$0xff]
        %v2495 = vld [vmem:[#allocation4 + $0xf8] sm:$0xff]
        %v2496 = vld [vmem:[#allocation4 + $0x108] sm:$0xff]
        %v2497 = vld [vmem:[#allocation4 + $0x110] sm:$0xff]
        %v2498 = vld [vmem:[#allocation4 + $0x120] sm:$0xff]
        %v2499 = vld [vmem:[#allocation4 + $0x128] sm:$0xff]
        %v2500 = vld [vmem:[#allocation4 + $0x138] sm:$0xff]
        %v2501 = vld [vmem:[#allocation4 + $0x140] sm:$0xff]
        %v2502 = vld [vmem:[#allocation4 + $0x150] sm:$0xff]
        %v2503 = vld [vmem:[#allocation4 + $0x158] sm:$0xff]
        %v2504 = vld [vmem:[#allocation4 + $0x168] sm:$0xff]
        %v2505 = vld [vmem:[#allocation4 + $0x170] sm:$0xff]
        %2506 = vst.msk [vmem:[#allocation5] sm:$0xff] %vm255, %v2474
        %2507 = vst.msk [vmem:[#allocation5 + $0x8] sm:$0xff] %vm255, %v2475
        %2508 = vst.msk [vmem:[#allocation5 + $0x10] sm:$0xff] %vm255, %v2476
        %2509 = vst.msk [vmem:[#allocation5 + $0x18] sm:$0xff] %vm255, %v2477
        %2510 = vst.msk [vmem:[#allocation5 + $0x20] sm:$0xff] %vm255, %v2478
        %2511 = vst.msk [vmem:[#allocation5 + $0x28] sm:$0xff] %vm255, %v2479
        %2512 = vst.msk [vmem:[#allocation5 + $0x30] sm:$0xff] %vm255, %v2480
        %2513 = vst.msk [vmem:[#allocation5 + $0x38] sm:$0xff] %vm255, %v2481
        %2514 = vst.msk [vmem:[#allocation5 + $0x40] sm:$0xff] %vm255, %v2482
        %2515 = vst.msk [vmem:[#allocation5 + $0x48] sm:$0xff] %vm255, %v2483
        %2516 = vst.msk [vmem:[#allocation5 + $0x50] sm:$0xff] %vm255, %v2484
        %2517 = vst.msk [vmem:[#allocation5 + $0x58] sm:$0xff] %vm255, %v2485
        %2518 = vst.msk [vmem:[#allocation5 + $0x60] sm:$0xff] %vm255, %v2486
        %2519 = vst.msk [vmem:[#allocation5 + $0x68] sm:$0xff] %vm255, %v2487
        %2520 = vst.msk [vmem:[#allocation5 + $0x70] sm:$0xff] %vm255, %v2488
        %2521 = vst.msk [vmem:[#allocation5 + $0x78] sm:$0xff] %vm255, %v2489
        %2522 = vst.msk [vmem:[#allocation5 + $0x80] sm:$0xff] %vm255, %v2490
        %2523 = vst.msk [vmem:[#allocation5 + $0x88] sm:$0xff] %vm255, %v2491
        %2524 = vst.msk [vmem:[#allocation5 + $0x90] sm:$0xff] %vm255, %v2492
        %2525 = vst.msk [vmem:[#allocation5 + $0x98] sm:$0xff] %vm255, %v2493
        %2526 = vst.msk [vmem:[#allocation5 + $0xa0] sm:$0xff] %vm255, %v2494
        %2527 = vst.msk [vmem:[#allocation5 + $0xa8] sm:$0xff] %vm255, %v2495
        %2528 = vst.msk [vmem:[#allocation5 + $0xb0] sm:$0xff] %vm255, %v2496
        %2529 = vst.msk [vmem:[#allocation5 + $0xb8] sm:$0xff] %vm255, %v2497
        %2530 = vst.msk [vmem:[#allocation5 + $0xc0] sm:$0xff] %vm255, %v2498
        %2531 = vst.msk [vmem:[#allocation5 + $0xc8] sm:$0xff] %vm255, %v2499
        %2532 = vst.msk [vmem:[#allocation5 + $0xd0] sm:$0xff] %vm255, %v2500
        %2533 = vst.msk [vmem:[#allocation5 + $0xd8] sm:$0xff] %vm255, %v2501
        %2534 = vst.msk [vmem:[#allocation5 + $0xe0] sm:$0xff] %vm255, %v2502
        %2535 = vst.msk [vmem:[#allocation5 + $0xe8] sm:$0xff] %vm255, %v2503
        %2536 = vst.msk [vmem:[#allocation5 + $0xf0] sm:$0xff] %vm255, %v2504
        %2537 = vst.msk [vmem:[#allocation5 + $0xf8] sm:$0xff] %vm255, %v2505
        %v2538 = vld [vmem:[#allocation4 + $0x1] sm:$0xff]
        %v2539 = vld [vmem:[#allocation4 + $0x9] sm:$0xff]
        %v2540 = vld [vmem:[#allocation4 + $0x19] sm:$0xff]
        %v2541 = vld [vmem:[#allocation4 + $0x21] sm:$0xff]
        %v2542 = vld [vmem:[#allocation4 + $0x31] sm:$0xff]
        %v2543 = vld [vmem:[#allocation4 + $0x39] sm:$0xff]
        %v2544 = vld [vmem:[#allocation4 + $0x49] sm:$0xff]
        %v2545 = vld [vmem:[#allocation4 + $0x51] sm:$0xff]
        %v2546 = vld [vmem:[#allocation4 + $0x61] sm:$0xff]
        %v2547 = vld [vmem:[#allocation4 + $0x69] sm:$0xff]
        %v2548 = vld [vmem:[#allocation4 + $0x79] sm:$0xff]
        %v2549 = vld [vmem:[#allocation4 + $0x81] sm:$0xff]
        %v2550 = vld [vmem:[#allocation4 + $0x91] sm:$0xff]
        %v2551 = vld [vmem:[#allocation4 + $0x99] sm:$0xff]
        %v2552 = vld [vmem:[#allocation4 + $0xa9] sm:$0xff]
        %v2553 = vld [vmem:[#allocation4 + $0xb1] sm:$0xff]
        %v2554 = vld [vmem:[#allocation4 + $0xc1] sm:$0xff]
        %v2555 = vld [vmem:[#allocation4 + $0xc9] sm:$0xff]
        %v2556 = vld [vmem:[#allocation4 + $0xd9] sm:$0xff]
        %v2557 = vld [vmem:[#allocation4 + $0xe1] sm:$0xff]
        %v2558 = vld [vmem:[#allocation4 + $0xf1] sm:$0xff]
        %v2559 = vld [vmem:[#allocation4 + $0xf9] sm:$0xff]
        %v2560 = vld [vmem:[#allocation4 + $0x109] sm:$0xff]
        %v2561 = vld [vmem:[#allocation4 + $0x111] sm:$0xff]
        %v2562 = vld [vmem:[#allocation4 + $0x121] sm:$0xff]
        %v2563 = vld [vmem:[#allocation4 + $0x129] sm:$0xff]
        %v2564 = vld [vmem:[#allocation4 + $0x139] sm:$0xff]
        %v2565 = vld [vmem:[#allocation4 + $0x141] sm:$0xff]
        %v2566 = vld [vmem:[#allocation4 + $0x151] sm:$0xff]
        %v2567 = vld [vmem:[#allocation4 + $0x159] sm:$0xff]
        %v2568 = vld [vmem:[#allocation4 + $0x169] sm:$0xff]
        %v2569 = vld [vmem:[#allocation4 + $0x171] sm:$0xff]
        %2602 = vrot.lane.b32.xlu0 %v2538, 4
        %v2603 = vpop.permute.xlu0 %2602
        %2604 = vrot.lane.b32.xlu0 %v2539, 4
        %v2605 = vpop.permute.xlu0 %2604
        %2606 = vrot.lane.b32.xlu0 %v2540, 4
        %v2607 = vpop.permute.xlu0 %2606
        %2608 = vrot.lane.b32.xlu0 %v2541, 4
        %v2609 = vpop.permute.xlu0 %2608
        %2610 = vrot.lane.b32.xlu0 %v2542, 4
        %v2611 = vpop.permute.xlu0 %2610
        %2612 = vrot.lane.b32.xlu0 %v2543, 4
        %v2613 = vpop.permute.xlu0 %2612
        %2614 = vrot.lane.b32.xlu0 %v2544, 4
        %v2615 = vpop.permute.xlu0 %2614
        %2616 = vrot.lane.b32.xlu0 %v2545, 4
        %v2617 = vpop.permute.xlu0 %2616
        %2618 = vrot.lane.b32.xlu0 %v2546, 4
        %v2619 = vpop.permute.xlu0 %2618
        %2620 = vrot.lane.b32.xlu0 %v2547, 4
        %v2621 = vpop.permute.xlu0 %2620
        %2622 = vrot.lane.b32.xlu0 %v2548, 4
        %v2623 = vpop.permute.xlu0 %2622
        %2624 = vrot.lane.b32.xlu0 %v2549, 4
        %v2625 = vpop.permute.xlu0 %2624
        %2626 = vrot.lane.b32.xlu0 %v2550, 4
        %v2627 = vpop.permute.xlu0 %2626
        %2628 = vrot.lane.b32.xlu0 %v2551, 4
        %v2629 = vpop.permute.xlu0 %2628
        %2630 = vrot.lane.b32.xlu0 %v2552, 4
        %v2631 = vpop.permute.xlu0 %2630
        %2632 = vrot.lane.b32.xlu0 %v2553, 4
        %v2633 = vpop.permute.xlu0 %2632
        %2634 = vrot.lane.b32.xlu0 %v2554, 4
        %v2635 = vpop.permute.xlu0 %2634
        %2636 = vrot.lane.b32.xlu0 %v2555, 4
        %v2637 = vpop.permute.xlu0 %2636
        %2638 = vrot.lane.b32.xlu0 %v2556, 4
        %v2639 = vpop.permute.xlu0 %2638
        %2640 = vrot.lane.b32.xlu0 %v2557, 4
        %v2641 = vpop.permute.xlu0 %2640
        %2642 = vrot.lane.b32.xlu0 %v2558, 4
        %v2643 = vpop.permute.xlu0 %2642
        %2644 = vrot.lane.b32.xlu0 %v2559, 4
        %v2645 = vpop.permute.xlu0 %2644
        %2646 = vrot.lane.b32.xlu0 %v2560, 4
        %v2647 = vpop.permute.xlu0 %2646
        %2648 = vrot.lane.b32.xlu0 %v2561, 4
        %v2649 = vpop.permute.xlu0 %2648
        %2650 = vrot.lane.b32.xlu0 %v2562, 4
        %v2651 = vpop.permute.xlu0 %2650
        %2652 = vrot.lane.b32.xlu0 %v2563, 4
        %v2653 = vpop.permute.xlu0 %2652
        %2654 = vrot.lane.b32.xlu0 %v2564, 4
        %v2655 = vpop.permute.xlu0 %2654
        %2656 = vrot.lane.b32.xlu0 %v2565, 4
        %v2657 = vpop.permute.xlu0 %2656
        %2658 = vrot.lane.b32.xlu0 %v2566, 4
        %v2659 = vpop.permute.xlu0 %2658
        %2660 = vrot.lane.b32.xlu0 %v2567, 4
        %v2661 = vpop.permute.xlu0 %2660
        %2662 = vrot.lane.b32.xlu0 %v2568, 4
        %v2663 = vpop.permute.xlu0 %2662
        %2664 = vrot.lane.b32.xlu0 %v2569, 4
        %v2665 = vpop.permute.xlu0 %2664
        %2698 = vst.msk [vmem:[#allocation5] sm:$0xff] %vm600, %v2603
        %2699 = vst.msk [vmem:[#allocation5 + $0x8] sm:$0xff] %vm600, %v2605
        %2700 = vst.msk [vmem:[#allocation5 + $0x10] sm:$0xff] %vm600, %v2607
        %2701 = vst.msk [vmem:[#allocation5 + $0x18] sm:$0xff] %vm600, %v2609
        %2702 = vst.msk [vmem:[#allocation5 + $0x20] sm:$0xff] %vm600, %v2611
        %2703 = vst.msk [vmem:[#allocation5 + $0x28] sm:$0xff] %vm600, %v2613
        %2704 = vst.msk [vmem:[#allocation5 + $0x30] sm:$0xff] %vm600, %v2615
        %2705 = vst.msk [vmem:[#allocation5 + $0x38] sm:$0xff] %vm600, %v2617
        %2706 = vst.msk [vmem:[#allocation5 + $0x40] sm:$0xff] %vm600, %v2619
        %2707 = vst.msk [vmem:[#allocation5 + $0x48] sm:$0xff] %vm600, %v2621
        %2708 = vst.msk [vmem:[#allocation5 + $0x50] sm:$0xff] %vm600, %v2623
        %2709 = vst.msk [vmem:[#allocation5 + $0x58] sm:$0xff] %vm600, %v2625
        %2710 = vst.msk [vmem:[#allocation5 + $0x60] sm:$0xff] %vm600, %v2627
        %2711 = vst.msk [vmem:[#allocation5 + $0x68] sm:$0xff] %vm600, %v2629
        %2712 = vst.msk [vmem:[#allocation5 + $0x70] sm:$0xff] %vm600, %v2631
        %2713 = vst.msk [vmem:[#allocation5 + $0x78] sm:$0xff] %vm600, %v2633
        %2714 = vst.msk [vmem:[#allocation5 + $0x80] sm:$0xff] %vm600, %v2635
        %2715 = vst.msk [vmem:[#allocation5 + $0x88] sm:$0xff] %vm600, %v2637
        %2716 = vst.msk [vmem:[#allocation5 + $0x90] sm:$0xff] %vm600, %v2639
        %2717 = vst.msk [vmem:[#allocation5 + $0x98] sm:$0xff] %vm600, %v2641
        %2718 = vst.msk [vmem:[#allocation5 + $0xa0] sm:$0xff] %vm600, %v2643
        %2719 = vst.msk [vmem:[#allocation5 + $0xa8] sm:$0xff] %vm600, %v2645
        %2720 = vst.msk [vmem:[#allocation5 + $0xb0] sm:$0xff] %vm600, %v2647
        %2721 = vst.msk [vmem:[#allocation5 + $0xb8] sm:$0xff] %vm600, %v2649
        %2722 = vst.msk [vmem:[#allocation5 + $0xc0] sm:$0xff] %vm600, %v2651
        %2723 = vst.msk [vmem:[#allocation5 + $0xc8] sm:$0xff] %vm600, %v2653
        %2724 = vst.msk [vmem:[#allocation5 + $0xd0] sm:$0xff] %vm600, %v2655
        %2725 = vst.msk [vmem:[#allocation5 + $0xd8] sm:$0xff] %vm600, %v2657
        %2726 = vst.msk [vmem:[#allocation5 + $0xe0] sm:$0xff] %vm600, %v2659
        %2727 = vst.msk [vmem:[#allocation5 + $0xe8] sm:$0xff] %vm600, %v2661
        %2728 = vst.msk [vmem:[#allocation5 + $0xf0] sm:$0xff] %vm600, %v2663
        %2729 = vst.msk [vmem:[#allocation5 + $0xf8] sm:$0xff] %vm600, %v2665
        %v2730 = vld [vmem:[#allocation4 + $0x2] sm:$0xff]
        %v2731 = vld [vmem:[#allocation4 + $0xa] sm:$0xff]
        %v2732 = vld [vmem:[#allocation4 + $0x1a] sm:$0xff]
        %v2733 = vld [vmem:[#allocation4 + $0x22] sm:$0xff]
        %v2734 = vld [vmem:[#allocation4 + $0x32] sm:$0xff]
        %v2735 = vld [vmem:[#allocation4 + $0x3a] sm:$0xff]
        %v2736 = vld [vmem:[#allocation4 + $0x4a] sm:$0xff]
        %v2737 = vld [vmem:[#allocation4 + $0x52] sm:$0xff]
        %v2738 = vld [vmem:[#allocation4 + $0x62] sm:$0xff]
        %v2739 = vld [vmem:[#allocation4 + $0x6a] sm:$0xff]
        %v2740 = vld [vmem:[#allocation4 + $0x7a] sm:$0xff]
        %v2741 = vld [vmem:[#allocation4 + $0x82] sm:$0xff]
        %v2742 = vld [vmem:[#allocation4 + $0x92] sm:$0xff]
        %v2743 = vld [vmem:[#allocation4 + $0x9a] sm:$0xff]
        %v2744 = vld [vmem:[#allocation4 + $0xaa] sm:$0xff]
        %v2745 = vld [vmem:[#allocation4 + $0xb2] sm:$0xff]
        %v2746 = vld [vmem:[#allocation4 + $0xc2] sm:$0xff]
        %v2747 = vld [vmem:[#allocation4 + $0xca] sm:$0xff]
        %v2748 = vld [vmem:[#allocation4 + $0xda] sm:$0xff]
        %v2749 = vld [vmem:[#allocation4 + $0xe2] sm:$0xff]
        %v2750 = vld [vmem:[#allocation4 + $0xf2] sm:$0xff]
        %v2751 = vld [vmem:[#allocation4 + $0xfa] sm:$0xff]
        %v2752 = vld [vmem:[#allocation4 + $0x10a] sm:$0xff]
        %v2753 = vld [vmem:[#allocation4 + $0x112] sm:$0xff]
        %v2754 = vld [vmem:[#allocation4 + $0x122] sm:$0xff]
        %v2755 = vld [vmem:[#allocation4 + $0x12a] sm:$0xff]
        %v2756 = vld [vmem:[#allocation4 + $0x13a] sm:$0xff]
        %v2757 = vld [vmem:[#allocation4 + $0x142] sm:$0xff]
        %v2758 = vld [vmem:[#allocation4 + $0x152] sm:$0xff]
        %v2759 = vld [vmem:[#allocation4 + $0x15a] sm:$0xff]
        %v2760 = vld [vmem:[#allocation4 + $0x16a] sm:$0xff]
        %v2761 = vld [vmem:[#allocation4 + $0x172] sm:$0xff]
        %2794 = vrot.lane.b32.xlu0 %v2730, 8
        %v2795 = vpop.permute.xlu0 %2794
        %2796 = vrot.lane.b32.xlu0 %v2731, 8
        %v2797 = vpop.permute.xlu0 %2796
        %2798 = vrot.lane.b32.xlu0 %v2732, 8
        %v2799 = vpop.permute.xlu0 %2798
        %2800 = vrot.lane.b32.xlu0 %v2733, 8
        %v2801 = vpop.permute.xlu0 %2800
        %2802 = vrot.lane.b32.xlu0 %v2734, 8
        %v2803 = vpop.permute.xlu0 %2802
        %2804 = vrot.lane.b32.xlu0 %v2735, 8
        %v2805 = vpop.permute.xlu0 %2804
        %2806 = vrot.lane.b32.xlu0 %v2736, 8
        %v2807 = vpop.permute.xlu0 %2806
        %2808 = vrot.lane.b32.xlu0 %v2737, 8
        %v2809 = vpop.permute.xlu0 %2808
        %2810 = vrot.lane.b32.xlu0 %v2738, 8
        %v2811 = vpop.permute.xlu0 %2810
        %2812 = vrot.lane.b32.xlu0 %v2739, 8
        %v2813 = vpop.permute.xlu0 %2812
        %2814 = vrot.lane.b32.xlu0 %v2740, 8
        %v2815 = vpop.permute.xlu0 %2814
        %2816 = vrot.lane.b32.xlu0 %v2741, 8
        %v2817 = vpop.permute.xlu0 %2816
        %2818 = vrot.lane.b32.xlu0 %v2742, 8
        %v2819 = vpop.permute.xlu0 %2818
        %2820 = vrot.lane.b32.xlu0 %v2743, 8
        %v2821 = vpop.permute.xlu0 %2820
        %2822 = vrot.lane.b32.xlu0 %v2744, 8
        %v2823 = vpop.permute.xlu0 %2822
        %2824 = vrot.lane.b32.xlu0 %v2745, 8
        %v2825 = vpop.permute.xlu0 %2824
        %2826 = vrot.lane.b32.xlu0 %v2746, 8
        %v2827 = vpop.permute.xlu0 %2826
        %2828 = vrot.lane.b32.xlu0 %v2747, 8
        %v2829 = vpop.permute.xlu0 %2828
        %2830 = vrot.lane.b32.xlu0 %v2748, 8
        %v2831 = vpop.permute.xlu0 %2830
        %2832 = vrot.lane.b32.xlu0 %v2749, 8
        %v2833 = vpop.permute.xlu0 %2832
        %2834 = vrot.lane.b32.xlu0 %v2750, 8
        %v2835 = vpop.permute.xlu0 %2834
        %2836 = vrot.lane.b32.xlu0 %v2751, 8
        %v2837 = vpop.permute.xlu0 %2836
        %2838 = vrot.lane.b32.xlu0 %v2752, 8
        %v2839 = vpop.permute.xlu0 %2838
        %2840 = vrot.lane.b32.xlu0 %v2753, 8
        %v2841 = vpop.permute.xlu0 %2840
        %2842 = vrot.lane.b32.xlu0 %v2754, 8
        %v2843 = vpop.permute.xlu0 %2842
        %2844 = vrot.lane.b32.xlu0 %v2755, 8
        %v2845 = vpop.permute.xlu0 %2844
        %2846 = vrot.lane.b32.xlu0 %v2756, 8
        %v2847 = vpop.permute.xlu0 %2846
        %2848 = vrot.lane.b32.xlu0 %v2757, 8
        %v2849 = vpop.permute.xlu0 %2848
        %2850 = vrot.lane.b32.xlu0 %v2758, 8
        %v2851 = vpop.permute.xlu0 %2850
        %2852 = vrot.lane.b32.xlu0 %v2759, 8
        %v2853 = vpop.permute.xlu0 %2852
        %2854 = vrot.lane.b32.xlu0 %v2760, 8
        %v2855 = vpop.permute.xlu0 %2854
        %2856 = vrot.lane.b32.xlu0 %v2761, 8
        %v2857 = vpop.permute.xlu0 %2856
        %2890 = vst.msk [vmem:[#allocation5] sm:$0xff] %vm793, %v2795
        %2891 = vst.msk [vmem:[#allocation5 + $0x8] sm:$0xff] %vm793, %v2797
        %2892 = vst.msk [vmem:[#allocation5 + $0x10] sm:$0xff] %vm793, %v2799
        %2893 = vst.msk [vmem:[#allocation5 + $0x18] sm:$0xff] %vm793, %v2801
        %2894 = vst.msk [vmem:[#allocation5 + $0x20] sm:$0xff] %vm793, %v2803
        %2895 = vst.msk [vmem:[#allocation5 + $0x28] sm:$0xff] %vm793, %v2805
        %2896 = vst.msk [vmem:[#allocation5 + $0x30] sm:$0xff] %vm793, %v2807
        %2897 = vst.msk [vmem:[#allocation5 + $0x38] sm:$0xff] %vm793, %v2809
        %2898 = vst.msk [vmem:[#allocation5 + $0x40] sm:$0xff] %vm793, %v2811
        %2899 = vst.msk [vmem:[#allocation5 + $0x48] sm:$0xff] %vm793, %v2813
        %2900 = vst.msk [vmem:[#allocation5 + $0x50] sm:$0xff] %vm793, %v2815
        %2901 = vst.msk [vmem:[#allocation5 + $0x58] sm:$0xff] %vm793, %v2817
        %2902 = vst.msk [vmem:[#allocation5 + $0x60] sm:$0xff] %vm793, %v2819
        %2903 = vst.msk [vmem:[#allocation5 + $0x68] sm:$0xff] %vm793, %v2821
        %2904 = vst.msk [vmem:[#allocation5 + $0x70] sm:$0xff] %vm793, %v2823
        %2905 = vst.msk [vmem:[#allocation5 + $0x78] sm:$0xff] %vm793, %v2825
        %2906 = vst.msk [vmem:[#allocation5 + $0x80] sm:$0xff] %vm793, %v2827
        %2907 = vst.msk [vmem:[#allocation5 + $0x88] sm:$0xff] %vm793, %v2829
        %2908 = vst.msk [vmem:[#allocation5 + $0x90] sm:$0xff] %vm793, %v2831
        %2909 = vst.msk [vmem:[#allocation5 + $0x98] sm:$0xff] %vm793, %v2833
        %2910 = vst.msk [vmem:[#allocation5 + $0xa0] sm:$0xff] %vm793, %v2835
        %2911 = vst.msk [vmem:[#allocation5 + $0xa8] sm:$0xff] %vm793, %v2837
        %2912 = vst.msk [vmem:[#allocation5 + $0xb0] sm:$0xff] %vm793, %v2839
        %2913 = vst.msk [vmem:[#allocation5 + $0xb8] sm:$0xff] %vm793, %v2841
        %2914 = vst.msk [vmem:[#allocation5 + $0xc0] sm:$0xff] %vm793, %v2843
        %2915 = vst.msk [vmem:[#allocation5 + $0xc8] sm:$0xff] %vm793, %v2845
        %2916 = vst.msk [vmem:[#allocation5 + $0xd0] sm:$0xff] %vm793, %v2847
        %2917 = vst.msk [vmem:[#allocation5 + $0xd8] sm:$0xff] %vm793, %v2849
        %2918 = vst.msk [vmem:[#allocation5 + $0xe0] sm:$0xff] %vm793, %v2851
        %2919 = vst.msk [vmem:[#allocation5 + $0xe8] sm:$0xff] %vm793, %v2853
        %2920 = vst.msk [vmem:[#allocation5 + $0xf0] sm:$0xff] %vm793, %v2855
        %2921 = vst.msk [vmem:[#allocation5 + $0xf8] sm:$0xff] %vm793, %v2857
        %v2922 = vld [vmem:[%s2441] sm:$0xff]
        %v2923 = vld [vmem:[%s2441 + $0x8] sm:$0xff]
        %v2924 = vld [vmem:[%s2441 + $0x18] sm:$0xff]
        %v2925 = vld [vmem:[%s2441 + $0x20] sm:$0xff]
        %v2926 = vld [vmem:[%s2441 + $0x30] sm:$0xff]
        %v2927 = vld [vmem:[%s2441 + $0x38] sm:$0xff]
        %v2928 = vld [vmem:[%s2441 + $0x48] sm:$0xff]
        %v2929 = vld [vmem:[%s2441 + $0x50] sm:$0xff]
        %v2930 = vld [vmem:[%s2441 + $0x60] sm:$0xff]
        %v2931 = vld [vmem:[%s2441 + $0x68] sm:$0xff]
        %v2932 = vld [vmem:[%s2441 + $0x78] sm:$0xff]
        %v2933 = vld [vmem:[%s2441 + $0x80] sm:$0xff]
        %v2934 = vld [vmem:[%s2441 + $0x90] sm:$0xff]
        %v2935 = vld [vmem:[%s2441 + $0x98] sm:$0xff]
        %v2936 = vld [vmem:[%s2441 + $0xa8] sm:$0xff]
        %v2937 = vld [vmem:[%s2441 + $0xb0] sm:$0xff]
        %v2938 = vld [vmem:[%s2441 + $0xc0] sm:$0xff]
        %v2939 = vld [vmem:[%s2441 + $0xc8] sm:$0xff]
        %v2940 = vld [vmem:[%s2441 + $0xd8] sm:$0xff]
        %v2941 = vld [vmem:[%s2441 + $0xe0] sm:$0xff]
        %v2942 = vld [vmem:[%s2441 + $0xf0] sm:$0xff]
        %v2943 = vld [vmem:[%s2441 + $0xf8] sm:$0xff]
        %v2944 = vld [vmem:[%s2441 + $0x108] sm:$0xff]
        %v2945 = vld [vmem:[%s2441 + $0x110] sm:$0xff]
        %v2946 = vld [vmem:[%s2441 + $0x120] sm:$0xff]
        %v2947 = vld [vmem:[%s2441 + $0x128] sm:$0xff]
        %v2948 = vld [vmem:[%s2441 + $0x138] sm:$0xff]
        %v2949 = vld [vmem:[%s2441 + $0x140] sm:$0xff]
        %v2950 = vld [vmem:[%s2441 + $0x150] sm:$0xff]
        %v2951 = vld [vmem:[%s2441 + $0x158] sm:$0xff]
        %v2952 = vld [vmem:[%s2441 + $0x168] sm:$0xff]
        %v2953 = vld [vmem:[%s2441 + $0x170] sm:$0xff]
        %2986 = vrot.lane.b32.xlu0 %v2922, 12
        %v2987 = vpop.permute.xlu0 %2986
        %2988 = vrot.lane.b32.xlu0 %v2923, 12
        %v2989 = vpop.permute.xlu0 %2988
        %2990 = vrot.lane.b32.xlu0 %v2924, 12
        %v2991 = vpop.permute.xlu0 %2990
        %2992 = vrot.lane.b32.xlu0 %v2925, 12
        %v2993 = vpop.permute.xlu0 %2992
        %2994 = vrot.lane.b32.xlu0 %v2926, 12
        %v2995 = vpop.permute.xlu0 %2994
        %2996 = vrot.lane.b32.xlu0 %v2927, 12
        %v2997 = vpop.permute.xlu0 %2996
        %2998 = vrot.lane.b32.xlu0 %v2928, 12
        %v2999 = vpop.permute.xlu0 %2998
        %3000 = vrot.lane.b32.xlu0 %v2929, 12
        %v3001 = vpop.permute.xlu0 %3000
        %3002 = vrot.lane.b32.xlu0 %v2930, 12
        %v3003 = vpop.permute.xlu0 %3002
        %3004 = vrot.lane.b32.xlu0 %v2931, 12
        %v3005 = vpop.permute.xlu0 %3004
        %3006 = vrot.lane.b32.xlu0 %v2932, 12
        %v3007 = vpop.permute.xlu0 %3006
        %3008 = vrot.lane.b32.xlu0 %v2933, 12
        %v3009 = vpop.permute.xlu0 %3008
        %3010 = vrot.lane.b32.xlu0 %v2934, 12
        %v3011 = vpop.permute.xlu0 %3010
        %3012 = vrot.lane.b32.xlu0 %v2935, 12
        %v3013 = vpop.permute.xlu0 %3012
        %3014 = vrot.lane.b32.xlu0 %v2936, 12
        %v3015 = vpop.permute.xlu0 %3014
        %3016 = vrot.lane.b32.xlu0 %v2937, 12
        %v3017 = vpop.permute.xlu0 %3016
        %3018 = vrot.lane.b32.xlu0 %v2938, 12
        %v3019 = vpop.permute.xlu0 %3018
        %3020 = vrot.lane.b32.xlu0 %v2939, 12
        %v3021 = vpop.permute.xlu0 %3020
        %3022 = vrot.lane.b32.xlu0 %v2940, 12
        %v3023 = vpop.permute.xlu0 %3022
        %3024 = vrot.lane.b32.xlu0 %v2941, 12
        %v3025 = vpop.permute.xlu0 %3024
        %3026 = vrot.lane.b32.xlu0 %v2942, 12
        %v3027 = vpop.permute.xlu0 %3026
        %3028 = vrot.lane.b32.xlu0 %v2943, 12
        %v3029 = vpop.permute.xlu0 %3028
        %3030 = vrot.lane.b32.xlu0 %v2944, 12
        %v3031 = vpop.permute.xlu0 %3030
        %3032 = vrot.lane.b32.xlu0 %v2945, 12
        %v3033 = vpop.permute.xlu0 %3032
        %3034 = vrot.lane.b32.xlu0 %v2946, 12
        %v3035 = vpop.permute.xlu0 %3034
        %3036 = vrot.lane.b32.xlu0 %v2947, 12
        %v3037 = vpop.permute.xlu0 %3036
        %3038 = vrot.lane.b32.xlu0 %v2948, 12
        %v3039 = vpop.permute.xlu0 %3038
        %3040 = vrot.lane.b32.xlu0 %v2949, 12
        %v3041 = vpop.permute.xlu0 %3040
        %3042 = vrot.lane.b32.xlu0 %v2950, 12
        %v3043 = vpop.permute.xlu0 %3042
        %3044 = vrot.lane.b32.xlu0 %v2951, 12
        %v3045 = vpop.permute.xlu0 %3044
        %3046 = vrot.lane.b32.xlu0 %v2952, 12
        %v3047 = vpop.permute.xlu0 %3046
        %3048 = vrot.lane.b32.xlu0 %v2953, 12
        %v3049 = vpop.permute.xlu0 %3048
        %3082 = vst.msk [vmem:[#allocation5] sm:$0xff] %vm986, %v2987
        %3083 = vst.msk [vmem:[#allocation5 + $0x8] sm:$0xff] %vm986, %v2989
        %3084 = vst.msk [vmem:[#allocation5 + $0x10] sm:$0xff] %vm986, %v2991
        %3085 = vst.msk [vmem:[#allocation5 + $0x18] sm:$0xff] %vm986, %v2993
        %3086 = vst.msk [vmem:[#allocation5 + $0x20] sm:$0xff] %vm986, %v2995
        %3087 = vst.msk [vmem:[#allocation5 + $0x28] sm:$0xff] %vm986, %v2997
        %3088 = vst.msk [vmem:[#allocation5 + $0x30] sm:$0xff] %vm986, %v2999
        %3089 = vst.msk [vmem:[#allocation5 + $0x38] sm:$0xff] %vm986, %v3001
        %3090 = vst.msk [vmem:[#allocation5 + $0x40] sm:$0xff] %vm986, %v3003
        %3091 = vst.msk [vmem:[#allocation5 + $0x48] sm:$0xff] %vm986, %v3005
        %3092 = vst.msk [vmem:[#allocation5 + $0x50] sm:$0xff] %vm986, %v3007
        %3093 = vst.msk [vmem:[#allocation5 + $0x58] sm:$0xff] %vm986, %v3009
        %3094 = vst.msk [vmem:[#allocation5 + $0x60] sm:$0xff] %vm986, %v3011
        %3095 = vst.msk [vmem:[#allocation5 + $0x68] sm:$0xff] %vm986, %v3013
        %3096 = vst.msk [vmem:[#allocation5 + $0x70] sm:$0xff] %vm986, %v3015
        %3097 = vst.msk [vmem:[#allocation5 + $0x78] sm:$0xff] %vm986, %v3017
        %3098 = vst.msk [vmem:[#allocation5 + $0x80] sm:$0xff] %vm986, %v3019
        %3099 = vst.msk [vmem:[#allocation5 + $0x88] sm:$0xff] %vm986, %v3021
        %3100 = vst.msk [vmem:[#allocation5 + $0x90] sm:$0xff] %vm986, %v3023
        %3101 = vst.msk [vmem:[#allocation5 + $0x98] sm:$0xff] %vm986, %v3025
        %3102 = vst.msk [vmem:[#allocation5 + $0xa0] sm:$0xff] %vm986, %v3027
        %3103 = vst.msk [vmem:[#allocation5 + $0xa8] sm:$0xff] %vm986, %v3029
        %3104 = vst.msk [vmem:[#allocation5 + $0xb0] sm:$0xff] %vm986, %v3031
        %3105 = vst.msk [vmem:[#allocation5 + $0xb8] sm:$0xff] %vm986, %v3033
        %3106 = vst.msk [vmem:[#allocation5 + $0xc0] sm:$0xff] %vm986, %v3035
        %3107 = vst.msk [vmem:[#allocation5 + $0xc8] sm:$0xff] %vm986, %v3037
        %3108 = vst.msk [vmem:[#allocation5 + $0xd0] sm:$0xff] %vm986, %v3039
        %3109 = vst.msk [vmem:[#allocation5 + $0xd8] sm:$0xff] %vm986, %v3041
        %3110 = vst.msk [vmem:[#allocation5 + $0xe0] sm:$0xff] %vm986, %v3043
        %3111 = vst.msk [vmem:[#allocation5 + $0xe8] sm:$0xff] %vm986, %v3045
        %3112 = vst.msk [vmem:[#allocation5 + $0xf0] sm:$0xff] %vm986, %v3047
        %3113 = vst.msk [vmem:[#allocation5 + $0xf8] sm:$0xff] %vm986, %v3049
        %v3114 = vld [vmem:[%s2441 + $0x1] sm:$0xff]
        %v3115 = vld [vmem:[%s2441 + $0x9] sm:$0xff]
        %v3116 = vld [vmem:[%s2441 + $0x19] sm:$0xff]
        %v3117 = vld [vmem:[%s2441 + $0x21] sm:$0xff]
        %v3118 = vld [vmem:[%s2441 + $0x31] sm:$0xff]
        %v3119 = vld [vmem:[%s2441 + $0x39] sm:$0xff]
        %v3120 = vld [vmem:[%s2441 + $0x49] sm:$0xff]
        %v3121 = vld [vmem:[%s2441 + $0x51] sm:$0xff]
        %v3122 = vld [vmem:[%s2441 + $0x61] sm:$0xff]
        %v3123 = vld [vmem:[%s2441 + $0x69] sm:$0xff]
        %v3124 = vld [vmem:[%s2441 + $0x79] sm:$0xff]
        %v3125 = vld [vmem:[%s2441 + $0x81] sm:$0xff]
        %v3126 = vld [vmem:[%s2441 + $0x91] sm:$0xff]
        %v3127 = vld [vmem:[%s2441 + $0x99] sm:$0xff]
        %v3128 = vld [vmem:[%s2441 + $0xa9] sm:$0xff]
        %v3129 = vld [vmem:[%s2441 + $0xb1] sm:$0xff]
        %v3130 = vld [vmem:[%s2441 + $0xc1] sm:$0xff]
        %v3131 = vld [vmem:[%s2441 + $0xc9] sm:$0xff]
        %v3132 = vld [vmem:[%s2441 + $0xd9] sm:$0xff]
        %v3133 = vld [vmem:[%s2441 + $0xe1] sm:$0xff]
        %v3134 = vld [vmem:[%s2441 + $0xf1] sm:$0xff]
        %v3135 = vld [vmem:[%s2441 + $0xf9] sm:$0xff]
        %v3136 = vld [vmem:[%s2441 + $0x109] sm:$0xff]
        %v3137 = vld [vmem:[%s2441 + $0x111] sm:$0xff]
        %v3138 = vld [vmem:[%s2441 + $0x121] sm:$0xff]
        %v3139 = vld [vmem:[%s2441 + $0x129] sm:$0xff]
        %v3140 = vld [vmem:[%s2441 + $0x139] sm:$0xff]
        %v3141 = vld [vmem:[%s2441 + $0x141] sm:$0xff]
        %v3142 = vld [vmem:[%s2441 + $0x151] sm:$0xff]
        %v3143 = vld [vmem:[%s2441 + $0x159] sm:$0xff]
        %v3144 = vld [vmem:[%s2441 + $0x169] sm:$0xff]
        %v3145 = vld [vmem:[%s2441 + $0x171] sm:$0xff]
        %3178 = vrot.lane.b32.xlu0 %v3114, 16
        %v3179 = vpop.permute.xlu0 %3178
        %3180 = vrot.lane.b32.xlu0 %v3115, 16
        %v3181 = vpop.permute.xlu0 %3180
        %3182 = vrot.lane.b32.xlu0 %v3116, 16
        %v3183 = vpop.permute.xlu0 %3182
        %3184 = vrot.lane.b32.xlu0 %v3117, 16
        %v3185 = vpop.permute.xlu0 %3184
        %3186 = vrot.lane.b32.xlu0 %v3118, 16
        %v3187 = vpop.permute.xlu0 %3186
        %3188 = vrot.lane.b32.xlu0 %v3119, 16
        %v3189 = vpop.permute.xlu0 %3188
        %3190 = vrot.lane.b32.xlu0 %v3120, 16
        %v3191 = vpop.permute.xlu0 %3190
        %3192 = vrot.lane.b32.xlu0 %v3121, 16
        %v3193 = vpop.permute.xlu0 %3192
        %3194 = vrot.lane.b32.xlu0 %v3122, 16
        %v3195 = vpop.permute.xlu0 %3194
        %3196 = vrot.lane.b32.xlu0 %v3123, 16
        %v3197 = vpop.permute.xlu0 %3196
        %3198 = vrot.lane.b32.xlu0 %v3124, 16
        %v3199 = vpop.permute.xlu0 %3198
        %3200 = vrot.lane.b32.xlu0 %v3125, 16
        %v3201 = vpop.permute.xlu0 %3200
        %3202 = vrot.lane.b32.xlu0 %v3126, 16
        %v3203 = vpop.permute.xlu0 %3202
        %3204 = vrot.lane.b32.xlu0 %v3127, 16
        %v3205 = vpop.permute.xlu0 %3204
        %3206 = vrot.lane.b32.xlu0 %v3128, 16
        %v3207 = vpop.permute.xlu0 %3206
        %3208 = vrot.lane.b32.xlu0 %v3129, 16
        %v3209 = vpop.permute.xlu0 %3208
        %3210 = vrot.lane.b32.xlu0 %v3130, 16
        %v3211 = vpop.permute.xlu0 %3210
        %3212 = vrot.lane.b32.xlu0 %v3131, 16
        %v3213 = vpop.permute.xlu0 %3212
        %3214 = vrot.lane.b32.xlu0 %v3132, 16
        %v3215 = vpop.permute.xlu0 %3214
        %3216 = vrot.lane.b32.xlu0 %v3133, 16
        %v3217 = vpop.permute.xlu0 %3216
        %3218 = vrot.lane.b32.xlu0 %v3134, 16
        %v3219 = vpop.permute.xlu0 %3218
        %3220 = vrot.lane.b32.xlu0 %v3135, 16
        %v3221 = vpop.permute.xlu0 %3220
        %3222 = vrot.lane.b32.xlu0 %v3136, 16
        %v3223 = vpop.permute.xlu0 %3222
        %3224 = vrot.lane.b32.xlu0 %v3137, 16
        %v3225 = vpop.permute.xlu0 %3224
        %3226 = vrot.lane.b32.xlu0 %v3138, 16
        %v3227 = vpop.permute.xlu0 %3226
        %3228 = vrot.lane.b32.xlu0 %v3139, 16
        %v3229 = vpop.permute.xlu0 %3228
        %3230 = vrot.lane.b32.xlu0 %v3140, 16
        %v3231 = vpop.permute.xlu0 %3230
        %3232 = vrot.lane.b32.xlu0 %v3141, 16
        %v3233 = vpop.permute.xlu0 %3232
        %3234 = vrot.lane.b32.xlu0 %v3142, 16
        %v3235 = vpop.permute.xlu0 %3234
        %3236 = vrot.lane.b32.xlu0 %v3143, 16
        %v3237 = vpop.permute.xlu0 %3236
        %3238 = vrot.lane.b32.xlu0 %v3144, 16
        %v3239 = vpop.permute.xlu0 %3238
        %3240 = vrot.lane.b32.xlu0 %v3145, 16
        %v3241 = vpop.permute.xlu0 %3240
        %3274 = vst.msk [vmem:[#allocation5] sm:$0xff] %vm1179, %v3179
        %3275 = vst.msk [vmem:[#allocation5 + $0x8] sm:$0xff] %vm1179, %v3181
        %3276 = vst.msk [vmem:[#allocation5 + $0x10] sm:$0xff] %vm1179, %v3183
        %3277 = vst.msk [vmem:[#allocation5 + $0x18] sm:$0xff] %vm1179, %v3185
        %3278 = vst.msk [vmem:[#allocation5 + $0x20] sm:$0xff] %vm1179, %v3187
        %3279 = vst.msk [vmem:[#allocation5 + $0x28] sm:$0xff] %vm1179, %v3189
        %3280 = vst.msk [vmem:[#allocation5 + $0x30] sm:$0xff] %vm1179, %v3191
        %3281 = vst.msk [vmem:[#allocation5 + $0x38] sm:$0xff] %vm1179, %v3193
        %3282 = vst.msk [vmem:[#allocation5 + $0x40] sm:$0xff] %vm1179, %v3195
        %3283 = vst.msk [vmem:[#allocation5 + $0x48] sm:$0xff] %vm1179, %v3197
        %3284 = vst.msk [vmem:[#allocation5 + $0x50] sm:$0xff] %vm1179, %v3199
        %3285 = vst.msk [vmem:[#allocation5 + $0x58] sm:$0xff] %vm1179, %v3201
        %3286 = vst.msk [vmem:[#allocation5 + $0x60] sm:$0xff] %vm1179, %v3203
        %3287 = vst.msk [vmem:[#allocation5 + $0x68] sm:$0xff] %vm1179, %v3205
        %3288 = vst.msk [vmem:[#allocation5 + $0x70] sm:$0xff] %vm1179, %v3207
        %3289 = vst.msk [vmem:[#allocation5 + $0x78] sm:$0xff] %vm1179, %v3209
        %3290 = vst.msk [vmem:[#allocation5 + $0x80] sm:$0xff] %vm1179, %v3211
        %3291 = vst.msk [vmem:[#allocation5 + $0x88] sm:$0xff] %vm1179, %v3213
        %3292 = vst.msk [vmem:[#allocation5 + $0x90] sm:$0xff] %vm1179, %v3215
        %3293 = vst.msk [vmem:[#allocation5 + $0x98] sm:$0xff] %vm1179, %v3217
        %3294 = vst.msk [vmem:[#allocation5 + $0xa0] sm:$0xff] %vm1179, %v3219
        %3295 = vst.msk [vmem:[#allocation5 + $0xa8] sm:$0xff] %vm1179, %v3221
        %3296 = vst.msk [vmem:[#allocation5 + $0xb0] sm:$0xff] %vm1179, %v3223
        %3297 = vst.msk [vmem:[#allocation5 + $0xb8] sm:$0xff] %vm1179, %v3225
        %3298 = vst.msk [vmem:[#allocation5 + $0xc0] sm:$0xff] %vm1179, %v3227
        %3299 = vst.msk [vmem:[#allocation5 + $0xc8] sm:$0xff] %vm1179, %v3229
        %3300 = vst.msk [vmem:[#allocation5 + $0xd0] sm:$0xff] %vm1179, %v3231
        %3301 = vst.msk [vmem:[#allocation5 + $0xd8] sm:$0xff] %vm1179, %v3233
        %3302 = vst.msk [vmem:[#allocation5 + $0xe0] sm:$0xff] %vm1179, %v3235
        %3303 = vst.msk [vmem:[#allocation5 + $0xe8] sm:$0xff] %vm1179, %v3237
        %3304 = vst.msk [vmem:[#allocation5 + $0xf0] sm:$0xff] %vm1179, %v3239
        %3305 = vst.msk [vmem:[#allocation5 + $0xf8] sm:$0xff] %vm1179, %v3241
        %v3306 = vld [vmem:[%s2441 + $0x2] sm:$0xff]
        %v3307 = vld [vmem:[%s2441 + $0xa] sm:$0xff]
        %v3308 = vld [vmem:[%s2441 + $0x1a] sm:$0xff]
        %v3309 = vld [vmem:[%s2441 + $0x22] sm:$0xff]
        %v3310 = vld [vmem:[%s2441 + $0x32] sm:$0xff]
        %v3311 = vld [vmem:[%s2441 + $0x3a] sm:$0xff]
        %v3312 = vld [vmem:[%s2441 + $0x4a] sm:$0xff]
        %v3313 = vld [vmem:[%s2441 + $0x52] sm:$0xff]
        %v3314 = vld [vmem:[%s2441 + $0x62] sm:$0xff]
        %v3315 = vld [vmem:[%s2441 + $0x6a] sm:$0xff]
        %v3316 = vld [vmem:[%s2441 + $0x7a] sm:$0xff]
        %v3317 = vld [vmem:[%s2441 + $0x82] sm:$0xff]
        %v3318 = vld [vmem:[%s2441 + $0x92] sm:$0xff]
        %v3319 = vld [vmem:[%s2441 + $0x9a] sm:$0xff]
        %v3320 = vld [vmem:[%s2441 + $0xaa] sm:$0xff]
        %v3321 = vld [vmem:[%s2441 + $0xb2] sm:$0xff]
        %v3322 = vld [vmem:[%s2441 + $0xc2] sm:$0xff]
        %v3323 = vld [vmem:[%s2441 + $0xca] sm:$0xff]
        %v3324 = vld [vmem:[%s2441 + $0xda] sm:$0xff]
        %v3325 = vld [vmem:[%s2441 + $0xe2] sm:$0xff]
        %v3326 = vld [vmem:[%s2441 + $0xf2] sm:$0xff]
        %v3327 = vld [vmem:[%s2441 + $0xfa] sm:$0xff]
        %v3328 = vld [vmem:[%s2441 + $0x10a] sm:$0xff]
        %v3329 = vld [vmem:[%s2441 + $0x112] sm:$0xff]
        %v3330 = vld [vmem:[%s2441 + $0x122] sm:$0xff]
        %v3331 = vld [vmem:[%s2441 + $0x12a] sm:$0xff]
        %v3332 = vld [vmem:[%s2441 + $0x13a] sm:$0xff]
        %v3333 = vld [vmem:[%s2441 + $0x142] sm:$0xff]
        %v3334 = vld [vmem:[%s2441 + $0x152] sm:$0xff]
        %v3335 = vld [vmem:[%s2441 + $0x15a] sm:$0xff]
        %v3336 = vld [vmem:[%s2441 + $0x16a] sm:$0xff]
        %v3337 = vld [vmem:[%s2441 + $0x172] sm:$0xff]
        %3370 = vrot.lane.b32.xlu0 %v3306, 20
        %v3371 = vpop.permute.xlu0 %3370
        %3372 = vrot.lane.b32.xlu0 %v3307, 20
        %v3373 = vpop.permute.xlu0 %3372
        %3374 = vrot.lane.b32.xlu0 %v3308, 20
        %v3375 = vpop.permute.xlu0 %3374
        %3376 = vrot.lane.b32.xlu0 %v3309, 20
        %v3377 = vpop.permute.xlu0 %3376
        %3378 = vrot.lane.b32.xlu0 %v3310, 20
        %v3379 = vpop.permute.xlu0 %3378
        %3380 = vrot.lane.b32.xlu0 %v3311, 20
        %v3381 = vpop.permute.xlu0 %3380
        %3382 = vrot.lane.b32.xlu0 %v3312, 20
        %v3383 = vpop.permute.xlu0 %3382
        %3384 = vrot.lane.b32.xlu0 %v3313, 20
        %v3385 = vpop.permute.xlu0 %3384
        %3386 = vrot.lane.b32.xlu0 %v3314, 20
        %v3387 = vpop.permute.xlu0 %3386
        %3388 = vrot.lane.b32.xlu0 %v3315, 20
        %v3389 = vpop.permute.xlu0 %3388
        %3390 = vrot.lane.b32.xlu0 %v3316, 20
        %v3391 = vpop.permute.xlu0 %3390
        %3392 = vrot.lane.b32.xlu0 %v3317, 20
        %v3393 = vpop.permute.xlu0 %3392
        %3394 = vrot.lane.b32.xlu0 %v3318, 20
        %v3395 = vpop.permute.xlu0 %3394
        %3396 = vrot.lane.b32.xlu0 %v3319, 20
        %v3397 = vpop.permute.xlu0 %3396
        %3398 = vrot.lane.b32.xlu0 %v3320, 20
        %v3399 = vpop.permute.xlu0 %3398
        %3400 = vrot.lane.b32.xlu0 %v3321, 20
        %v3401 = vpop.permute.xlu0 %3400
        %3402 = vrot.lane.b32.xlu0 %v3322, 20
        %v3403 = vpop.permute.xlu0 %3402
        %3404 = vrot.lane.b32.xlu0 %v3323, 20
        %v3405 = vpop.permute.xlu0 %3404
        %3406 = vrot.lane.b32.xlu0 %v3324, 20
        %v3407 = vpop.permute.xlu0 %3406
        %3408 = vrot.lane.b32.xlu0 %v3325, 20
        %v3409 = vpop.permute.xlu0 %3408
        %3410 = vrot.lane.b32.xlu0 %v3326, 20
        %v3411 = vpop.permute.xlu0 %3410
        %3412 = vrot.lane.b32.xlu0 %v3327, 20
        %v3413 = vpop.permute.xlu0 %3412
        %3414 = vrot.lane.b32.xlu0 %v3328, 20
        %v3415 = vpop.permute.xlu0 %3414
        %3416 = vrot.lane.b32.xlu0 %v3329, 20
        %v3417 = vpop.permute.xlu0 %3416
        %3418 = vrot.lane.b32.xlu0 %v3330, 20
        %v3419 = vpop.permute.xlu0 %3418
        %3420 = vrot.lane.b32.xlu0 %v3331, 20
        %v3421 = vpop.permute.xlu0 %3420
        %3422 = vrot.lane.b32.xlu0 %v3332, 20
        %v3423 = vpop.permute.xlu0 %3422
        %3424 = vrot.lane.b32.xlu0 %v3333, 20
        %v3425 = vpop.permute.xlu0 %3424
        %3426 = vrot.lane.b32.xlu0 %v3334, 20
        %v3427 = vpop.permute.xlu0 %3426
        %3428 = vrot.lane.b32.xlu0 %v3335, 20
        %v3429 = vpop.permute.xlu0 %3428
        %3430 = vrot.lane.b32.xlu0 %v3336, 20
        %v3431 = vpop.permute.xlu0 %3430
        %3432 = vrot.lane.b32.xlu0 %v3337, 20
        %v3433 = vpop.permute.xlu0 %3432
        %3466 = vst.msk [vmem:[#allocation5] sm:$0xff] %vm1372, %v3371
        %3467 = vst.msk [vmem:[#allocation5 + $0x8] sm:$0xff] %vm1372, %v3373
        %3468 = vst.msk [vmem:[#allocation5 + $0x10] sm:$0xff] %vm1372, %v3375
        %3469 = vst.msk [vmem:[#allocation5 + $0x18] sm:$0xff] %vm1372, %v3377
        %3470 = vst.msk [vmem:[#allocation5 + $0x20] sm:$0xff] %vm1372, %v3379
        %3471 = vst.msk [vmem:[#allocation5 + $0x28] sm:$0xff] %vm1372, %v3381
        %3472 = vst.msk [vmem:[#allocation5 + $0x30] sm:$0xff] %vm1372, %v3383
        %3473 = vst.msk [vmem:[#allocation5 + $0x38] sm:$0xff] %vm1372, %v3385
        %3474 = vst.msk [vmem:[#allocation5 + $0x40] sm:$0xff] %vm1372, %v3387
        %3475 = vst.msk [vmem:[#allocation5 + $0x48] sm:$0xff] %vm1372, %v3389
        %3476 = vst.msk [vmem:[#allocation5 + $0x50] sm:$0xff] %vm1372, %v3391
        %3477 = vst.msk [vmem:[#allocation5 + $0x58] sm:$0xff] %vm1372, %v3393
        %3478 = vst.msk [vmem:[#allocation5 + $0x60] sm:$0xff] %vm1372, %v3395
        %3479 = vst.msk [vmem:[#allocation5 + $0x68] sm:$0xff] %vm1372, %v3397
        %3480 = vst.msk [vmem:[#allocation5 + $0x70] sm:$0xff] %vm1372, %v3399
        %3481 = vst.msk [vmem:[#allocation5 + $0x78] sm:$0xff] %vm1372, %v3401
        %3482 = vst.msk [vmem:[#allocation5 + $0x80] sm:$0xff] %vm1372, %v3403
        %3483 = vst.msk [vmem:[#allocation5 + $0x88] sm:$0xff] %vm1372, %v3405
        %3484 = vst.msk [vmem:[#allocation5 + $0x90] sm:$0xff] %vm1372, %v3407
        %3485 = vst.msk [vmem:[#allocation5 + $0x98] sm:$0xff] %vm1372, %v3409
        %3486 = vst.msk [vmem:[#allocation5 + $0xa0] sm:$0xff] %vm1372, %v3411
        %3487 = vst.msk [vmem:[#allocation5 + $0xa8] sm:$0xff] %vm1372, %v3413
        %3488 = vst.msk [vmem:[#allocation5 + $0xb0] sm:$0xff] %vm1372, %v3415
        %3489 = vst.msk [vmem:[#allocation5 + $0xb8] sm:$0xff] %vm1372, %v3417
        %3490 = vst.msk [vmem:[#allocation5 + $0xc0] sm:$0xff] %vm1372, %v3419
        %3491 = vst.msk [vmem:[#allocation5 + $0xc8] sm:$0xff] %vm1372, %v3421
        %3492 = vst.msk [vmem:[#allocation5 + $0xd0] sm:$0xff] %vm1372, %v3423
        %3493 = vst.msk [vmem:[#allocation5 + $0xd8] sm:$0xff] %vm1372, %v3425
        %3494 = vst.msk [vmem:[#allocation5 + $0xe0] sm:$0xff] %vm1372, %v3427
        %3495 = vst.msk [vmem:[#allocation5 + $0xe8] sm:$0xff] %vm1372, %v3429
        %3496 = vst.msk [vmem:[#allocation5 + $0xf0] sm:$0xff] %vm1372, %v3431
        %3497 = vst.msk [vmem:[#allocation5 + $0xf8] sm:$0xff] %vm1372, %v3433
        %s3498 = scalar_lea.vmem [#allocation4], 48
        %v3499 = vld [vmem:[%s3498] sm:$0xff]
        %v3500 = vld [vmem:[%s3498 + $0x8] sm:$0xff]
        %v3501 = vld [vmem:[%s3498 + $0x18] sm:$0xff]
        %v3502 = vld [vmem:[%s3498 + $0x20] sm:$0xff]
        %v3503 = vld [vmem:[%s3498 + $0x30] sm:$0xff]
        %v3504 = vld [vmem:[%s3498 + $0x38] sm:$0xff]
        %v3505 = vld [vmem:[%s3498 + $0x48] sm:$0xff]
        %v3506 = vld [vmem:[%s3498 + $0x50] sm:$0xff]
        %v3507 = vld [vmem:[%s3498 + $0x60] sm:$0xff]
        %v3508 = vld [vmem:[%s3498 + $0x68] sm:$0xff]
        %v3509 = vld [vmem:[%s3498 + $0x78] sm:$0xff]
        %v3510 = vld [vmem:[%s3498 + $0x80] sm:$0xff]
        %v3511 = vld [vmem:[%s3498 + $0x90] sm:$0xff]
        %v3512 = vld [vmem:[%s3498 + $0x98] sm:$0xff]
        %v3513 = vld [vmem:[%s3498 + $0xa8] sm:$0xff]
        %v3514 = vld [vmem:[%s3498 + $0xb0] sm:$0xff]
        %v3515 = vld [vmem:[%s3498 + $0xc0] sm:$0xff]
        %v3516 = vld [vmem:[%s3498 + $0xc8] sm:$0xff]
        %v3517 = vld [vmem:[%s3498 + $0xd8] sm:$0xff]
        %v3518 = vld [vmem:[%s3498 + $0xe0] sm:$0xff]
        %v3519 = vld [vmem:[%s3498 + $0xf0] sm:$0xff]
        %v3520 = vld [vmem:[%s3498 + $0xf8] sm:$0xff]
        %v3521 = vld [vmem:[%s3498 + $0x108] sm:$0xff]
        %v3522 = vld [vmem:[%s3498 + $0x110] sm:$0xff]
        %v3523 = vld [vmem:[%s3498 + $0x120] sm:$0xff]
        %v3524 = vld [vmem:[%s3498 + $0x128] sm:$0xff]
        %v3525 = vld [vmem:[%s3498 + $0x138] sm:$0xff]
        %v3526 = vld [vmem:[%s3498 + $0x140] sm:$0xff]
        %v3527 = vld [vmem:[%s3498 + $0x150] sm:$0xff]
        %v3528 = vld [vmem:[%s3498 + $0x158] sm:$0xff]
        %v3529 = vld [vmem:[%s3498 + $0x168] sm:$0xff]
        %v3530 = vld [vmem:[%s3498 + $0x170] sm:$0xff]
        %3563 = vrot.lane.b32.xlu0 %v3499, 24
        %v3564 = vpop.permute.xlu0 %3563
        %3565 = vrot.lane.b32.xlu0 %v3500, 24
        %v3566 = vpop.permute.xlu0 %3565
        %3567 = vrot.lane.b32.xlu0 %v3501, 24
        %v3568 = vpop.permute.xlu0 %3567
        %3569 = vrot.lane.b32.xlu0 %v3502, 24
        %v3570 = vpop.permute.xlu0 %3569
        %3571 = vrot.lane.b32.xlu0 %v3503, 24
        %v3572 = vpop.permute.xlu0 %3571
        %3573 = vrot.lane.b32.xlu0 %v3504, 24
        %v3574 = vpop.permute.xlu0 %3573
        %3575 = vrot.lane.b32.xlu0 %v3505, 24
        %v3576 = vpop.permute.xlu0 %3575
        %3577 = vrot.lane.b32.xlu0 %v3506, 24
        %v3578 = vpop.permute.xlu0 %3577
        %3579 = vrot.lane.b32.xlu0 %v3507, 24
        %v3580 = vpop.permute.xlu0 %3579
        %3581 = vrot.lane.b32.xlu0 %v3508, 24
        %v3582 = vpop.permute.xlu0 %3581
        %3583 = vrot.lane.b32.xlu0 %v3509, 24
        %v3584 = vpop.permute.xlu0 %3583
        %3585 = vrot.lane.b32.xlu0 %v3510, 24
        %v3586 = vpop.permute.xlu0 %3585
        %3587 = vrot.lane.b32.xlu0 %v3511, 24
        %v3588 = vpop.permute.xlu0 %3587
        %3589 = vrot.lane.b32.xlu0 %v3512, 24
        %v3590 = vpop.permute.xlu0 %3589
        %3591 = vrot.lane.b32.xlu0 %v3513, 24
        %v3592 = vpop.permute.xlu0 %3591
        %3593 = vrot.lane.b32.xlu0 %v3514, 24
        %v3594 = vpop.permute.xlu0 %3593
        %3595 = vrot.lane.b32.xlu0 %v3515, 24
        %v3596 = vpop.permute.xlu0 %3595
        %3597 = vrot.lane.b32.xlu0 %v3516, 24
        %v3598 = vpop.permute.xlu0 %3597
        %3599 = vrot.lane.b32.xlu0 %v3517, 24
        %v3600 = vpop.permute.xlu0 %3599
        %3601 = vrot.lane.b32.xlu0 %v3518, 24
        %v3602 = vpop.permute.xlu0 %3601
        %3603 = vrot.lane.b32.xlu0 %v3519, 24
        %v3604 = vpop.permute.xlu0 %3603
        %3605 = vrot.lane.b32.xlu0 %v3520, 24
        %v3606 = vpop.permute.xlu0 %3605
        %3607 = vrot.lane.b32.xlu0 %v3521, 24
        %v3608 = vpop.permute.xlu0 %3607
        %3609 = vrot.lane.b32.xlu0 %v3522, 24
        %v3610 = vpop.permute.xlu0 %3609
        %3611 = vrot.lane.b32.xlu0 %v3523, 24
        %v3612 = vpop.permute.xlu0 %3611
        %3613 = vrot.lane.b32.xlu0 %v3524, 24
        %v3614 = vpop.permute.xlu0 %3613
        %3615 = vrot.lane.b32.xlu0 %v3525, 24
        %v3616 = vpop.permute.xlu0 %3615
        %3617 = vrot.lane.b32.xlu0 %v3526, 24
        %v3618 = vpop.permute.xlu0 %3617
        %3619 = vrot.lane.b32.xlu0 %v3527, 24
        %v3620 = vpop.permute.xlu0 %3619
        %3621 = vrot.lane.b32.xlu0 %v3528, 24
        %v3622 = vpop.permute.xlu0 %3621
        %3623 = vrot.lane.b32.xlu0 %v3529, 24
        %v3624 = vpop.permute.xlu0 %3623
        %3625 = vrot.lane.b32.xlu0 %v3530, 24
        %v3626 = vpop.permute.xlu0 %3625
        %3659 = vst.msk [vmem:[#allocation5] sm:$0xff] %vm1566, %v3564
        %3660 = vst.msk [vmem:[#allocation5 + $0x8] sm:$0xff] %vm1566, %v3566
        %3661 = vst.msk [vmem:[#allocation5 + $0x10] sm:$0xff] %vm1566, %v3568
        %3662 = vst.msk [vmem:[#allocation5 + $0x18] sm:$0xff] %vm1566, %v3570
        %3663 = vst.msk [vmem:[#allocation5 + $0x20] sm:$0xff] %vm1566, %v3572
        %3664 = vst.msk [vmem:[#allocation5 + $0x28] sm:$0xff] %vm1566, %v3574
        %3665 = vst.msk [vmem:[#allocation5 + $0x30] sm:$0xff] %vm1566, %v3576
        %3666 = vst.msk [vmem:[#allocation5 + $0x38] sm:$0xff] %vm1566, %v3578
        %3667 = vst.msk [vmem:[#allocation5 + $0x40] sm:$0xff] %vm1566, %v3580
        %3668 = vst.msk [vmem:[#allocation5 + $0x48] sm:$0xff] %vm1566, %v3582
        %3669 = vst.msk [vmem:[#allocation5 + $0x50] sm:$0xff] %vm1566, %v3584
        %3670 = vst.msk [vmem:[#allocation5 + $0x58] sm:$0xff] %vm1566, %v3586
        %3671 = vst.msk [vmem:[#allocation5 + $0x60] sm:$0xff] %vm1566, %v3588
        %3672 = vst.msk [vmem:[#allocation5 + $0x68] sm:$0xff] %vm1566, %v3590
        %3673 = vst.msk [vmem:[#allocation5 + $0x70] sm:$0xff] %vm1566, %v3592
        %3674 = vst.msk [vmem:[#allocation5 + $0x78] sm:$0xff] %vm1566, %v3594
        %3675 = vst.msk [vmem:[#allocation5 + $0x80] sm:$0xff] %vm1566, %v3596
        %3676 = vst.msk [vmem:[#allocation5 + $0x88] sm:$0xff] %vm1566, %v3598
        %3677 = vst.msk [vmem:[#allocation5 + $0x90] sm:$0xff] %vm1566, %v3600
        %3678 = vst.msk [vmem:[#allocation5 + $0x98] sm:$0xff] %vm1566, %v3602
        %3679 = vst.msk [vmem:[#allocation5 + $0xa0] sm:$0xff] %vm1566, %v3604
        %3680 = vst.msk [vmem:[#allocation5 + $0xa8] sm:$0xff] %vm1566, %v3606
        %3681 = vst.msk [vmem:[#allocation5 + $0xb0] sm:$0xff] %vm1566, %v3608
        %3682 = vst.msk [vmem:[#allocation5 + $0xb8] sm:$0xff] %vm1566, %v3610
        %3683 = vst.msk [vmem:[#allocation5 + $0xc0] sm:$0xff] %vm1566, %v3612
        %3684 = vst.msk [vmem:[#allocation5 + $0xc8] sm:$0xff] %vm1566, %v3614
        %3685 = vst.msk [vmem:[#allocation5 + $0xd0] sm:$0xff] %vm1566, %v3616
        %3686 = vst.msk [vmem:[#allocation5 + $0xd8] sm:$0xff] %vm1566, %v3618
        %3687 = vst.msk [vmem:[#allocation5 + $0xe0] sm:$0xff] %vm1566, %v3620
        %3688 = vst.msk [vmem:[#allocation5 + $0xe8] sm:$0xff] %vm1566, %v3622
        %3689 = vst.msk [vmem:[#allocation5 + $0xf0] sm:$0xff] %vm1566, %v3624
        %3690 = vst.msk [vmem:[#allocation5 + $0xf8] sm:$0xff] %vm1566, %v3626
        %v3691 = vld [vmem:[%s3498 + $0x1] sm:$0xff]
        %v3692 = vld [vmem:[%s3498 + $0x9] sm:$0xff]
        %v3693 = vld [vmem:[%s3498 + $0x19] sm:$0xff]
        %v3694 = vld [vmem:[%s3498 + $0x21] sm:$0xff]
        %v3695 = vld [vmem:[%s3498 + $0x31] sm:$0xff]
        %v3696 = vld [vmem:[%s3498 + $0x39] sm:$0xff]
        %v3697 = vld [vmem:[%s3498 + $0x49] sm:$0xff]
        %v3698 = vld [vmem:[%s3498 + $0x51] sm:$0xff]
        %v3699 = vld [vmem:[%s3498 + $0x61] sm:$0xff]
        %v3700 = vld [vmem:[%s3498 + $0x69] sm:$0xff]
        %v3701 = vld [vmem:[%s3498 + $0x79] sm:$0xff]
        %v3702 = vld [vmem:[%s3498 + $0x81] sm:$0xff]
        %v3703 = vld [vmem:[%s3498 + $0x91] sm:$0xff]
        %v3704 = vld [vmem:[%s3498 + $0x99] sm:$0xff]
        %v3705 = vld [vmem:[%s3498 + $0xa9] sm:$0xff]
        %v3706 = vld [vmem:[%s3498 + $0xb1] sm:$0xff]
        %v3707 = vld [vmem:[%s3498 + $0xc1] sm:$0xff]
        %v3708 = vld [vmem:[%s3498 + $0xc9] sm:$0xff]
        %v3709 = vld [vmem:[%s3498 + $0xd9] sm:$0xff]
        %v3710 = vld [vmem:[%s3498 + $0xe1] sm:$0xff]
        %v3711 = vld [vmem:[%s3498 + $0xf1] sm:$0xff]
        %v3712 = vld [vmem:[%s3498 + $0xf9] sm:$0xff]
        %v3713 = vld [vmem:[%s3498 + $0x109] sm:$0xff]
        %v3714 = vld [vmem:[%s3498 + $0x111] sm:$0xff]
        %v3715 = vld [vmem:[%s3498 + $0x121] sm:$0xff]
        %v3716 = vld [vmem:[%s3498 + $0x129] sm:$0xff]
        %v3717 = vld [vmem:[%s3498 + $0x139] sm:$0xff]
        %v3718 = vld [vmem:[%s3498 + $0x141] sm:$0xff]
        %v3719 = vld [vmem:[%s3498 + $0x151] sm:$0xff]
        %v3720 = vld [vmem:[%s3498 + $0x159] sm:$0xff]
        %v3721 = vld [vmem:[%s3498 + $0x169] sm:$0xff]
        %v3722 = vld [vmem:[%s3498 + $0x171] sm:$0xff]
        %3755 = vrot.lane.b32.xlu0 %v3691, 28
        %v3756 = vpop.permute.xlu0 %3755
        %3757 = vrot.lane.b32.xlu0 %v3692, 28
        %v3758 = vpop.permute.xlu0 %3757
        %3759 = vrot.lane.b32.xlu0 %v3693, 28
        %v3760 = vpop.permute.xlu0 %3759
        %3761 = vrot.lane.b32.xlu0 %v3694, 28
        %v3762 = vpop.permute.xlu0 %3761
        %3763 = vrot.lane.b32.xlu0 %v3695, 28
        %v3764 = vpop.permute.xlu0 %3763
        %3765 = vrot.lane.b32.xlu0 %v3696, 28
        %v3766 = vpop.permute.xlu0 %3765
        %3767 = vrot.lane.b32.xlu0 %v3697, 28
        %v3768 = vpop.permute.xlu0 %3767
        %3769 = vrot.lane.b32.xlu0 %v3698, 28
        %v3770 = vpop.permute.xlu0 %3769
        %3771 = vrot.lane.b32.xlu0 %v3699, 28
        %v3772 = vpop.permute.xlu0 %3771
        %3773 = vrot.lane.b32.xlu0 %v3700, 28
        %v3774 = vpop.permute.xlu0 %3773
        %3775 = vrot.lane.b32.xlu0 %v3701, 28
        %v3776 = vpop.permute.xlu0 %3775
        %3777 = vrot.lane.b32.xlu0 %v3702, 28
        %v3778 = vpop.permute.xlu0 %3777
        %3779 = vrot.lane.b32.xlu0 %v3703, 28
        %v3780 = vpop.permute.xlu0 %3779
        %3781 = vrot.lane.b32.xlu0 %v3704, 28
        %v3782 = vpop.permute.xlu0 %3781
        %3783 = vrot.lane.b32.xlu0 %v3705, 28
        %v3784 = vpop.permute.xlu0 %3783
        %3785 = vrot.lane.b32.xlu0 %v3706, 28
        %v3786 = vpop.permute.xlu0 %3785
        %3787 = vrot.lane.b32.xlu0 %v3707, 28
        %v3788 = vpop.permute.xlu0 %3787
        %3789 = vrot.lane.b32.xlu0 %v3708, 28
        %v3790 = vpop.permute.xlu0 %3789
        %3791 = vrot.lane.b32.xlu0 %v3709, 28
        %v3792 = vpop.permute.xlu0 %3791
        %3793 = vrot.lane.b32.xlu0 %v3710, 28
        %v3794 = vpop.permute.xlu0 %3793
        %3795 = vrot.lane.b32.xlu0 %v3711, 28
        %v3796 = vpop.permute.xlu0 %3795
        %3797 = vrot.lane.b32.xlu0 %v3712, 28
        %v3798 = vpop.permute.xlu0 %3797
        %3799 = vrot.lane.b32.xlu0 %v3713, 28
        %v3800 = vpop.permute.xlu0 %3799
        %3801 = vrot.lane.b32.xlu0 %v3714, 28
        %v3802 = vpop.permute.xlu0 %3801
        %3803 = vrot.lane.b32.xlu0 %v3715, 28
        %v3804 = vpop.permute.xlu0 %3803
        %3805 = vrot.lane.b32.xlu0 %v3716, 28
        %v3806 = vpop.permute.xlu0 %3805
        %3807 = vrot.lane.b32.xlu0 %v3717, 28
        %v3808 = vpop.permute.xlu0 %3807
        %3809 = vrot.lane.b32.xlu0 %v3718, 28
        %v3810 = vpop.permute.xlu0 %3809
        %3811 = vrot.lane.b32.xlu0 %v3719, 28
        %v3812 = vpop.permute.xlu0 %3811
        %3813 = vrot.lane.b32.xlu0 %v3720, 28
        %v3814 = vpop.permute.xlu0 %3813
        %3815 = vrot.lane.b32.xlu0 %v3721, 28
        %v3816 = vpop.permute.xlu0 %3815
        %3817 = vrot.lane.b32.xlu0 %v3722, 28
        %v3818 = vpop.permute.xlu0 %3817
        %3851 = vst.msk [vmem:[#allocation5] sm:$0xff] %vm1759, %v3756
        %3852 = vst.msk [vmem:[#allocation5 + $0x8] sm:$0xff] %vm1759, %v3758
        %3853 = vst.msk [vmem:[#allocation5 + $0x10] sm:$0xff] %vm1759, %v3760
        %3854 = vst.msk [vmem:[#allocation5 + $0x18] sm:$0xff] %vm1759, %v3762
        %3855 = vst.msk [vmem:[#allocation5 + $0x20] sm:$0xff] %vm1759, %v3764
        %3856 = vst.msk [vmem:[#allocation5 + $0x28] sm:$0xff] %vm1759, %v3766
        %3857 = vst.msk [vmem:[#allocation5 + $0x30] sm:$0xff] %vm1759, %v3768
        %3858 = vst.msk [vmem:[#allocation5 + $0x38] sm:$0xff] %vm1759, %v3770
        %3859 = vst.msk [vmem:[#allocation5 + $0x40] sm:$0xff] %vm1759, %v3772
        %3860 = vst.msk [vmem:[#allocation5 + $0x48] sm:$0xff] %vm1759, %v3774
        %3861 = vst.msk [vmem:[#allocation5 + $0x50] sm:$0xff] %vm1759, %v3776
        %3862 = vst.msk [vmem:[#allocation5 + $0x58] sm:$0xff] %vm1759, %v3778
        %3863 = vst.msk [vmem:[#allocation5 + $0x60] sm:$0xff] %vm1759, %v3780
        %3864 = vst.msk [vmem:[#allocation5 + $0x68] sm:$0xff] %vm1759, %v3782
        %3865 = vst.msk [vmem:[#allocation5 + $0x70] sm:$0xff] %vm1759, %v3784
        %3866 = vst.msk [vmem:[#allocation5 + $0x78] sm:$0xff] %vm1759, %v3786
        %3867 = vst.msk [vmem:[#allocation5 + $0x80] sm:$0xff] %vm1759, %v3788
        %3868 = vst.msk [vmem:[#allocation5 + $0x88] sm:$0xff] %vm1759, %v3790
        %3869 = vst.msk [vmem:[#allocation5 + $0x90] sm:$0xff] %vm1759, %v3792
        %3870 = vst.msk [vmem:[#allocation5 + $0x98] sm:$0xff] %vm1759, %v3794
        %3871 = vst.msk [vmem:[#allocation5 + $0xa0] sm:$0xff] %vm1759, %v3796
        %3872 = vst.msk [vmem:[#allocation5 + $0xa8] sm:$0xff] %vm1759, %v3798
        %3873 = vst.msk [vmem:[#allocation5 + $0xb0] sm:$0xff] %vm1759, %v3800
        %3874 = vst.msk [vmem:[#allocation5 + $0xb8] sm:$0xff] %vm1759, %v3802
        %3875 = vst.msk [vmem:[#allocation5 + $0xc0] sm:$0xff] %vm1759, %v3804
        %3876 = vst.msk [vmem:[#allocation5 + $0xc8] sm:$0xff] %vm1759, %v3806
        %3877 = vst.msk [vmem:[#allocation5 + $0xd0] sm:$0xff] %vm1759, %v3808
        %3878 = vst.msk [vmem:[#allocation5 + $0xd8] sm:$0xff] %vm1759, %v3810
        %3879 = vst.msk [vmem:[#allocation5 + $0xe0] sm:$0xff] %vm1759, %v3812
        %3880 = vst.msk [vmem:[#allocation5 + $0xe8] sm:$0xff] %vm1759, %v3814
        %3881 = vst.msk [vmem:[#allocation5 + $0xf0] sm:$0xff] %vm1759, %v3816
        %3882 = vst.msk [vmem:[#allocation5 + $0xf8] sm:$0xff] %vm1759, %v3818
        %v3883 = vld [vmem:[%s3498 + $0x2] sm:$0xff]
        %v3884 = vld [vmem:[%s3498 + $0xa] sm:$0xff]
        %v3885 = vld [vmem:[%s3498 + $0x1a] sm:$0xff]
        %v3886 = vld [vmem:[%s3498 + $0x22] sm:$0xff]
        %v3887 = vld [vmem:[%s3498 + $0x32] sm:$0xff]
        %v3888 = vld [vmem:[%s3498 + $0x3a] sm:$0xff]
        %v3889 = vld [vmem:[%s3498 + $0x4a] sm:$0xff]
        %v3890 = vld [vmem:[%s3498 + $0x52] sm:$0xff]
        %v3891 = vld [vmem:[%s3498 + $0x62] sm:$0xff]
        %v3892 = vld [vmem:[%s3498 + $0x6a] sm:$0xff]
        %v3893 = vld [vmem:[%s3498 + $0x7a] sm:$0xff]
        %v3894 = vld [vmem:[%s3498 + $0x82] sm:$0xff]
        %v3895 = vld [vmem:[%s3498 + $0x92] sm:$0xff]
        %v3896 = vld [vmem:[%s3498 + $0x9a] sm:$0xff]
        %v3897 = vld [vmem:[%s3498 + $0xaa] sm:$0xff]
        %v3898 = vld [vmem:[%s3498 + $0xb2] sm:$0xff]
        %v3899 = vld [vmem:[%s3498 + $0xc2] sm:$0xff]
        %v3900 = vld [vmem:[%s3498 + $0xca] sm:$0xff]
        %v3901 = vld [vmem:[%s3498 + $0xda] sm:$0xff]
        %v3902 = vld [vmem:[%s3498 + $0xe2] sm:$0xff]
        %v3903 = vld [vmem:[%s3498 + $0xf2] sm:$0xff]
        %v3904 = vld [vmem:[%s3498 + $0xfa] sm:$0xff]
        %v3905 = vld [vmem:[%s3498 + $0x10a] sm:$0xff]
        %v3906 = vld [vmem:[%s3498 + $0x112] sm:$0xff]
        %v3907 = vld [vmem:[%s3498 + $0x122] sm:$0xff]
        %v3908 = vld [vmem:[%s3498 + $0x12a] sm:$0xff]
        %v3909 = vld [vmem:[%s3498 + $0x13a] sm:$0xff]
        %v3910 = vld [vmem:[%s3498 + $0x142] sm:$0xff]
        %v3911 = vld [vmem:[%s3498 + $0x152] sm:$0xff]
        %v3912 = vld [vmem:[%s3498 + $0x15a] sm:$0xff]
        %v3913 = vld [vmem:[%s3498 + $0x16a] sm:$0xff]
        %v3914 = vld [vmem:[%s3498 + $0x172] sm:$0xff]
        %3947 = vrot.lane.b32.xlu0 %v3883, 32
        %v3948 = vpop.permute.xlu0 %3947
        %3949 = vrot.lane.b32.xlu0 %v3884, 32
        %v3950 = vpop.permute.xlu0 %3949
        %3951 = vrot.lane.b32.xlu0 %v3885, 32
        %v3952 = vpop.permute.xlu0 %3951
        %3953 = vrot.lane.b32.xlu0 %v3886, 32
        %v3954 = vpop.permute.xlu0 %3953
        %3955 = vrot.lane.b32.xlu0 %v3887, 32
        %v3956 = vpop.permute.xlu0 %3955
        %3957 = vrot.lane.b32.xlu0 %v3888, 32
        %v3958 = vpop.permute.xlu0 %3957
        %3959 = vrot.lane.b32.xlu0 %v3889, 32
        %v3960 = vpop.permute.xlu0 %3959
        %3961 = vrot.lane.b32.xlu0 %v3890, 32
        %v3962 = vpop.permute.xlu0 %3961
        %3963 = vrot.lane.b32.xlu0 %v3891, 32
        %v3964 = vpop.permute.xlu0 %3963
        %3965 = vrot.lane.b32.xlu0 %v3892, 32
        %v3966 = vpop.permute.xlu0 %3965
        %3967 = vrot.lane.b32.xlu0 %v3893, 32
        %v3968 = vpop.permute.xlu0 %3967
        %3969 = vrot.lane.b32.xlu0 %v3894, 32
        %v3970 = vpop.permute.xlu0 %3969
        %3971 = vrot.lane.b32.xlu0 %v3895, 32
        %v3972 = vpop.permute.xlu0 %3971
        %3973 = vrot.lane.b32.xlu0 %v3896, 32
        %v3974 = vpop.permute.xlu0 %3973
        %3975 = vrot.lane.b32.xlu0 %v3897, 32
        %v3976 = vpop.permute.xlu0 %3975
        %3977 = vrot.lane.b32.xlu0 %v3898, 32
        %v3978 = vpop.permute.xlu0 %3977
        %3979 = vrot.lane.b32.xlu0 %v3899, 32
        %v3980 = vpop.permute.xlu0 %3979
        %3981 = vrot.lane.b32.xlu0 %v3900, 32
        %v3982 = vpop.permute.xlu0 %3981
        %3983 = vrot.lane.b32.xlu0 %v3901, 32
        %v3984 = vpop.permute.xlu0 %3983
        %3985 = vrot.lane.b32.xlu0 %v3902, 32
        %v3986 = vpop.permute.xlu0 %3985
        %3987 = vrot.lane.b32.xlu0 %v3903, 32
        %v3988 = vpop.permute.xlu0 %3987
        %3989 = vrot.lane.b32.xlu0 %v3904, 32
        %v3990 = vpop.permute.xlu0 %3989
        %3991 = vrot.lane.b32.xlu0 %v3905, 32
        %v3992 = vpop.permute.xlu0 %3991
        %3993 = vrot.lane.b32.xlu0 %v3906, 32
        %v3994 = vpop.permute.xlu0 %3993
        %3995 = vrot.lane.b32.xlu0 %v3907, 32
        %v3996 = vpop.permute.xlu0 %3995
        %3997 = vrot.lane.b32.xlu0 %v3908, 32
        %v3998 = vpop.permute.xlu0 %3997
        %3999 = vrot.lane.b32.xlu0 %v3909, 32
        %v4000 = vpop.permute.xlu0 %3999
        %4001 = vrot.lane.b32.xlu0 %v3910, 32
        %v4002 = vpop.permute.xlu0 %4001
        %4003 = vrot.lane.b32.xlu0 %v3911, 32
        %v4004 = vpop.permute.xlu0 %4003
        %4005 = vrot.lane.b32.xlu0 %v3912, 32
        %v4006 = vpop.permute.xlu0 %4005
        %4007 = vrot.lane.b32.xlu0 %v3913, 32
        %v4008 = vpop.permute.xlu0 %4007
        %4009 = vrot.lane.b32.xlu0 %v3914, 32
        %v4010 = vpop.permute.xlu0 %4009
        %4043 = vst.msk [vmem:[#allocation5] sm:$0xff] %vm1952, %v3948
        %4044 = vst.msk [vmem:[#allocation5 + $0x8] sm:$0xff] %vm1952, %v3950
        %4045 = vst.msk [vmem:[#allocation5 + $0x10] sm:$0xff] %vm1952, %v3952
        %4046 = vst.msk [vmem:[#allocation5 + $0x18] sm:$0xff] %vm1952, %v3954
        %4047 = vst.msk [vmem:[#allocation5 + $0x20] sm:$0xff] %vm1952, %v3956
        %4048 = vst.msk [vmem:[#allocation5 + $0x28] sm:$0xff] %vm1952, %v3958
        %4049 = vst.msk [vmem:[#allocation5 + $0x30] sm:$0xff] %vm1952, %v3960
        %4050 = vst.msk [vmem:[#allocation5 + $0x38] sm:$0xff] %vm1952, %v3962
        %4051 = vst.msk [vmem:[#allocation5 + $0x40] sm:$0xff] %vm1952, %v3964
        %4052 = vst.msk [vmem:[#allocation5 + $0x48] sm:$0xff] %vm1952, %v3966
        %4053 = vst.msk [vmem:[#allocation5 + $0x50] sm:$0xff] %vm1952, %v3968
        %4054 = vst.msk [vmem:[#allocation5 + $0x58] sm:$0xff] %vm1952, %v3970
        %4055 = vst.msk [vmem:[#allocation5 + $0x60] sm:$0xff] %vm1952, %v3972
        %4056 = vst.msk [vmem:[#allocation5 + $0x68] sm:$0xff] %vm1952, %v3974
        %4057 = vst.msk [vmem:[#allocation5 + $0x70] sm:$0xff] %vm1952, %v3976
        %4058 = vst.msk [vmem:[#allocation5 + $0x78] sm:$0xff] %vm1952, %v3978
        %4059 = vst.msk [vmem:[#allocation5 + $0x80] sm:$0xff] %vm1952, %v3980
        %4060 = vst.msk [vmem:[#allocation5 + $0x88] sm:$0xff] %vm1952, %v3982
        %4061 = vst.msk [vmem:[#allocation5 + $0x90] sm:$0xff] %vm1952, %v3984
        %4062 = vst.msk [vmem:[#allocation5 + $0x98] sm:$0xff] %vm1952, %v3986
        %4063 = vst.msk [vmem:[#allocation5 + $0xa0] sm:$0xff] %vm1952, %v3988
        %4064 = vst.msk [vmem:[#allocation5 + $0xa8] sm:$0xff] %vm1952, %v3990
        %4065 = vst.msk [vmem:[#allocation5 + $0xb0] sm:$0xff] %vm1952, %v3992
        %4066 = vst.msk [vmem:[#allocation5 + $0xb8] sm:$0xff] %vm1952, %v3994
        %4067 = vst.msk [vmem:[#allocation5 + $0xc0] sm:$0xff] %vm1952, %v3996
        %4068 = vst.msk [vmem:[#allocation5 + $0xc8] sm:$0xff] %vm1952, %v3998
        %4069 = vst.msk [vmem:[#allocation5 + $0xd0] sm:$0xff] %vm1952, %v4000
        %4070 = vst.msk [vmem:[#allocation5 + $0xd8] sm:$0xff] %vm1952, %v4002
        %4071 = vst.msk [vmem:[#allocation5 + $0xe0] sm:$0xff] %vm1952, %v4004
        %4072 = vst.msk [vmem:[#allocation5 + $0xe8] sm:$0xff] %vm1952, %v4006
        %4073 = vst.msk [vmem:[#allocation5 + $0xf0] sm:$0xff] %vm1952, %v4008
        %4074 = vst.msk [vmem:[#allocation5 + $0xf8] sm:$0xff] %vm1952, %v4010
        %4107 = vrot.lane.b32.xlu0 %v223, 36
        %v4108 = vpop.permute.xlu0 %4107
        %4109 = vrot.lane.b32.xlu0 %v224, 36
        %v4110 = vpop.permute.xlu0 %4109
        %4111 = vrot.lane.b32.xlu0 %v225, 36
        %v4112 = vpop.permute.xlu0 %4111
        %4113 = vrot.lane.b32.xlu0 %v226, 36
        %v4114 = vpop.permute.xlu0 %4113
        %4115 = vrot.lane.b32.xlu0 %v227, 36
        %v4116 = vpop.permute.xlu0 %4115
        %4117 = vrot.lane.b32.xlu0 %v228, 36
        %v4118 = vpop.permute.xlu0 %4117
        %4119 = vrot.lane.b32.xlu0 %v229, 36
        %v4120 = vpop.permute.xlu0 %4119
        %4121 = vrot.lane.b32.xlu0 %v230, 36
        %v4122 = vpop.permute.xlu0 %4121
        %4123 = vrot.lane.b32.xlu0 %v231, 36
        %v4124 = vpop.permute.xlu0 %4123
        %4125 = vrot.lane.b32.xlu0 %v232, 36
        %v4126 = vpop.permute.xlu0 %4125
        %4127 = vrot.lane.b32.xlu0 %v233, 36
        %v4128 = vpop.permute.xlu0 %4127
        %4129 = vrot.lane.b32.xlu0 %v234, 36
        %v4130 = vpop.permute.xlu0 %4129
        %4131 = vrot.lane.b32.xlu0 %v235, 36
        %v4132 = vpop.permute.xlu0 %4131
        %4133 = vrot.lane.b32.xlu0 %v236, 36
        %v4134 = vpop.permute.xlu0 %4133
        %4135 = vrot.lane.b32.xlu0 %v237, 36
        %v4136 = vpop.permute.xlu0 %4135
        %4137 = vrot.lane.b32.xlu0 %v238, 36
        %v4138 = vpop.permute.xlu0 %4137
        %4139 = vrot.lane.b32.xlu0 %v239, 36
        %v4140 = vpop.permute.xlu0 %4139
        %4141 = vrot.lane.b32.xlu0 %v240, 36
        %v4142 = vpop.permute.xlu0 %4141
        %4143 = vrot.lane.b32.xlu0 %v241, 36
        %v4144 = vpop.permute.xlu0 %4143
        %4145 = vrot.lane.b32.xlu0 %v242, 36
        %v4146 = vpop.permute.xlu0 %4145
        %4147 = vrot.lane.b32.xlu0 %v243, 36
        %v4148 = vpop.permute.xlu0 %4147
        %4149 = vrot.lane.b32.xlu0 %v244, 36
        %v4150 = vpop.permute.xlu0 %4149
        %4151 = vrot.lane.b32.xlu0 %v245, 36
        %v4152 = vpop.permute.xlu0 %4151
        %4153 = vrot.lane.b32.xlu0 %v246, 36
        %v4154 = vpop.permute.xlu0 %4153
        %4155 = vrot.lane.b32.xlu0 %v247, 36
        %v4156 = vpop.permute.xlu0 %4155
        %4157 = vrot.lane.b32.xlu0 %v248, 36
        %v4158 = vpop.permute.xlu0 %4157
        %4159 = vrot.lane.b32.xlu0 %v249, 36
        %v4160 = vpop.permute.xlu0 %4159
        %4161 = vrot.lane.b32.xlu0 %v250, 36
        %v4162 = vpop.permute.xlu0 %4161
        %4163 = vrot.lane.b32.xlu0 %v251, 36
        %v4164 = vpop.permute.xlu0 %4163
        %4165 = vrot.lane.b32.xlu0 %v252, 36
        %v4166 = vpop.permute.xlu0 %4165
        %4167 = vrot.lane.b32.xlu0 %v253, 36
        %v4168 = vpop.permute.xlu0 %4167
        %4169 = vrot.lane.b32.xlu0 %v254, 36
        %v4170 = vpop.permute.xlu0 %4169
        %vm4203 = vcmask 326944
        %4204 = vst.msk [vmem:[#allocation5] sm:$0xff] %vm4203, %v4108
        %4205 = vst.msk [vmem:[#allocation5 + $0x8] sm:$0xff] %vm4203, %v4110
        %4206 = vst.msk [vmem:[#allocation5 + $0x10] sm:$0xff] %vm4203, %v4112
        %4207 = vst.msk [vmem:[#allocation5 + $0x18] sm:$0xff] %vm4203, %v4114
        %4208 = vst.msk [vmem:[#allocation5 + $0x20] sm:$0xff] %vm4203, %v4116
        %4209 = vst.msk [vmem:[#allocation5 + $0x28] sm:$0xff] %vm4203, %v4118
        %4210 = vst.msk [vmem:[#allocation5 + $0x30] sm:$0xff] %vm4203, %v4120
        %4211 = vst.msk [vmem:[#allocation5 + $0x38] sm:$0xff] %vm4203, %v4122
        %4212 = vst.msk [vmem:[#allocation5 + $0x40] sm:$0xff] %vm4203, %v4124
        %4213 = vst.msk [vmem:[#allocation5 + $0x48] sm:$0xff] %vm4203, %v4126
        %4214 = vst.msk [vmem:[#allocation5 + $0x50] sm:$0xff] %vm4203, %v4128
        %4215 = vst.msk [vmem:[#allocation5 + $0x58] sm:$0xff] %vm4203, %v4130
        %4216 = vst.msk [vmem:[#allocation5 + $0x60] sm:$0xff] %vm4203, %v4132
        %4217 = vst.msk [vmem:[#allocation5 + $0x68] sm:$0xff] %vm4203, %v4134
        %4218 = vst.msk [vmem:[#allocation5 + $0x70] sm:$0xff] %vm4203, %v4136
        %4219 = vst.msk [vmem:[#allocation5 + $0x78] sm:$0xff] %vm4203, %v4138
        %4220 = vst.msk [vmem:[#allocation5 + $0x80] sm:$0xff] %vm4203, %v4140
        %4221 = vst.msk [vmem:[#allocation5 + $0x88] sm:$0xff] %vm4203, %v4142
        %4222 = vst.msk [vmem:[#allocation5 + $0x90] sm:$0xff] %vm4203, %v4144
        %4223 = vst.msk [vmem:[#allocation5 + $0x98] sm:$0xff] %vm4203, %v4146
        %4224 = vst.msk [vmem:[#allocation5 + $0xa0] sm:$0xff] %vm4203, %v4148
        %4225 = vst.msk [vmem:[#allocation5 + $0xa8] sm:$0xff] %vm4203, %v4150
        %4226 = vst.msk [vmem:[#allocation5 + $0xb0] sm:$0xff] %vm4203, %v4152
        %4227 = vst.msk [vmem:[#allocation5 + $0xb8] sm:$0xff] %vm4203, %v4154
        %4228 = vst.msk [vmem:[#allocation5 + $0xc0] sm:$0xff] %vm4203, %v4156
        %4229 = vst.msk [vmem:[#allocation5 + $0xc8] sm:$0xff] %vm4203, %v4158
        %4230 = vst.msk [vmem:[#allocation5 + $0xd0] sm:$0xff] %vm4203, %v4160
        %4231 = vst.msk [vmem:[#allocation5 + $0xd8] sm:$0xff] %vm4203, %v4162
        %4232 = vst.msk [vmem:[#allocation5 + $0xe0] sm:$0xff] %vm4203, %v4164
        %4233 = vst.msk [vmem:[#allocation5 + $0xe8] sm:$0xff] %vm4203, %v4166
        %4234 = vst.msk [vmem:[#allocation5 + $0xf0] sm:$0xff] %vm4203, %v4168
        %4235 = vst.msk [vmem:[#allocation5 + $0xf8] sm:$0xff] %vm4203, %v4170
        %v4236 = vld [vmem:[#allocation5] sm:$0xff]
        %v4237 = vld [vmem:[#allocation5 + $0x8] sm:$0xff]
        %v4238 = vld [vmem:[#allocation5 + $0x10] sm:$0xff]
        %v4239 = vld [vmem:[#allocation5 + $0x18] sm:$0xff]
        %v4240 = vld [vmem:[#allocation5 + $0x20] sm:$0xff]
        %v4241 = vld [vmem:[#allocation5 + $0x28] sm:$0xff]
        %v4242 = vld [vmem:[#allocation5 + $0x30] sm:$0xff]
        %v4243 = vld [vmem:[#allocation5 + $0x38] sm:$0xff]
        %v4244 = vld [vmem:[#allocation5 + $0x40] sm:$0xff]
        %v4245 = vld [vmem:[#allocation5 + $0x48] sm:$0xff]
        %v4246 = vld [vmem:[#allocation5 + $0x50] sm:$0xff]
        %v4247 = vld [vmem:[#allocation5 + $0x58] sm:$0xff]
        %v4248 = vld [vmem:[#allocation5 + $0x60] sm:$0xff]
        %v4249 = vld [vmem:[#allocation5 + $0x68] sm:$0xff]
        %v4250 = vld [vmem:[#allocation5 + $0x70] sm:$0xff]
        %v4251 = vld [vmem:[#allocation5 + $0x78] sm:$0xff]
        %v4252 = vld [vmem:[#allocation5 + $0x80] sm:$0xff]
        %v4253 = vld [vmem:[#allocation5 + $0x88] sm:$0xff]
        %v4254 = vld [vmem:[#allocation5 + $0x90] sm:$0xff]
        %v4255 = vld [vmem:[#allocation5 + $0x98] sm:$0xff]
        %v4256 = vld [vmem:[#allocation5 + $0xa0] sm:$0xff]
        %v4257 = vld [vmem:[#allocation5 + $0xa8] sm:$0xff]
        %v4258 = vld [vmem:[#allocation5 + $0xb0] sm:$0xff]
        %v4259 = vld [vmem:[#allocation5 + $0xb8] sm:$0xff]
        %v4260 = vld [vmem:[#allocation5 + $0xc0] sm:$0xff]
        %v4261 = vld [vmem:[#allocation5 + $0xc8] sm:$0xff]
        %v4262 = vld [vmem:[#allocation5 + $0xd0] sm:$0xff]
        %v4263 = vld [vmem:[#allocation5 + $0xd8] sm:$0xff]
        %v4264 = vld [vmem:[#allocation5 + $0xe0] sm:$0xff]
        %v4265 = vld [vmem:[#allocation5 + $0xe8] sm:$0xff]
        %v4266 = vld [vmem:[#allocation5 + $0xf0] sm:$0xff]
        %v4267 = vld [vmem:[#allocation5 + $0xf8] sm:$0xff]
        %v4268 = vld [vmem:[%s3] sm:$0xff]
        %v4269 = vld [vmem:[%s3 + $0x8] sm:$0xff]
        %v4270 = vld [vmem:[%s3 + $0x10] sm:$0xff]
        %v4271 = vld [vmem:[%s3 + $0x18] sm:$0xff]
        %v4272 = vld [vmem:[%s3 + $0x20] sm:$0xff]
        %v4273 = vld [vmem:[%s4] sm:$0x1]
        %v4275 = vlaneseq
        %v4276 = vshrl.u32 %v4275, 7
        %v4277 = vsub.s32 0, %v4276
        %v4278 = vrot.slane %v4273, %v4277
        %vm4280 = vcmask 326656
        %v4282 = vsel %vm4280, %v4236, 0
        %v4285 = vsel %vm4280, %v4237, 0
        %v4288 = vsel %vm4280, %v4238, 0
        %v4291 = vsel %vm4280, %v4239, 0
        %v4294 = vsel %vm4280, %v4240, 0
        %v4297 = vsel %vm4280, %v4241, 0
        %v4300 = vsel %vm4280, %v4242, 0
        %v4303 = vsel %vm4280, %v4243, 0
        %v4306 = vsel %vm4280, %v4244, 0
        %v4309 = vsel %vm4280, %v4245, 0
        %v4312 = vsel %vm4280, %v4246, 0
        %v4315 = vsel %vm4280, %v4247, 0
        %v4318 = vsel %vm4280, %v4248, 0
        %v4321 = vsel %vm4280, %v4249, 0
        %v4324 = vsel %vm4280, %v4250, 0
        %v4327 = vsel %vm4280, %v4251, 0
        %v4330 = vsel %vm4280, %v4252, 0
        %v4333 = vsel %vm4280, %v4253, 0
        %v4336 = vsel %vm4280, %v4254, 0
        %v4339 = vsel %vm4280, %v4255, 0
        %v4342 = vsel %vm4280, %v4256, 0
        %v4345 = vsel %vm4280, %v4257, 0
        %v4348 = vsel %vm4280, %v4258, 0
        %v4351 = vsel %vm4280, %v4259, 0
        %v4354 = vsel %vm4280, %v4260, 0
        %v4357 = vsel %vm4280, %v4261, 0
        %v4360 = vsel %vm4280, %v4262, 0
        %v4363 = vsel %vm4280, %v4263, 0
        %v4366 = vsel %vm4280, %v4264, 0
        %v4369 = vsel %vm4280, %v4265, 0
        %v4372 = vsel %vm4280, %v4266, 0
        %v4375 = vsel %vm4280, %v4267, 0
        %4377 = vmatprep.subr.mxu0 0.0
        %4378 = vmatpush1.msra.mxu0 %v4268
        %4379 = vmatprep.subr.mxu0 0.0
        %4380 = vmatpush1.msra.mxu0 %v4269
        %4381 = vmatprep.subr.mxu0 0.0
        %4382 = vmatpush1.msra.mxu0 %v4270
        %4383 = vmatprep.subr.mxu0 0.0
        %4384 = vmatpush1.msra.mxu0 %v4271
        %4385 = vmatprep.subr.mxu0 0.0
        %4386 = vmatpush1.msra.mxu0 %v4272
        %4387 = vmatprep.subr.mxu0 0.0
        %4388 = vmatpush1.msra.mxu0 0.0
        %4389 = vmatprep.subr.mxu0 0.0
        %4390 = vmatpush1.msra.mxu0 0.0
        %4391 = vmatprep.subr.mxu0 0.0
        %4392 = vmatpush1.msra.mxu0 0.0
        %4393 = vmatprep.subr.mxu0 0.0
        %4394 = vmatpush1.msra.mxu0 0.0
        %4395 = vmatprep.subr.mxu0 0.0
        %4396 = vmatpush1.msra.mxu0 0.0
        %4397 = vmatprep.subr.mxu0 0.0
        %4398 = vmatpush1.msra.mxu0 0.0
        %4399 = vmatprep.subr.mxu0 0.0
        %4400 = vmatpush1.msra.mxu0 0.0
        %4401 = vmatprep.subr.mxu0 0.0
        %4402 = vmatpush1.msra.mxu0 0.0
        %4403 = vmatprep.subr.mxu0 0.0
        %4404 = vmatpush1.msra.mxu0 0.0
        %4405 = vmatprep.subr.mxu0 0.0
        %4406 = vmatpush1.msra.mxu0 0.0
        %4407 = vmatprep.subr.mxu0 0.0
        %4408 = vmatpush1.msra.mxu0 0.0
        %4409 = vmatprep.subr.mxu0 0.0
        %4410 = vmatpush1.msra.mxu0 0.0
        %4411 = vmatprep.subr.mxu0 0.0
        %4412 = vmatpush1.msra.mxu0 0.0
        %4413 = vmatprep.subr.mxu0 0.0
        %4414 = vmatpush1.msra.mxu0 0.0
        %4415 = vmatprep.subr.mxu0 0.0
        %4416 = vmatpush1.msra.mxu0 0.0
        %4417 = vmatprep.subr.mxu0 0.0
        %4418 = vmatpush1.msra.mxu0 0.0
        %4419 = vmatprep.subr.mxu0 0.0
        %4420 = vmatpush1.msra.mxu0 0.0
        %4421 = vmatprep.subr.mxu0 0.0
        %4422 = vmatpush1.msra.mxu0 0.0
        %4423 = vmatprep.subr.mxu0 0.0
        %4424 = vmatpush1.msra.mxu0 0.0
        %4425 = vmatprep.subr.mxu0 0.0
        %4426 = vmatpush1.msra.mxu0 0.0
        %4427 = vmatprep.subr.mxu0 0.0
        %4428 = vmatpush1.msra.mxu0 0.0
        %4429 = vmatprep.subr.mxu0 0.0
        %4430 = vmatpush1.msra.mxu0 0.0
        %4431 = vmatprep.subr.mxu0 0.0
        %4432 = vmatpush1.msra.mxu0 0.0
        %4433 = vmatprep.subr.mxu0 0.0
        %4434 = vmatpush1.msra.mxu0 0.0
        %4435 = vmatprep.subr.mxu0 0.0
        %4436 = vmatpush1.msra.mxu0 0.0
        %4437 = vmatprep.subr.mxu0 0.0
        %4438 = vmatpush1.msra.mxu0 0.0
        %4439 = vmatprep.subr.mxu0 0.0
        %4440 = vmatpush1.msra.mxu0 0.0
        %4441 = vmatprep.mubr.f32.mxu0 0.0
        %4442 = vmatmul.mubr.f32.gmra.mrb[0].mxu0 %v4282
        %v4443 = vpop.f32.mrb[0].mxu0
        %v4444 = vadd.f32 %v4278, %v4443
        %v4445 = vpop.f32.mrb[0].mxu0
        %4446 = vmatprep.mubr.f32.mxu0 0.0
        %4447 = vmatmul.mubr.f32.gmra.mrb[0].mxu0 %v4285
        %v4448 = vpop.f32.mrb[0].mxu0
        %v4449 = vadd.f32 %v4278, %v4448
        %v4450 = vpop.f32.mrb[0].mxu0
        %4451 = vmatprep.mubr.f32.mxu0 0.0
        %4452 = vmatmul.mubr.f32.gmra.mrb[0].mxu0 %v4288
        %v4453 = vpop.f32.mrb[0].mxu0
        %v4454 = vadd.f32 %v4278, %v4453
        %v4455 = vpop.f32.mrb[0].mxu0
        %4456 = vmatprep.mubr.f32.mxu0 0.0
        %4457 = vmatmul.mubr.f32.gmra.mrb[0].mxu0 %v4291
        %v4458 = vpop.f32.mrb[0].mxu0
        %v4459 = vadd.f32 %v4278, %v4458
        %v4460 = vpop.f32.mrb[0].mxu0
        %4461 = vmatprep.mubr.f32.mxu0 0.0
        %4462 = vmatmul.mubr.f32.gmra.mrb[0].mxu0 %v4294
        %v4463 = vpop.f32.mrb[0].mxu0
        %v4464 = vadd.f32 %v4278, %v4463
        %v4465 = vpop.f32.mrb[0].mxu0
        %4466 = vmatprep.mubr.f32.mxu0 0.0
        %4467 = vmatmul.mubr.f32.gmra.mrb[0].mxu0 %v4297
        %v4468 = vpop.f32.mrb[0].mxu0
        %v4469 = vadd.f32 %v4278, %v4468
        %v4470 = vpop.f32.mrb[0].mxu0
        %4471 = vmatprep.mubr.f32.mxu0 0.0
        %4472 = vmatmul.mubr.f32.gmra.mrb[0].mxu0 %v4300
        %v4473 = vpop.f32.mrb[0].mxu0
        %v4474 = vadd.f32 %v4278, %v4473
        %v4475 = vpop.f32.mrb[0].mxu0
        %4476 = vmatprep.mubr.f32.mxu0 0.0
        %4477 = vmatmul.mubr.f32.gmra.mrb[0].mxu0 %v4303
        %v4478 = vpop.f32.mrb[0].mxu0
        %v4479 = vadd.f32 %v4278, %v4478
        %v4480 = vpop.f32.mrb[0].mxu0
        %4481 = vmatprep.mubr.f32.mxu0 0.0
        %4482 = vmatmul.mubr.f32.gmra.mrb[0].mxu0 %v4306
        %v4483 = vpop.f32.mrb[0].mxu0
        %v4484 = vadd.f32 %v4278, %v4483
        %v4485 = vpop.f32.mrb[0].mxu0
        %4486 = vmatprep.mubr.f32.mxu0 0.0
        %4487 = vmatmul.mubr.f32.gmra.mrb[0].mxu0 %v4309
        %v4488 = vpop.f32.mrb[0].mxu0
        %v4489 = vadd.f32 %v4278, %v4488
        %v4490 = vpop.f32.mrb[0].mxu0
        %4491 = vmatprep.mubr.f32.mxu0 0.0
        %4492 = vmatmul.mubr.f32.gmra.mrb[0].mxu0 %v4312
        %v4493 = vpop.f32.mrb[0].mxu0
        %v4494 = vadd.f32 %v4278, %v4493
        %v4495 = vpop.f32.mrb[0].mxu0
        %4496 = vmatprep.mubr.f32.mxu0 0.0
        %4497 = vmatmul.mubr.f32.gmra.mrb[0].mxu0 %v4315
        %v4498 = vpop.f32.mrb[0].mxu0
        %v4499 = vadd.f32 %v4278, %v4498
        %v4500 = vpop.f32.mrb[0].mxu0
        %4501 = vmatprep.mubr.f32.mxu0 0.0
        %4502 = vmatmul.mubr.f32.gmra.mrb[0].mxu0 %v4318
        %v4503 = vpop.f32.mrb[0].mxu0
        %v4504 = vadd.f32 %v4278, %v4503
        %v4505 = vpop.f32.mrb[0].mxu0
        %4506 = vmatprep.mubr.f32.mxu0 0.0
        %4507 = vmatmul.mubr.f32.gmra.mrb[0].mxu0 %v4321
        %v4508 = vpop.f32.mrb[0].mxu0
        %v4509 = vadd.f32 %v4278, %v4508
        %v4510 = vpop.f32.mrb[0].mxu0
        %4511 = vmatprep.mubr.f32.mxu0 0.0
        %4512 = vmatmul.mubr.f32.gmra.mrb[0].mxu0 %v4324
        %v4513 = vpop.f32.mrb[0].mxu0
        %v4514 = vadd.f32 %v4278, %v4513
        %v4515 = vpop.f32.mrb[0].mxu0
        %4516 = vmatprep.mubr.f32.mxu0 0.0
        %4517 = vmatmul.mubr.f32.gmra.mrb[0].mxu0 %v4327
        %v4518 = vpop.f32.mrb[0].mxu0
        %v4519 = vadd.f32 %v4278, %v4518
        %v4520 = vpop.f32.mrb[0].mxu0
        %4521 = vmatprep.mubr.f32.mxu0 0.0
        %4522 = vmatmul.mubr.f32.gmra.mrb[0].mxu0 %v4330
        %v4523 = vpop.f32.mrb[0].mxu0
        %v4524 = vadd.f32 %v4278, %v4523
        %v4525 = vpop.f32.mrb[0].mxu0
        %4526 = vmatprep.mubr.f32.mxu0 0.0
        %4527 = vmatmul.mubr.f32.gmra.mrb[0].mxu0 %v4333
        %v4528 = vpop.f32.mrb[0].mxu0
        %v4529 = vadd.f32 %v4278, %v4528
        %v4530 = vpop.f32.mrb[0].mxu0
        %4531 = vmatprep.mubr.f32.mxu0 0.0
        %4532 = vmatmul.mubr.f32.gmra.mrb[0].mxu0 %v4336
        %v4533 = vpop.f32.mrb[0].mxu0
        %v4534 = vadd.f32 %v4278, %v4533
        %v4535 = vpop.f32.mrb[0].mxu0
        %4536 = vmatprep.mubr.f32.mxu0 0.0
        %4537 = vmatmul.mubr.f32.gmra.mrb[0].mxu0 %v4339
        %v4538 = vpop.f32.mrb[0].mxu0
        %v4539 = vadd.f32 %v4278, %v4538
        %v4540 = vpop.f32.mrb[0].mxu0
        %4541 = vmatprep.mubr.f32.mxu0 0.0
        %4542 = vmatmul.mubr.f32.gmra.mrb[0].mxu0 %v4342
        %v4543 = vpop.f32.mrb[0].mxu0
        %v4544 = vadd.f32 %v4278, %v4543
        %v4545 = vpop.f32.mrb[0].mxu0
        %4546 = vmatprep.mubr.f32.mxu0 0.0
        %4547 = vmatmul.mubr.f32.gmra.mrb[0].mxu0 %v4345
        %v4548 = vpop.f32.mrb[0].mxu0
        %v4549 = vadd.f32 %v4278, %v4548
        %v4550 = vpop.f32.mrb[0].mxu0
        %4551 = vmatprep.mubr.f32.mxu0 0.0
        %4552 = vmatmul.mubr.f32.gmra.mrb[0].mxu0 %v4348
        %v4553 = vpop.f32.mrb[0].mxu0
        %v4554 = vadd.f32 %v4278, %v4553
        %v4555 = vpop.f32.mrb[0].mxu0
        %4556 = vmatprep.mubr.f32.mxu0 0.0
        %4557 = vmatmul.mubr.f32.gmra.mrb[0].mxu0 %v4351
        %v4558 = vpop.f32.mrb[0].mxu0
        %v4559 = vadd.f32 %v4278, %v4558
        %v4560 = vpop.f32.mrb[0].mxu0
        %4561 = vmatprep.mubr.f32.mxu0 0.0
        %4562 = vmatmul.mubr.f32.gmra.mrb[0].mxu0 %v4354
        %v4563 = vpop.f32.mrb[0].mxu0
        %v4564 = vadd.f32 %v4278, %v4563
        %v4565 = vpop.f32.mrb[0].mxu0
        %4566 = vmatprep.mubr.f32.mxu0 0.0
        %4567 = vmatmul.mubr.f32.gmra.mrb[0].mxu0 %v4357
        %v4568 = vpop.f32.mrb[0].mxu0
        %v4569 = vadd.f32 %v4278, %v4568
        %v4570 = vpop.f32.mrb[0].mxu0
        %4571 = vmatprep.mubr.f32.mxu0 0.0
        %4572 = vmatmul.mubr.f32.gmra.mrb[0].mxu0 %v4360
        %v4573 = vpop.f32.mrb[0].mxu0
        %v4574 = vadd.f32 %v4278, %v4573
        %v4575 = vpop.f32.mrb[0].mxu0
        %4576 = vmatprep.mubr.f32.mxu0 0.0
        %4577 = vmatmul.mubr.f32.gmra.mrb[0].mxu0 %v4363
        %v4578 = vpop.f32.mrb[0].mxu0
        %v4579 = vadd.f32 %v4278, %v4578
        %v4580 = vpop.f32.mrb[0].mxu0
        %4581 = vmatprep.mubr.f32.mxu0 0.0
        %4582 = vmatmul.mubr.f32.gmra.mrb[0].mxu0 %v4366
        %v4583 = vpop.f32.mrb[0].mxu0
        %v4584 = vadd.f32 %v4278, %v4583
        %v4585 = vpop.f32.mrb[0].mxu0
        %4586 = vmatprep.mubr.f32.mxu0 0.0
        %4587 = vmatmul.mubr.f32.gmra.mrb[0].mxu0 %v4369
        %v4588 = vpop.f32.mrb[0].mxu0
        %v4589 = vadd.f32 %v4278, %v4588
        %v4590 = vpop.f32.mrb[0].mxu0
        %4591 = vmatprep.mubr.f32.mxu0 0.0
        %4592 = vmatmul.mubr.f32.gmra.mrb[0].mxu0 %v4372
        %v4593 = vpop.f32.mrb[0].mxu0
        %v4594 = vadd.f32 %v4278, %v4593
        %v4595 = vpop.f32.mrb[0].mxu0
        %4596 = vmatprep.mubr.f32.mxu0 0.0
        %4597 = vmatmul.mubr.f32.gmra.mrb[0].mxu0 %v4375
        %v4598 = vpop.f32.mrb[0].mxu0
        %v4599 = vadd.f32 %v4278, %v4598
        %v4600 = vpop.f32.mrb[0].mxu0
        %4601 = vdwg.mxu0
        %4602 = vst [vmem:[#allocation6] sm:$0xff] %v4444
        %4603 = vst [vmem:[#allocation6 + $0x8] sm:$0xff] %v4449
        %4604 = vst [vmem:[#allocation6 + $0x10] sm:$0xff] %v4454
        %4605 = vst [vmem:[#allocation6 + $0x18] sm:$0xff] %v4459
        %4606 = vst [vmem:[#allocation6 + $0x20] sm:$0xff] %v4464
        %4607 = vst [vmem:[#allocation6 + $0x28] sm:$0xff] %v4469
        %4608 = vst [vmem:[#allocation6 + $0x30] sm:$0xff] %v4474
        %4609 = vst [vmem:[#allocation6 + $0x38] sm:$0xff] %v4479
        %4610 = vst [vmem:[#allocation6 + $0x40] sm:$0xff] %v4484
        %4611 = vst [vmem:[#allocation6 + $0x48] sm:$0xff] %v4489
        %4612 = vst [vmem:[#allocation6 + $0x50] sm:$0xff] %v4494
        %4613 = vst [vmem:[#allocation6 + $0x58] sm:$0xff] %v4499
        %4614 = vst [vmem:[#allocation6 + $0x60] sm:$0xff] %v4504
        %4615 = vst [vmem:[#allocation6 + $0x68] sm:$0xff] %v4509
        %4616 = vst [vmem:[#allocation6 + $0x70] sm:$0xff] %v4514
        %4617 = vst [vmem:[#allocation6 + $0x78] sm:$0xff] %v4519
        %4618 = vst [vmem:[#allocation6 + $0x80] sm:$0xff] %v4524
        %4619 = vst [vmem:[#allocation6 + $0x88] sm:$0xff] %v4529
        %4620 = vst [vmem:[#allocation6 + $0x90] sm:$0xff] %v4534
        %4621 = vst [vmem:[#allocation6 + $0x98] sm:$0xff] %v4539
        %4622 = vst [vmem:[#allocation6 + $0xa0] sm:$0xff] %v4544
        %4623 = vst [vmem:[#allocation6 + $0xa8] sm:$0xff] %v4549
        %4624 = vst [vmem:[#allocation6 + $0xb0] sm:$0xff] %v4554
        %4625 = vst [vmem:[#allocation6 + $0xb8] sm:$0xff] %v4559
        %4626 = vst [vmem:[#allocation6 + $0xc0] sm:$0xff] %v4564
        %4627 = vst [vmem:[#allocation6 + $0xc8] sm:$0xff] %v4569
        %4628 = vst [vmem:[#allocation6 + $0xd0] sm:$0xff] %v4574
        %4629 = vst [vmem:[#allocation6 + $0xd8] sm:$0xff] %v4579
        %4630 = vst [vmem:[#allocation6 + $0xe0] sm:$0xff] %v4584
        %4631 = vst [vmem:[#allocation6 + $0xe8] sm:$0xff] %v4589
        %4632 = vst [vmem:[#allocation6 + $0xf0] sm:$0xff] %v4594
        %4633 = vst [vmem:[#allocation6 + $0xf8] sm:$0xff] %v4599
        %v4634 = vld [vmem:[#allocation6] ss:$2 sm:$0xff]
        %s4635 = scalar_lea.vmem [#allocation6], 32
        %v4636 = vld [vmem:[%s4635] ss:$2 sm:$0xff]
        %s4637 = scalar_lea.vmem [#allocation6], 64
        %v4638 = vld [vmem:[%s4637] ss:$2 sm:$0xff]
        %s4639 = scalar_lea.vmem [#allocation6], 96
        %v4640 = vld [vmem:[%s4639] ss:$2 sm:$0xff]
        %s4641 = scalar_lea.vmem [#allocation6], 128
        %v4642 = vld [vmem:[%s4641] ss:$2 sm:$0xff]
        %s4643 = scalar_lea.vmem [#allocation6], 160
        %v4644 = vld [vmem:[%s4643] ss:$2 sm:$0xff]
        %s4645 = scalar_lea.vmem [#allocation6], 192
        %v4646 = vld [vmem:[%s4645] ss:$2 sm:$0xff]
        %s4647 = scalar_lea.vmem [#allocation6], 224
        %v4648 = vld [vmem:[%s4647] ss:$2 sm:$0xff]
        %s4649 = scalar_lea.vmem [#allocation6], 1
        %v4650 = vld [vmem:[%s4649] ss:$2 sm:$0xff]
        %s4651 = scalar_lea.vmem [#allocation6], 33
        %v4652 = vld [vmem:[%s4651] ss:$2 sm:$0xff]
        %s4653 = scalar_lea.vmem [#allocation6], 65
        %v4654 = vld [vmem:[%s4653] ss:$2 sm:$0xff]
        %s4655 = scalar_lea.vmem [#allocation6], 97
        %v4656 = vld [vmem:[%s4655] ss:$2 sm:$0xff]
        %s4657 = scalar_lea.vmem [#allocation6], 129
        %v4658 = vld [vmem:[%s4657] ss:$2 sm:$0xff]
        %s4659 = scalar_lea.vmem [#allocation6], 161
        %v4660 = vld [vmem:[%s4659] ss:$2 sm:$0xff]
        %s4661 = scalar_lea.vmem [#allocation6], 193
        %v4662 = vld [vmem:[%s4661] ss:$2 sm:$0xff]
        %s4663 = scalar_lea.vmem [#allocation6], 225
        %v4664 = vld [vmem:[%s4663] ss:$2 sm:$0xff]
        %v4665 = vadd.f32 %v4634, %v4650
        %v4666 = vadd.f32 %v4636, %v4652
        %v4667 = vadd.f32 %v4638, %v4654
        %v4668 = vadd.f32 %v4640, %v4656
        %v4669 = vadd.f32 %v4642, %v4658
        %v4670 = vadd.f32 %v4644, %v4660
        %v4671 = vadd.f32 %v4646, %v4662
        %v4672 = vadd.f32 %v4648, %v4664
        %s4673 = scalar_lea.vmem [#allocation6], 16
        %v4674 = vld [vmem:[%s4673] ss:$2 sm:$0xff]
        %s4675 = scalar_lea.vmem %s4673, 32 [#allocation6]
        %v4676 = vld [vmem:[%s4675] ss:$2 sm:$0xff]
        %s4677 = scalar_lea.vmem %s4673, 64 [#allocation6]
        %v4678 = vld [vmem:[%s4677] ss:$2 sm:$0xff]
        %s4679 = scalar_lea.vmem %s4673, 96 [#allocation6]
        %v4680 = vld [vmem:[%s4679] ss:$2 sm:$0xff]
        %s4681 = scalar_lea.vmem %s4673, 128 [#allocation6]
        %v4682 = vld [vmem:[%s4681] ss:$2 sm:$0xff]
        %s4683 = scalar_lea.vmem %s4673, 160 [#allocation6]
        %v4684 = vld [vmem:[%s4683] ss:$2 sm:$0xff]
        %s4685 = scalar_lea.vmem %s4673, 192 [#allocation6]
        %v4686 = vld [vmem:[%s4685] ss:$2 sm:$0xff]
        %s4687 = scalar_lea.vmem %s4673, 224 [#allocation6]
        %v4688 = vld [vmem:[%s4687] ss:$2 sm:$0xff]
        %v4689 = vadd.f32 %v4665, %v4674
        %v4690 = vadd.f32 %v4666, %v4676
        %v4691 = vadd.f32 %v4667, %v4678
        %v4692 = vadd.f32 %v4668, %v4680
        %v4693 = vadd.f32 %v4669, %v4682
        %v4694 = vadd.f32 %v4670, %v4684
        %v4695 = vadd.f32 %v4671, %v4686
        %v4696 = vadd.f32 %v4672, %v4688
        %s4697 = scalar_lea.vmem %s4673, 1 [#allocation6]
        %v4698 = vld [vmem:[%s4697] ss:$2 sm:$0xff]
        %s4699 = scalar_lea.vmem %s4673, 33 [#allocation6]
        %v4700 = vld [vmem:[%s4699] ss:$2 sm:$0xff]
        %s4701 = scalar_lea.vmem %s4673, 65 [#allocation6]
        %v4702 = vld [vmem:[%s4701] ss:$2 sm:$0xff]
        %s4703 = scalar_lea.vmem %s4673, 97 [#allocation6]
        %v4704 = vld [vmem:[%s4703] ss:$2 sm:$0xff]
        %s4705 = scalar_lea.vmem %s4673, 129 [#allocation6]
        %v4706 = vld [vmem:[%s4705] ss:$2 sm:$0xff]
        %s4707 = scalar_lea.vmem %s4673, 161 [#allocation6]
        %v4708 = vld [vmem:[%s4707] ss:$2 sm:$0xff]
        %s4709 = scalar_lea.vmem %s4673, 193 [#allocation6]
        %v4710 = vld [vmem:[%s4709] ss:$2 sm:$0xff]
        %s4711 = scalar_lea.vmem %s4673, 225 [#allocation6]
        %v4712 = vld [vmem:[%s4711] ss:$2 sm:$0xff]
        %v4713 = vadd.f32 %v4689, %v4698
        %v4714 = vadd.f32 %v4690, %v4700
        %v4715 = vadd.f32 %v4691, %v4702
        %v4716 = vadd.f32 %v4692, %v4704
        %v4717 = vadd.f32 %v4693, %v4706
        %v4718 = vadd.f32 %v4694, %v4708
        %v4719 = vadd.f32 %v4695, %v4710
        %v4720 = vadd.f32 %v4696, %v4712
        %v4721 = vmul.f32 %v4713, 0.25
        %v4722 = vmul.f32 %v4714, 0.25
        %v4723 = vmul.f32 %v4715, 0.25
        %v4724 = vmul.f32 %v4716, 0.25
        %v4725 = vmul.f32 %v4717, 0.25
        %v4726 = vmul.f32 %v4718, 0.25
        %v4727 = vmul.f32 %v4719, 0.25
        %v4728 = vmul.f32 %v4720, 0.25
        %4729 = vst [vmem:[%s217] sm:$0xff] %v4721
        %4730 = vst [vmem:[%s217 + $0x8] sm:$0xff] %v4722
        %4731 = vst [vmem:[%s217 + $0x10] sm:$0xff] %v4723
        %4732 = vst [vmem:[%s217 + $0x18] sm:$0xff] %v4724
        %4733 = vst [vmem:[%s217 + $0x20] sm:$0xff] %v4725
        %4734 = vst [vmem:[%s217 + $0x28] sm:$0xff] %v4726
        %4735 = vst [vmem:[%s217 + $0x30] sm:$0xff] %v4727
        %4736 = vst [vmem:[%s217 + $0x38] sm:$0xff] %v4728
        %s4737 = sand.u32 %s137, 1
        %s4738 = scalar_lea.sflag [#allocation8], %s4737
        %s4739 = sand.u32 %s137, 1
        %s4740 = smul.addr %s4739, 64
        %s4741 = scalar_lea.vmem [#allocation7], %s4740
        // Predicated region
        $region41: #{tpu_custom_call.1} parent=39 // pred_check
          %p4742 = pneg %p147
        $region42: #{tpu_custom_call.1} parent=39 // pred_check_branch
          %4744 = sbr.rel (%p4742) target = $region44
        $region43: #{tpu_custom_call.1} parent=39 // pred_region
          %s4746 = ssub.s32 1024, 1024
          %4747 = vsyncadd %s4738, %s4746
          %s4748 = smul.addr %s19, 8
          %s4749 = smul.addr %s4748, 128
          %s4750 = scalar_lea.hbm %s5, %s4749
          %s4751 = sshll.u32 %s4741, 4
          %s4752 = int_to_ptr.vmem [resolvable:$true] %s4751
          %4757 = dma.vmem_to_hbm [thread:$0]  %s4752, 1024, %s4750, %s4738, 128, 128, 8
        $region44: #{tpu_custom_call.1} parent=39 // pred_fallthru
          _
      $region40: #{tpu_custom_call.1} parent=5 // pred_fallthru
        _
      %p4758 = scmp.le.s32.totalorder 2, %s14
      // Predicated region
      $region45: #{tpu_custom_call.1} parent=5 // pred_check
        %p4759 = pneg %p4758
      $region46: #{tpu_custom_call.1} parent=5 // pred_check_branch
        %4761 = sbr.rel (%p4759) target = $region48
      $region47: #{tpu_custom_call.1} parent=5 // pred_region
        %s4762 = ssub.s32 %s14, 2
        // Predicated region
        $region49: #{tpu_custom_call.1} parent=47 // pred_check
          %p4763 = pneg %p153
        $region50: #{tpu_custom_call.1} parent=47 // pred_check_branch
          %4765 = sbr.rel (%p4763) target = $region52
        $region51: #{tpu_custom_call.1} parent=47 // pred_region
          %s4766 = sand.u32 %s138, 1
          %s4767 = scalar_lea.sflag [#allocation8], %s4766
          %s4768 = sand.u32 %s138, 1
          %s4769 = smul.addr %s4768, 64
          %s4770 = scalar_lea.vmem [#allocation7], %s4769
          %4771 = dma.done %s4767, 1024
        $region52: #{tpu_custom_call.1} parent=47 // pred_fallthru
          _
      $region48: #{tpu_custom_call.1} parent=5 // pred_fallthru
        _
    $region6: #{tpu_custom_call.1} parent=1 // loop_footer
      %s18 = sadd.s32 1, %s14
    $region7: #{tpu_custom_call.1} parent=1 // loop_footer_branch
      %13 = sbr.rel target = $region3
    $region8: #{tpu_custom_call.1} parent=1 // loop_exit
      _
    %4772 = vsyncpa [#allocation8], 1
    %s4773 = scalar_lea.sflag [#allocation8], 1
    %4774 = vsyncpa %s4773, 1

</llo_original>
